<compile_context>
chip_gen: v6e
topology: v6e:2x2x1
jax: 0.10.0
libtpu: 0.0.40
codegen_flags: <defaults>
</compile_context>

<pallas_src>
import math
import functools

import jax
import jax.numpy as jnp
from jax.experimental import pallas as pl
from jax.experimental.pallas import tpu as pltpu


# ---------------------------------------------------------------------------
# helpers
# ---------------------------------------------------------------------------
def _round_up(x, m):
    return ((x + m - 1) // m) * m


def _choose_bblk(b_pad8):
    """Batch block: >=2 grid steps for small B (v7x has 2 TCs), minimal tail
    padding and large blocks (MXU fill / step-overhead amortization) for big B."""
    if b_pad8 <= 8:
        return 8
    if b_pad8 <= 512:
        return _round_up((b_pad8 + 1) // 2, 8)
    best_blk, best_waste = None, None
    for cand in (512, 256, 128):            # prefer larger block on ties
        waste = _round_up(b_pad8, cand) - b_pad8
        if best_waste is None or waste < best_waste:
            best_blk, best_waste = cand, waste
    return best_blk


# ---------------------------------------------------------------------------
# Fused VAE forward kernel (one batch chunk per grid step)
#
# packed linear order: [enc_0 .. enc_{nenc-1}, fused(mu||log_var),
#                       dec_0 .. dec_{ndec-1}]
# ---------------------------------------------------------------------------
def _vae_kernel(nenc, ndec, lat_pad, *refs):
    n_lin = nenc + 1 + ndec
    x_ref, eps_ref = refs[0], refs[1]
    param_refs = refs[2:2 + 2 * n_lin]
    y_ref, z_ref, kl_ref = refs[2 + 2 * n_lin:]

    def linear(h, idx):
        w = param_refs[2 * idx][...]            # bf16 (Kpad, Npad)
        b = param_refs[2 * idx + 1][...]        # f32  (1, Npad)
        return jnp.dot(h.astype(jnp.bfloat16), w,
                       preferred_element_type=jnp.float32) + b

    # --- encoder MLP: Linear -> ReLU (dropout = identity, eval semantics) ---
    h = x_ref[...]                              # (Bblk, Fpad) f32
    for i in range(nenc):
        h = jnp.maximum(linear(h, i), 0.0)

    # --- fused latent heads: one matmul producing [mu || log_var] ---
    head = linear(h, nenc)                      # (Bblk, 2*lat_pad) f32
    mu = head[:, :lat_pad]
    lv = head[:, lat_pad:]
    sigma = jnp.exp(lv)

    # reparameterization: z = mu + sigma * eps (padded lanes: 0 + 1*0 = 0)
    z_ref[...] = mu + sigma * eps_ref[...]

    # per-row KL partial (padded latent lanes contribute 1 + 0 - 0 - exp(0) = 0)
    kl_ref[...] = -0.5 * jnp.sum(1.0 + lv - mu * mu - sigma,
                                 axis=1, keepdims=True)

    # --- decoder MLP runs on mu (matches the PyTorch forward: y = mu) ---
    y = mu
    for j in range(ndec - 1):
        y = jnp.maximum(linear(y, nenc + 1 + j), 0.0)
    y_ref[...] = linear(y, nenc + ndec)


def linear_vae_forward(x, eps, packed, *, nenc, ndec,
                       feature_size, latent_size, lat_pad):
    """x: (B, feature_size) f32, eps: (B, latent_size) f32 standard-normal."""
    B, F = x.shape
    Fpad = _round_up(F, 128)

    # ---- batch tiling ----
    b_pad8 = _round_up(max(B, 8), 8)
    bblk = _choose_bblk(b_pad8)
    b_pad = _round_up(b_pad8, bblk)
    grid = (b_pad // bblk,)

    # pad only to per-tensor lane widths (not a global P)
    xp = jnp.pad(x.astype(jnp.float32), ((0, b_pad - B), (0, Fpad - F)))
    ep = jnp.pad(eps.astype(jnp.float32),
                 ((0, b_pad - B), (0, lat_pad - latent_size)))

    param_arrays = []
    for W, b in packed:
        param_arrays += [W, b]

    out_shapes = (
        jax.ShapeDtypeStruct((b_pad, Fpad), jnp.float32),      # y
        jax.ShapeDtypeStruct((b_pad, lat_pad), jnp.float32),    # z
        jax.ShapeDtypeStruct((b_pad, 1), jnp.float32),          # per-row KL
    )

    # ---- VMEM budget (single-buffered params + double-buffered I/O blocks) ----
    param_bytes = sum(int(a.size) * a.dtype.itemsize for a in param_arrays)
    max_w = max([Fpad, 2 * lat_pad] + [int(w.shape[1]) for w, _ in packed])
    est = (2 * param_bytes
           + 2 * bblk * (Fpad + lat_pad) * 4            # x / eps blocks
           + 2 * bblk * (Fpad + lat_pad + 128) * 4      # y / z / kl blocks
           + 6 * bblk * max_w * 4)                      # activation temporaries
    vmem_limit = int(min(max(est + (4 << 20), 32 << 20), 48 << 20))

    kernel = functools.partial(_vae_kernel, nenc, ndec, lat_pad)

    def build(single_buffer_params):
        extra = {}
        if single_buffer_params:
            # weights/biases never change across the grid -> one VMEM buffer
            extra = dict(pipeline_mode=pl.Buffered(buffer_count=1))
        param_specs = [pl.BlockSpec(a.shape, lambda b: (0, 0), **extra)
                       for a in param_arrays]
        in_specs = [
            pl.BlockSpec((bblk, Fpad), lambda b: (b, 0)),        # x chunk
            pl.BlockSpec((bblk, lat_pad), lambda b: (b, 0)),     # eps chunk
            *param_specs,
        ]
        out_specs = (
            pl.BlockSpec((bblk, Fpad), lambda b: (b, 0)),        # y
            pl.BlockSpec((bblk, lat_pad), lambda b: (b, 0)),     # z
            pl.BlockSpec((bblk, 1), lambda b: (b, 0)),           # kl rows
        )
        return pl.pallas_call(
            kernel,
            out_shape=out_shapes,
            grid=grid,
            in_specs=in_specs,
            out_specs=out_specs,
            compiler_params=pltpu.CompilerParams(
                dimension_semantics=("parallel",),
                vmem_limit_bytes=vmem_limit),
        )

    try:
        y_p, z_p, kl_rows = build(True)(xp, ep, *param_arrays)
    except Exception:
        # fallback for jax versions without pipeline_mode / Buffered(1) support
        y_p, z_p, kl_rows = build(False)(xp, ep, *param_arrays)

    y = y_p[:B, :feature_size]
    z = z_p[:B, :latent_size]
    kl = jnp.mean(kl_rows[:B, 0])     # self.kl side-effect, returned explicitly
    return y, z, kl


# ---------------------------------------------------------------------------
# Parameter construction (PyTorch nn.Linear-style init) + per-layer packing
# ---------------------------------------------------------------------------
def init_params(key, feature_size, hidden_size, latent_size):
    hidden = [hidden_size] if isinstance(hidden_size, int) else list(hidden_size)
    sizes = [feature_size] + hidden

    def linear(k, in_f, out_f):
        k1, k2 = jax.random.split(k)
        bound = 1.0 / math.sqrt(in_f)
        W = jax.random.uniform(k1, (in_f, out_f), jnp.float32, -bound, bound)
        b = jax.random.uniform(k2, (out_f,), jnp.float32, -bound, bound)
        return W, b

    layers = []
    for in_f, out_f in zip(sizes[:-1], sizes[1:]):          # encoders
        key, k = jax.random.split(key)
        layers.append(linear(k, in_f, out_f))
    for _ in range(2):                                       # enc_mu, enc_log_var
        key, k = jax.random.split(key)
        layers.append(linear(k, sizes[-1], latent_size))
    dec_sizes = list(reversed(sizes + [latent_size]))        # decoders
    for in_f, out_f in zip(dec_sizes[:-1], dec_sizes[1:]):
        key, k = jax.random.split(key)
        layers.append(linear(k, in_f, out_f))

    nenc = len(sizes) - 1
    ndec = len(dec_sizes) - 1
    return layers, nenc, ndec


def pack_params(layers, nenc, ndec, latent_size):
    """Pad each Linear to (round_up(in,128), round_up(out,128)); weights bf16,
    biases f32. The mu / log_var heads are fused along the lane dim."""
    def pad_wb(W, b):
        Kp = _round_up(W.shape[0], 128)
        Np = _round_up(W.shape[1], 128)
        Wp = jnp.zeros((Kp, Np), jnp.float32).at[:W.shape[0], :W.shape[1]].set(W)
        bp = jnp.zeros((1, Np), jnp.float32).at[0, :b.shape[0]].set(b)
        return Wp.astype(jnp.bfloat16), bp

    packed = []
    for i in range(nenc):
        packed.append(pad_wb(*layers[i]))

    (Wm, bm), (Wl, bl) = layers[nenc], layers[nenc + 1]
    K, lat = Wm.shape
    Kp = _round_up(K, 128)
    lat_pad = _round_up(lat, 128)
    Wh = (jnp.zeros((Kp, 2 * lat_pad), jnp.float32)
          .at[:K, :lat].set(Wm)
          .at[:K, lat_pad:lat_pad + lat].set(Wl))
    bh = (jnp.zeros((1, 2 * lat_pad), jnp.float32)
          .at[0, :lat].set(bm)
          .at[0, lat_pad:lat_pad + lat].set(bl))
    packed.append((Wh.astype(jnp.bfloat16), bh))

    for j in range(ndec):
        packed.append(pad_wb(*layers[nenc + 2 + j]))
    return packed, lat_pad


# ---------------------------------------------------------------------------
# Pure-JAX f32 reference (for in-script correctness check)
# ---------------------------------------------------------------------------
def _reference_forward(x, eps, layers, nenc, ndec):
    h = x
    for W, b in layers[:nenc]:
        h = jnp.maximum(h @ W + b, 0.0)
    W_mu, b_mu = layers[nenc]
    W_lv, b_lv = layers[nenc + 1]
    mu = h @ W_mu + b_mu
    log_var = h @ W_lv + b_lv
    sigma = jnp.exp(log_var)
    z = mu + sigma * eps
    kl = jnp.mean(-0.5 * jnp.sum(1.0 + log_var - mu ** 2 - sigma, axis=1), axis=0)
    y = mu
    for W, b in layers[nenc + 2: nenc + 1 + ndec]:
        y = jnp.maximum(y @ W + b, 0.0)
    W_last, b_last = layers[nenc + 1 + ndec]
    y = y @ W_last + b_last
    return y, z, kl


# ---------------------------------------------------------------------------
if __name__ == "__main__":
    feature_size, hidden_size, latent_size = 32, [64, 48], 16
    batch = 16

    key = jax.random.PRNGKey(0)
    k_x, k_eps, k_par = jax.random.split(key, 3)

    x = jax.random.normal(k_x, (batch, feature_size), jnp.float32)
    eps = jax.random.normal(k_eps, (batch, latent_size), jnp.float32)

    layers, nenc, ndec = init_params(k_par, feature_size, hidden_size, latent_size)
    packed, lat_pad = pack_params(layers, nenc, ndec, latent_size)

    y, z, kl = linear_vae_forward(
        x, eps, packed,
        nenc=nenc, ndec=ndec,
        feature_size=feature_size, latent_size=latent_size, lat_pad=lat_pad)
    y, z, kl = jax.block_until_ready((y, z, kl))

    # correctness check vs pure-JAX f32 reference (bf16 MXU operands -> loose tol)
    y_ref, z_ref, kl_ref = _reference_forward(x, eps, layers, nenc, ndec)
    assert y.shape == (batch, feature_size)
    assert z.shape == (batch, latent_size)
    assert bool(jnp.all(jnp.isfinite(y))) and bool(jnp.all(jnp.isfinite(z)))
    assert bool(jnp.allclose(y, y_ref, atol=5e-2, rtol=5e-2))
    assert bool(jnp.allclose(z, z_ref, atol=5e-2, rtol=5e-2))
    assert bool(jnp.allclose(kl, kl_ref, atol=1e-1, rtol=1e-1))

    print("KERNEL_OK")
</pallas_src>

<mosaic_0001>
module attributes {stable_mosaic.version = 11 : i64} {
  func.func @_vae_kernel(%arg0: i32, %arg1: memref<8x128xf32, #tpu.memory_space<vmem>>, %arg2: memref<8x128xf32, #tpu.memory_space<vmem>>, %arg3: memref<128x128xbf16, #tpu.memory_space<vmem>>, %arg4: memref<1x128xf32, #tpu.memory_space<vmem>>, %arg5: memref<128x128xbf16, #tpu.memory_space<vmem>>, %arg6: memref<1x128xf32, #tpu.memory_space<vmem>>, %arg7: memref<128x256xbf16, #tpu.memory_space<vmem>>, %arg8: memref<1x256xf32, #tpu.memory_space<vmem>>, %arg9: memref<128x128xbf16, #tpu.memory_space<vmem>>, %arg10: memref<1x128xf32, #tpu.memory_space<vmem>>, %arg11: memref<128x128xbf16, #tpu.memory_space<vmem>>, %arg12: memref<1x128xf32, #tpu.memory_space<vmem>>, %arg13: memref<128x128xbf16, #tpu.memory_space<vmem>>, %arg14: memref<1x128xf32, #tpu.memory_space<vmem>>, %arg15: memref<8x128xf32, #tpu.memory_space<vmem>>, %arg16: memref<8x128xf32, #tpu.memory_space<vmem>>, %arg17: memref<8x1xf32, #tpu.memory_space<vmem>>) attributes {dimension_semantics = [#tpu.dimension_semantics<parallel>], iteration_bounds = array<i64: 2>, scalar_prefetch = 0 : i64, scratch_operands = 0 : i64, tpu.core_type = #tpu.core_type<tc>, window_params = [{transform_indices = @transform_0, window_bounds = array<i64: 8, 128>}, {transform_indices = @transform_1, window_bounds = array<i64: 8, 128>}, {pipeline_mode = #tpu.pipeline_mode<synchronous>, transform_indices = @transform_2, window_bounds = array<i64: 128, 128>}, {pipeline_mode = #tpu.pipeline_mode<synchronous>, transform_indices = @transform_3, window_bounds = array<i64: 1, 128>}, {pipeline_mode = #tpu.pipeline_mode<synchronous>, transform_indices = @transform_4, window_bounds = array<i64: 128, 128>}, {pipeline_mode = #tpu.pipeline_mode<synchronous>, transform_indices = @transform_5, window_bounds = array<i64: 1, 128>}, {pipeline_mode = #tpu.pipeline_mode<synchronous>, transform_indices = @transform_6, window_bounds = array<i64: 128, 256>}, {pipeline_mode = #tpu.pipeline_mode<synchronous>, transform_indices = @transform_7, window_bounds = array<i64: 1, 256>}, {pipeline_mode = #tpu.pipeline_mode<synchronous>, transform_indices = @transform_8, window_bounds = array<i64: 128, 128>}, {pipeline_mode = #tpu.pipeline_mode<synchronous>, transform_indices = @transform_9, window_bounds = array<i64: 1, 128>}, {pipeline_mode = #tpu.pipeline_mode<synchronous>, transform_indices = @transform_10, window_bounds = array<i64: 128, 128>}, {pipeline_mode = #tpu.pipeline_mode<synchronous>, transform_indices = @transform_11, window_bounds = array<i64: 1, 128>}, {pipeline_mode = #tpu.pipeline_mode<synchronous>, transform_indices = @transform_12, window_bounds = array<i64: 128, 128>}, {pipeline_mode = #tpu.pipeline_mode<synchronous>, transform_indices = @transform_13, window_bounds = array<i64: 1, 128>}, {transform_indices = @transform_14, window_bounds = array<i64: 8, 128>}, {transform_indices = @transform_15, window_bounds = array<i64: 8, 128>}, {transform_indices = @transform_16, window_bounds = array<i64: 8, 1>}]} {
    %c0 = arith.constant 0 : index
    %c0_0 = arith.constant 0 : index
    %0 = vector.load %arg1[%c0, %c0_0] : memref<8x128xf32, #tpu.memory_space<vmem>>, vector<8x128xf32>
    %c0_1 = arith.constant 0 : index
    %c0_2 = arith.constant 0 : index
    %1 = vector.load %arg3[%c0_1, %c0_2] : memref<128x128xbf16, #tpu.memory_space<vmem>>, vector<128x128xbf16>
    %c0_3 = arith.constant 0 : index
    %c0_4 = arith.constant 0 : index
    %2 = vector.load %arg4[%c0_3, %c0_4] : memref<1x128xf32, #tpu.memory_space<vmem>>, vector<1x128xf32>
    %3 = arith.truncf %0 : vector<8x128xf32> to vector<8x128xbf16>
    %cst = arith.constant dense<0.000000e+00> : vector<8x128xf32>
    %4 = tpu.matmul %3, %1, %cst {dimension_numbers = #tpu.dot_dimension_numbers<[1], [0], [0], [1], [0, 0, 1, 1], [], []>} : vector<8x128xbf16>, vector<128x128xbf16>, vector<8x128xf32> -> vector<8x128xf32>
    %5 = vector.broadcast %2 : vector<1x128xf32> to vector<8x128xf32>
    %6 = arith.addf %4, %5 : vector<8x128xf32>
    %cst_5 = arith.constant 0.000000e+00 : f32
    %7 = vector.broadcast %cst_5 : f32 to vector<8x128xf32>
    %8 = arith.maximumf %6, %7 : vector<8x128xf32>
    %c0_6 = arith.constant 0 : index
    %c0_7 = arith.constant 0 : index
    %9 = vector.load %arg5[%c0_6, %c0_7] : memref<128x128xbf16, #tpu.memory_space<vmem>>, vector<128x128xbf16>
    %c0_8 = arith.constant 0 : index
    %c0_9 = arith.constant 0 : index
    %10 = vector.load %arg6[%c0_8, %c0_9] : memref<1x128xf32, #tpu.memory_space<vmem>>, vector<1x128xf32>
    %11 = arith.truncf %8 : vector<8x128xf32> to vector<8x128xbf16>
    %cst_10 = arith.constant dense<0.000000e+00> : vector<8x128xf32>
    %12 = tpu.matmul %11, %9, %cst_10 {dimension_numbers = #tpu.dot_dimension_numbers<[1], [0], [0], [1], [0, 0, 1, 1], [], []>} : vector<8x128xbf16>, vector<128x128xbf16>, vector<8x128xf32> -> vector<8x128xf32>
    %13 = vector.broadcast %10 : vector<1x128xf32> to vector<8x128xf32>
    %14 = arith.addf %12, %13 : vector<8x128xf32>
    %cst_11 = arith.constant 0.000000e+00 : f32
    %15 = vector.broadcast %cst_11 : f32 to vector<8x128xf32>
    %16 = arith.maximumf %14, %15 : vector<8x128xf32>
    %c0_12 = arith.constant 0 : index
    %c0_13 = arith.constant 0 : index
    %17 = vector.load %arg7[%c0_12, %c0_13] : memref<128x256xbf16, #tpu.memory_space<vmem>>, vector<128x256xbf16>
    %c0_14 = arith.constant 0 : index
    %c0_15 = arith.constant 0 : index
    %18 = vector.load %arg8[%c0_14, %c0_15] : memref<1x256xf32, #tpu.memory_space<vmem>>, vector<1x256xf32>
    %19 = arith.truncf %16 : vector<8x128xf32> to vector<8x128xbf16>
    %cst_16 = arith.constant dense<0.000000e+00> : vector<8x256xf32>
    %20 = tpu.matmul %19, %17, %cst_16 {dimension_numbers = #tpu.dot_dimension_numbers<[1], [0], [0], [1], [0, 0, 1, 1], [], []>} : vector<8x128xbf16>, vector<128x256xbf16>, vector<8x256xf32> -> vector<8x256xf32>
    %21 = vector.broadcast %18 : vector<1x256xf32> to vector<8x256xf32>
    %22 = arith.addf %20, %21 : vector<8x256xf32>
    %23 = vector.extract_strided_slice %22 {offsets = [0, 0], sizes = [8, 128], strides = [1, 1]} : vector<8x256xf32> to vector<8x128xf32>
    %24 = vector.extract_strided_slice %22 {offsets = [0, 128], sizes = [8, 128], strides = [1, 1]} : vector<8x256xf32> to vector<8x128xf32>
    %25 = math.exp %24 : vector<8x128xf32>
    %c0_17 = arith.constant 0 : index
    %c0_18 = arith.constant 0 : index
    %26 = vector.load %arg2[%c0_17, %c0_18] : memref<8x128xf32, #tpu.memory_space<vmem>>, vector<8x128xf32>
    %27 = arith.mulf %25, %26 : vector<8x128xf32>
    %28 = arith.addf %23, %27 : vector<8x128xf32>
    %c0_19 = arith.constant 0 : index
    %c0_20 = arith.constant 0 : index
    %29 = vector.load %arg16[%c0_19, %c0_20] : memref<8x128xf32, #tpu.memory_space<vmem>>, vector<8x128xf32>
    tpu.vector_store %arg16[%c0_19, %c0_20], %28 {strides = array<i32>} : memref<8x128xf32, #tpu.memory_space<vmem>>, vector<8x128xf32>,
    %cst_21 = arith.constant 1.000000e+00 : f32
    %30 = vector.broadcast %cst_21 : f32 to vector<8x128xf32>
    %31 = arith.addf %30, %24 : vector<8x128xf32>
    %32 = arith.mulf %23, %23 : vector<8x128xf32>
    %33 = arith.subf %31, %32 : vector<8x128xf32>
    %34 = arith.subf %33, %25 : vector<8x128xf32>
    %cst_22 = arith.constant dense<0.000000e+00> : vector<8xf32>
    %35 = vector.multi_reduction <add>, %34, %cst_22 [1] : vector<8x128xf32> to vector<8xf32>
    %36 = vector.shape_cast %35 : vector<8xf32> to vector<8x1xf32>
    %cst_23 = arith.constant -5.000000e-01 : f32
    %37 = vector.broadcast %cst_23 : f32 to vector<8x1xf32>
    %38 = arith.mulf %37, %36 : vector<8x1xf32>
    %c0_24 = arith.constant 0 : index
    %c0_25 = arith.constant 0 : index
    %39 = vector.load %arg17[%c0_24, %c0_25] : memref<8x1xf32, #tpu.memory_space<vmem>>, vector<8x1xf32>
    tpu.vector_store %arg17[%c0_24, %c0_25], %38 {strides = array<i32>} : memref<8x1xf32, #tpu.memory_space<vmem>>, vector<8x1xf32>,
    %c0_26 = arith.constant 0 : index
    %c0_27 = arith.constant 0 : index
    %40 = vector.load %arg9[%c0_26, %c0_27] : memref<128x128xbf16, #tpu.memory_space<vmem>>, vector<128x128xbf16>
    %c0_28 = arith.constant 0 : index
    %c0_29 = arith.constant 0 : index
    %41 = vector.load %arg10[%c0_28, %c0_29] : memref<1x128xf32, #tpu.memory_space<vmem>>, vector<1x128xf32>
    %42 = arith.truncf %23 : vector<8x128xf32> to vector<8x128xbf16>
    %cst_30 = arith.constant dense<0.000000e+00> : vector<8x128xf32>
    %43 = tpu.matmul %42, %40, %cst_30 {dimension_numbers = #tpu.dot_dimension_numbers<[1], [0], [0], [1], [0, 0, 1, 1], [], []>} : vector<8x128xbf16>, vector<128x128xbf16>, vector<8x128xf32> -> vector<8x128xf32>
    %44 = vector.broadcast %41 : vector<1x128xf32> to vector<8x128xf32>
    %45 = arith.addf %43, %44 : vector<8x128xf32>
    %cst_31 = arith.constant 0.000000e+00 : f32
    %46 = vector.broadcast %cst_31 : f32 to vector<8x128xf32>
    %47 = arith.maximumf %45, %46 : vector<8x128xf32>
    %c0_32 = arith.constant 0 : index
    %c0_33 = arith.constant 0 : index
    %48 = vector.load %arg11[%c0_32, %c0_33] : memref<128x128xbf16, #tpu.memory_space<vmem>>, vector<128x128xbf16>
    %c0_34 = arith.constant 0 : index
    %c0_35 = arith.constant 0 : index
    %49 = vector.load %arg12[%c0_34, %c0_35] : memref<1x128xf32, #tpu.memory_space<vmem>>, vector<1x128xf32>
    %50 = arith.truncf %47 : vector<8x128xf32> to vector<8x128xbf16>
    %cst_36 = arith.constant dense<0.000000e+00> : vector<8x128xf32>
    %51 = tpu.matmul %50, %48, %cst_36 {dimension_numbers = #tpu.dot_dimension_numbers<[1], [0], [0], [1], [0, 0, 1, 1], [], []>} : vector<8x128xbf16>, vector<128x128xbf16>, vector<8x128xf32> -> vector<8x128xf32>
    %52 = vector.broadcast %49 : vector<1x128xf32> to vector<8x128xf32>
    %53 = arith.addf %51, %52 : vector<8x128xf32>
    %cst_37 = arith.constant 0.000000e+00 : f32
    %54 = vector.broadcast %cst_37 : f32 to vector<8x128xf32>
    %55 = arith.maximumf %53, %54 : vector<8x128xf32>
    %c0_38 = arith.constant 0 : index
    %c0_39 = arith.constant 0 : index
    %56 = vector.load %arg13[%c0_38, %c0_39] : memref<128x128xbf16, #tpu.memory_space<vmem>>, vector<128x128xbf16>
    %c0_40 = arith.constant 0 : index
    %c0_41 = arith.constant 0 : index
    %57 = vector.load %arg14[%c0_40, %c0_41] : memref<1x128xf32, #tpu.memory_space<vmem>>, vector<1x128xf32>
    %58 = arith.truncf %55 : vector<8x128xf32> to vector<8x128xbf16>
    %cst_42 = arith.constant dense<0.000000e+00> : vector<8x128xf32>
    %59 = tpu.matmul %58, %56, %cst_42 {dimension_numbers = #tpu.dot_dimension_numbers<[1], [0], [0], [1], [0, 0, 1, 1], [], []>} : vector<8x128xbf16>, vector<128x128xbf16>, vector<8x128xf32> -> vector<8x128xf32>
    %60 = vector.broadcast %57 : vector<1x128xf32> to vector<8x128xf32>
    %61 = arith.addf %59, %60 : vector<8x128xf32>
    %c0_43 = arith.constant 0 : index
    %c0_44 = arith.constant 0 : index
    %62 = vector.load %arg15[%c0_43, %c0_44] : memref<8x128xf32, #tpu.memory_space<vmem>>, vector<8x128xf32>
    tpu.vector_store %arg15[%c0_43, %c0_44], %61 {strides = array<i32>} : memref<8x128xf32, #tpu.memory_space<vmem>>, vector<8x128xf32>,
    return
  }
  func.func @transform_0(%arg0: i32) -> (i32, i32) {
    %c0_i32 = arith.constant 0 : i32
    %c0_i32_0 = arith.constant 0 : i32
    return %arg0, %c0_i32 : i32, i32
  }
  func.func @transform_1(%arg0: i32) -> (i32, i32) {
    %c0_i32 = arith.constant 0 : i32
    %c0_i32_0 = arith.constant 0 : i32
    return %arg0, %c0_i32 : i32, i32
  }
  func.func @transform_2(%arg0: i32) -> (i32, i32) {
    %c0_i32 = arith.constant 0 : i32
    %c0_i32_0 = arith.constant 0 : i32
    %c0_i32_1 = arith.constant 0 : i32
    return %c0_i32, %c0_i32_0 : i32, i32
  }
  func.func @transform_3(%arg0: i32) -> (i32, i32) {
    %c0_i32 = arith.constant 0 : i32
    %c0_i32_0 = arith.constant 0 : i32
    %c0_i32_1 = arith.constant 0 : i32
    return %c0_i32, %c0_i32_0 : i32, i32
  }
  func.func @transform_4(%arg0: i32) -> (i32, i32) {
    %c0_i32 = arith.constant 0 : i32
    %c0_i32_0 = arith.constant 0 : i32
    %c0_i32_1 = arith.constant 0 : i32
    return %c0_i32, %c0_i32_0 : i32, i32
  }
  func.func @transform_5(%arg0: i32) -> (i32, i32) {
    %c0_i32 = arith.constant 0 : i32
    %c0_i32_0 = arith.constant 0 : i32
    %c0_i32_1 = arith.constant 0 : i32
    return %c0_i32, %c0_i32_0 : i32, i32
  }
  func.func @transform_6(%arg0: i32) -> (i32, i32) {
    %c0_i32 = arith.constant 0 : i32
    %c0_i32_0 = arith.constant 0 : i32
    %c0_i32_1 = arith.constant 0 : i32
    return %c0_i32, %c0_i32_0 : i32, i32
  }
  func.func @transform_7(%arg0: i32) -> (i32, i32) {
    %c0_i32 = arith.constant 0 : i32
    %c0_i32_0 = arith.constant 0 : i32
    %c0_i32_1 = arith.constant 0 : i32
    return %c0_i32, %c0_i32_0 : i32, i32
  }
  func.func @transform_8(%arg0: i32) -> (i32, i32) {
    %c0_i32 = arith.constant 0 : i32
    %c0_i32_0 = arith.constant 0 : i32
    %c0_i32_1 = arith.constant 0 : i32
    return %c0_i32, %c0_i32_0 : i32, i32
  }
  func.func @transform_9(%arg0: i32) -> (i32, i32) {
    %c0_i32 = arith.constant 0 : i32
    %c0_i32_0 = arith.constant 0 : i32
    %c0_i32_1 = arith.constant 0 : i32
    return %c0_i32, %c0_i32_0 : i32, i32
  }
  func.func @transform_10(%arg0: i32) -> (i32, i32) {
    %c0_i32 = arith.constant 0 : i32
    %c0_i32_0 = arith.constant 0 : i32
    %c0_i32_1 = arith.constant 0 : i32
    return %c0_i32, %c0_i32_0 : i32, i32
  }
  func.func @transform_11(%arg0: i32) -> (i32, i32) {
    %c0_i32 = arith.constant 0 : i32
    %c0_i32_0 = arith.constant 0 : i32
    %c0_i32_1 = arith.constant 0 : i32
    return %c0_i32, %c0_i32_0 : i32, i32
  }
  func.func @transform_12(%arg0: i32) -> (i32, i32) {
    %c0_i32 = arith.constant 0 : i32
    %c0_i32_0 = arith.constant 0 : i32
    %c0_i32_1 = arith.constant 0 : i32
    return %c0_i32, %c0_i32_0 : i32, i32
  }
  func.func @transform_13(%arg0: i32) -> (i32, i32) {
    %c0_i32 = arith.constant 0 : i32
    %c0_i32_0 = arith.constant 0 : i32
    %c0_i32_1 = arith.constant 0 : i32
    return %c0_i32, %c0_i32_0 : i32, i32
  }
  func.func @transform_14(%arg0: i32) -> (i32, i32) {
    %c0_i32 = arith.constant 0 : i32
    %c0_i32_0 = arith.constant 0 : i32
    return %arg0, %c0_i32 : i32, i32
  }
  func.func @transform_15(%arg0: i32) -> (i32, i32) {
    %c0_i32 = arith.constant 0 : i32
    %c0_i32_0 = arith.constant 0 : i32
    return %arg0, %c0_i32 : i32, i32
  }
  func.func @transform_16(%arg0: i32) -> (i32, i32) {
    %c0_i32 = arith.constant 0 : i32
    %c0_i32_0 = arith.constant 0 : i32
    return %arg0, %c0_i32 : i32, i32
  }
}

module attributes {stable_mosaic.version = 11 : i64} {
  func.func @_vae_kernel(%arg0: i32, %arg1: memref<8x128xf32, #tpu.memory_space<vmem>>, %arg2: memref<8x128xf32, #tpu.memory_space<vmem>>, %arg3: memref<128x128xbf16, #tpu.memory_space<vmem>>, %arg4: memref<1x128xf32, #tpu.memory_space<vmem>>, %arg5: memref<128x128xbf16, #tpu.memory_space<vmem>>, %arg6: memref<1x128xf32, #tpu.memory_space<vmem>>, %arg7: memref<128x256xbf16, #tpu.memory_space<vmem>>, %arg8: memref<1x256xf32, #tpu.memory_space<vmem>>, %arg9: memref<128x128xbf16, #tpu.memory_space<vmem>>, %arg10: memref<1x128xf32, #tpu.memory_space<vmem>>, %arg11: memref<128x128xbf16, #tpu.memory_space<vmem>>, %arg12: memref<1x128xf32, #tpu.memory_space<vmem>>, %arg13: memref<128x128xbf16, #tpu.memory_space<vmem>>, %arg14: memref<1x128xf32, #tpu.memory_space<vmem>>, %arg15: memref<8x128xf32, #tpu.memory_space<vmem>>, %arg16: memref<8x128xf32, #tpu.memory_space<vmem>>, %arg17: memref<8x1xf32, #tpu.memory_space<vmem>>) attributes {dimension_semantics = [#tpu.dimension_semantics<parallel>], iteration_bounds = array<i64: 2>, scalar_prefetch = 0 : i64, scratch_operands = 0 : i64, tpu.core_type = #tpu.core_type<tc>, window_params = [{transform_indices = @transform_0, window_bounds = array<i64: 8, 128>}, {transform_indices = @transform_1, window_bounds = array<i64: 8, 128>}, {pipeline_mode = #tpu.pipeline_mode<synchronous>, transform_indices = @transform_2, window_bounds = array<i64: 128, 128>}, {pipeline_mode = #tpu.pipeline_mode<synchronous>, transform_indices = @transform_3, window_bounds = array<i64: 1, 128>}, {pipeline_mode = #tpu.pipeline_mode<synchronous>, transform_indices = @transform_4, window_bounds = array<i64: 128, 128>}, {pipeline_mode = #tpu.pipeline_mode<synchronous>, transform_indices = @transform_5, window_bounds = array<i64: 1, 128>}, {pipeline_mode = #tpu.pipeline_mode<synchronous>, transform_indices = @transform_6, window_bounds = array<i64: 128, 256>}, {pipeline_mode = #tpu.pipeline_mode<synchronous>, transform_indices = @transform_7, window_bounds = array<i64: 1, 256>}, {pipeline_mode = #tpu.pipeline_mode<synchronous>, transform_indices = @transform_8, window_bounds = array<i64: 128, 128>}, {pipeline_mode = #tpu.pipeline_mode<synchronous>, transform_indices = @transform_9, window_bounds = array<i64: 1, 128>}, {pipeline_mode = #tpu.pipeline_mode<synchronous>, transform_indices = @transform_10, window_bounds = array<i64: 128, 128>}, {pipeline_mode = #tpu.pipeline_mode<synchronous>, transform_indices = @transform_11, window_bounds = array<i64: 1, 128>}, {pipeline_mode = #tpu.pipeline_mode<synchronous>, transform_indices = @transform_12, window_bounds = array<i64: 128, 128>}, {pipeline_mode = #tpu.pipeline_mode<synchronous>, transform_indices = @transform_13, window_bounds = array<i64: 1, 128>}, {transform_indices = @transform_14, window_bounds = array<i64: 8, 128>}, {transform_indices = @transform_15, window_bounds = array<i64: 8, 128>}, {transform_indices = @transform_16, window_bounds = array<i64: 8, 1>}]} {
    %c0 = arith.constant 0 : index
    %c0_0 = arith.constant 0 : index
    %0 = vector.load %arg1[%c0, %c0_0] : memref<8x128xf32, #tpu.memory_space<vmem>>, vector<8x128xf32>
    %c0_1 = arith.constant 0 : index
    %c0_2 = arith.constant 0 : index
    %1 = vector.load %arg3[%c0_1, %c0_2] : memref<128x128xbf16, #tpu.memory_space<vmem>>, vector<128x128xbf16>
    %c0_3 = arith.constant 0 : index
    %c0_4 = arith.constant 0 : index
    %2 = vector.load %arg4[%c0_3, %c0_4] : memref<1x128xf32, #tpu.memory_space<vmem>>, vector<1x128xf32>
    %3 = arith.truncf %0 : vector<8x128xf32> to vector<8x128xbf16>
    %cst = arith.constant dense<0.000000e+00> : vector<8x128xf32>
    %4 = tpu.matmul %3, %1, %cst {dimension_numbers = #tpu.dot_dimension_numbers<[1], [0], [0], [1], [0, 0, 1, 1], [], []>} : vector<8x128xbf16>, vector<128x128xbf16>, vector<8x128xf32> -> vector<8x128xf32>
    %5 = vector.broadcast %2 : vector<1x128xf32> to vector<8x128xf32>
    %6 = arith.addf %4, %5 : vector<8x128xf32>
    %cst_5 = arith.constant 0.000000e+00 : f32
    %7 = vector.broadcast %cst_5 : f32 to vector<8x128xf32>
    %8 = arith.maximumf %6, %7 : vector<8x128xf32>
    %c0_6 = arith.constant 0 : index
    %c0_7 = arith.constant 0 : index
    %9 = vector.load %arg5[%c0_6, %c0_7] : memref<128x128xbf16, #tpu.memory_space<vmem>>, vector<128x128xbf16>
    %c0_8 = arith.constant 0 : index
    %c0_9 = arith.constant 0 : index
    %10 = vector.load %arg6[%c0_8, %c0_9] : memref<1x128xf32, #tpu.memory_space<vmem>>, vector<1x128xf32>
    %11 = arith.truncf %8 : vector<8x128xf32> to vector<8x128xbf16>
    %cst_10 = arith.constant dense<0.000000e+00> : vector<8x128xf32>
    %12 = tpu.matmul %11, %9, %cst_10 {dimension_numbers = #tpu.dot_dimension_numbers<[1], [0], [0], [1], [0, 0, 1, 1], [], []>} : vector<8x128xbf16>, vector<128x128xbf16>, vector<8x128xf32> -> vector<8x128xf32>
    %13 = vector.broadcast %10 : vector<1x128xf32> to vector<8x128xf32>
    %14 = arith.addf %12, %13 : vector<8x128xf32>
    %cst_11 = arith.constant 0.000000e+00 : f32
    %15 = vector.broadcast %cst_11 : f32 to vector<8x128xf32>
    %16 = arith.maximumf %14, %15 : vector<8x128xf32>
    %c0_12 = arith.constant 0 : index
    %c0_13 = arith.constant 0 : index
    %17 = vector.load %arg7[%c0_12, %c0_13] : memref<128x256xbf16, #tpu.memory_space<vmem>>, vector<128x256xbf16>
    %c0_14 = arith.constant 0 : index
    %c0_15 = arith.constant 0 : index
    %18 = vector.load %arg8[%c0_14, %c0_15] : memref<1x256xf32, #tpu.memory_space<vmem>>, vector<1x256xf32>
    %19 = arith.truncf %16 : vector<8x128xf32> to vector<8x128xbf16>
    %cst_16 = arith.constant dense<0.000000e+00> : vector<8x256xf32>
    %20 = tpu.matmul %19, %17, %cst_16 {dimension_numbers = #tpu.dot_dimension_numbers<[1], [0], [0], [1], [0, 0, 1, 1], [], []>} : vector<8x128xbf16>, vector<128x256xbf16>, vector<8x256xf32> -> vector<8x256xf32>
    %21 = vector.broadcast %18 : vector<1x256xf32> to vector<8x256xf32>
    %22 = arith.addf %20, %21 : vector<8x256xf32>
    %23 = vector.extract_strided_slice %22 {offsets = [0, 0], sizes = [8, 128], strides = [1, 1]} : vector<8x256xf32> to vector<8x128xf32>
    %24 = vector.extract_strided_slice %22 {offsets = [0, 128], sizes = [8, 128], strides = [1, 1]} : vector<8x256xf32> to vector<8x128xf32>
    %25 = math.exp %24 : vector<8x128xf32>
    %c0_17 = arith.constant 0 : index
    %c0_18 = arith.constant 0 : index
    %26 = vector.load %arg2[%c0_17, %c0_18] : memref<8x128xf32, #tpu.memory_space<vmem>>, vector<8x128xf32>
    %27 = arith.mulf %25, %26 : vector<8x128xf32>
    %28 = arith.addf %23, %27 : vector<8x128xf32>
    %c0_19 = arith.constant 0 : index
    %c0_20 = arith.constant 0 : index
    %29 = vector.load %arg16[%c0_19, %c0_20] : memref<8x128xf32, #tpu.memory_space<vmem>>, vector<8x128xf32>
    tpu.vector_store %arg16[%c0_19, %c0_20], %28 {strides = array<i32>} : memref<8x128xf32, #tpu.memory_space<vmem>>, vector<8x128xf32>,
    %cst_21 = arith.constant 1.000000e+00 : f32
    %30 = vector.broadcast %cst_21 : f32 to vector<8x128xf32>
    %31 = arith.addf %30, %24 : vector<8x128xf32>
    %32 = arith.mulf %23, %23 : vector<8x128xf32>
    %33 = arith.subf %31, %32 : vector<8x128xf32>
    %34 = arith.subf %33, %25 : vector<8x128xf32>
    %cst_22 = arith.constant dense<0.000000e+00> : vector<8xf32>
    %35 = vector.multi_reduction <add>, %34, %cst_22 [1] : vector<8x128xf32> to vector<8xf32>
    %36 = vector.shape_cast %35 : vector<8xf32> to vector<8x1xf32>
    %cst_23 = arith.constant -5.000000e-01 : f32
    %37 = vector.broadcast %cst_23 : f32 to vector<8x1xf32>
    %38 = arith.mulf %37, %36 : vector<8x1xf32>
    %c0_24 = arith.constant 0 : index
    %c0_25 = arith.constant 0 : index
    %39 = vector.load %arg17[%c0_24, %c0_25] : memref<8x1xf32, #tpu.memory_space<vmem>>, vector<8x1xf32>
    tpu.vector_store %arg17[%c0_24, %c0_25], %38 {strides = array<i32>} : memref<8x1xf32, #tpu.memory_space<vmem>>, vector<8x1xf32>,
    %c0_26 = arith.constant 0 : index
    %c0_27 = arith.constant 0 : index
    %40 = vector.load %arg9[%c0_26, %c0_27] : memref<128x128xbf16, #tpu.memory_space<vmem>>, vector<128x128xbf16>
    %c0_28 = arith.constant 0 : index
    %c0_29 = arith.constant 0 : index
    %41 = vector.load %arg10[%c0_28, %c0_29] : memref<1x128xf32, #tpu.memory_space<vmem>>, vector<1x128xf32>
    %42 = arith.truncf %23 : vector<8x128xf32> to vector<8x128xbf16>
    %cst_30 = arith.constant dense<0.000000e+00> : vector<8x128xf32>
    %43 = tpu.matmul %42, %40, %cst_30 {dimension_numbers = #tpu.dot_dimension_numbers<[1], [0], [0], [1], [0, 0, 1, 1], [], []>} : vector<8x128xbf16>, vector<128x128xbf16>, vector<8x128xf32> -> vector<8x128xf32>
    %44 = vector.broadcast %41 : vector<1x128xf32> to vector<8x128xf32>
    %45 = arith.addf %43, %44 : vector<8x128xf32>
    %cst_31 = arith.constant 0.000000e+00 : f32
    %46 = vector.broadcast %cst_31 : f32 to vector<8x128xf32>
    %47 = arith.maximumf %45, %46 : vector<8x128xf32>
    %c0_32 = arith.constant 0 : index
    %c0_33 = arith.constant 0 : index
    %48 = vector.load %arg11[%c0_32, %c0_33] : memref<128x128xbf16, #tpu.memory_space<vmem>>, vector<128x128xbf16>
    %c0_34 = arith.constant 0 : index
    %c0_35 = arith.constant 0 : index
    %49 = vector.load %arg12[%c0_34, %c0_35] : memref<1x128xf32, #tpu.memory_space<vmem>>, vector<1x128xf32>
    %50 = arith.truncf %47 : vector<8x128xf32> to vector<8x128xbf16>
    %cst_36 = arith.constant dense<0.000000e+00> : vector<8x128xf32>
    %51 = tpu.matmul %50, %48, %cst_36 {dimension_numbers = #tpu.dot_dimension_numbers<[1], [0], [0], [1], [0, 0, 1, 1], [], []>} : vector<8x128xbf16>, vector<128x128xbf16>, vector<8x128xf32> -> vector<8x128xf32>
    %52 = vector.broadcast %49 : vector<1x128xf32> to vector<8x128xf32>
    %53 = arith.addf %51, %52 : vector<8x128xf32>
    %cst_37 = arith.constant 0.000000e+00 : f32
    %54 = vector.broadcast %cst_37 : f32 to vector<8x128xf32>
    %55 = arith.maximumf %53, %54 : vector<8x128xf32>
    %c0_38 = arith.constant 0 : index
    %c0_39 = arith.constant 0 : index
    %56 = vector.load %arg13[%c0_38, %c0_39] : memref<128x128xbf16, #tpu.memory_space<vmem>>, vector<128x128xbf16>
    %c0_40 = arith.constant 0 : index
    %c0_41 = arith.constant 0 : index
    %57 = vector.load %arg14[%c0_40, %c0_41] : memref<1x128xf32, #tpu.memory_space<vmem>>, vector<1x128xf32>
    %58 = arith.truncf %55 : vector<8x128xf32> to vector<8x128xbf16>
    %cst_42 = arith.constant dense<0.000000e+00> : vector<8x128xf32>
    %59 = tpu.matmul %58, %56, %cst_42 {dimension_numbers = #tpu.dot_dimension_numbers<[1], [0], [0], [1], [0, 0, 1, 1], [], []>} : vector<8x128xbf16>, vector<128x128xbf16>, vector<8x128xf32> -> vector<8x128xf32>
    %60 = vector.broadcast %57 : vector<1x128xf32> to vector<8x128xf32>
    %61 = arith.addf %59, %60 : vector<8x128xf32>
    %c0_43 = arith.constant 0 : index
    %c0_44 = arith.constant 0 : index
    %62 = vector.load %arg15[%c0_43, %c0_44] : memref<8x128xf32, #tpu.memory_space<vmem>>, vector<8x128xf32>
    tpu.vector_store %arg15[%c0_43, %c0_44], %61 {strides = array<i32>} : memref<8x128xf32, #tpu.memory_space<vmem>>, vector<8x128xf32>,
    return
  }
  func.func @transform_0(%arg0: i32) -> (i32, i32) {
    %c0_i32 = arith.constant 0 : i32
    %c0_i32_0 = arith.constant 0 : i32
    return %arg0, %c0_i32 : i32, i32
  }
  func.func @transform_1(%arg0: i32) -> (i32, i32) {
    %c0_i32 = arith.constant 0 : i32
    %c0_i32_0 = arith.constant 0 : i32
    return %arg0, %c0_i32 : i32, i32
  }
  func.func @transform_2(%arg0: i32) -> (i32, i32) {
    %c0_i32 = arith.constant 0 : i32
    %c0_i32_0 = arith.constant 0 : i32
    %c0_i32_1 = arith.constant 0 : i32
    return %c0_i32, %c0_i32_0 : i32, i32
  }
  func.func @transform_3(%arg0: i32) -> (i32, i32) {
    %c0_i32 = arith.constant 0 : i32
    %c0_i32_0 = arith.constant 0 : i32
    %c0_i32_1 = arith.constant 0 : i32
    return %c0_i32, %c0_i32_0 : i32, i32
  }
  func.func @transform_4(%arg0: i32) -> (i32, i32) {
    %c0_i32 = arith.constant 0 : i32
    %c0_i32_0 = arith.constant 0 : i32
    %c0_i32_1 = arith.constant 0 : i32
    return %c0_i32, %c0_i32_0 : i32, i32
  }
  func.func @transform_5(%arg0: i32) -> (i32, i32) {
    %c0_i32 = arith.constant 0 : i32
    %c0_i32_0 = arith.constant 0 : i32
    %c0_i32_1 = arith.constant 0 : i32
    return %c0_i32, %c0_i32_0 : i32, i32
  }
  func.func @transform_6(%arg0: i32) -> (i32, i32) {
    %c0_i32 = arith.constant 0 : i32
    %c0_i32_0 = arith.constant 0 : i32
    %c0_i32_1 = arith.constant 0 : i32
    return %c0_i32, %c0_i32_0 : i32, i32
  }
  func.func @transform_7(%arg0: i32) -> (i32, i32) {
    %c0_i32 = arith.constant 0 : i32
    %c0_i32_0 = arith.constant 0 : i32
    %c0_i32_1 = arith.constant 0 : i32
    return %c0_i32, %c0_i32_0 : i32, i32
  }
  func.func @transform_8(%arg0: i32) -> (i32, i32) {
    %c0_i32 = arith.constant 0 : i32
    %c0_i32_0 = arith.constant 0 : i32
    %c0_i32_1 = arith.constant 0 : i32
    return %c0_i32, %c0_i32_0 : i32, i32
  }
  func.func @transform_9(%arg0: i32) -> (i32, i32) {
    %c0_i32 = arith.constant 0 : i32
    %c0_i32_0 = arith.constant 0 : i32
    %c0_i32_1 = arith.constant 0 : i32
    return %c0_i32, %c0_i32_0 : i32, i32
  }
  func.func @transform_10(%arg0: i32) -> (i32, i32) {
    %c0_i32 = arith.constant 0 : i32
    %c0_i32_0 = arith.constant 0 : i32
    %c0_i32_1 = arith.constant 0 : i32
    return %c0_i32, %c0_i32_0 : i32, i32
  }
  func.func @transform_11(%arg0: i32) -> (i32, i32) {
    %c0_i32 = arith.constant 0 : i32
    %c0_i32_0 = arith.constant 0 : i32
    %c0_i32_1 = arith.constant 0 : i32
    return %c0_i32, %c0_i32_0 : i32, i32
  }
  func.func @transform_12(%arg0: i32) -> (i32, i32) {
    %c0_i32 = arith.constant 0 : i32
    %c0_i32_0 = arith.constant 0 : i32
    %c0_i32_1 = arith.constant 0 : i32
    return %c0_i32, %c0_i32_0 : i32, i32
  }
  func.func @transform_13(%arg0: i32) -> (i32, i32) {
    %c0_i32 = arith.constant 0 : i32
    %c0_i32_0 = arith.constant 0 : i32
    %c0_i32_1 = arith.constant 0 : i32
    return %c0_i32, %c0_i32_0 : i32, i32
  }
  func.func @transform_14(%arg0: i32) -> (i32, i32) {
    %c0_i32 = arith.constant 0 : i32
    %c0_i32_0 = arith.constant 0 : i32
    return %arg0, %c0_i32 : i32, i32
  }
  func.func @transform_15(%arg0: i32) -> (i32, i32) {
    %c0_i32 = arith.constant 0 : i32
    %c0_i32_0 = arith.constant 0 : i32
    return %arg0, %c0_i32 : i32, i32
  }
  func.func @transform_16(%arg0: i32) -> (i32, i32) {
    %c0_i32 = arith.constant 0 : i32
    %c0_i32_0 = arith.constant 0 : i32
    return %arg0, %c0_i32 : i32, i32
  }
}

</mosaic_0001>

<llo_original>
// kernel: tpu_custom_call.1
$region0: #{tpu_custom_call.1}
  #allocation0 [shape = 'u32[]', space=smem, size = 0x4, offset = 0x4, fixed_abs, tag = 'smem constant byte address 0x4 - core index']
  #allocation1 [shape = 'u32[144,128]{1,0:T(1,128)}', space=vmem, size = 0x12000, scoped, tag = 'internal scratch']
  %s0 = inlined_call_operand.hbm [shape: f32[16,128], index: 0, kind: input, shape index: {}]
  %s1 = inlined_call_operand.hbm [shape: f32[16,128], index: 1, kind: input, shape index: {}]
  %s2 = inlined_call_operand.hbm [shape: bf16[128,128], index: 2, kind: input, shape index: {}]
  %s3 = inlined_call_operand.vmem [shape: f32[1,128], index: 3, kind: input, shape index: {}]
  %s4 = inlined_call_operand.hbm [shape: bf16[128,128], index: 4, kind: input, shape index: {}]
  %s5 = inlined_call_operand.vmem [shape: f32[1,128], index: 5, kind: input, shape index: {}]
  %s6 = inlined_call_operand.hbm [shape: bf16[128,256], index: 6, kind: input, shape index: {}]
  %s7 = inlined_call_operand.vmem [shape: f32[1,256], index: 7, kind: input, shape index: {}]
  %s8 = inlined_call_operand.hbm [shape: bf16[128,128], index: 8, kind: input, shape index: {}]
  %s9 = inlined_call_operand.vmem [shape: f32[1,128], index: 9, kind: input, shape index: {}]
  %s10 = inlined_call_operand.hbm [shape: bf16[128,128], index: 10, kind: input, shape index: {}]
  %s11 = inlined_call_operand.vmem [shape: f32[1,128], index: 11, kind: input, shape index: {}]
  %s12 = inlined_call_operand.hbm [shape: bf16[128,128], index: 12, kind: input, shape index: {}]
  %s13 = inlined_call_operand.vmem [shape: f32[1,128], index: 13, kind: input, shape index: {}]
  %s14 = inlined_call_operand.hbm [shape: f32[16,128], index: 14, kind: output, shape index: {0}]
  %s15 = inlined_call_operand.hbm [shape: f32[16,128], index: 15, kind: output, shape index: {1}]
  %s16 = inlined_call_operand.vmem [shape: f32[16,1], index: 16, kind: output, shape index: {2}]
  %17 = xla_tuple %s14, %s15, %s16
  %s18 = sld [smem:[#allocation0]]
  $region137: #{tpu_custom_call.1} parent=0
    _
  %s20 = ssub.s32 1, %s18
  %s21 = scalar_select 0, %s20, %s18
  $region1: #{tpu_custom_call.1} parent=0
    #allocation2 [shape = 'u8[8192]{0}', space=vmem, size = 0x2000, scoped, tag = 'input window, operand 0']
    #allocation3 [shape = 's32[2]{0}', space=sflag, size = 0x8, scoped, tag = 'scoped memory for tpu_custom_call.1']
    #allocation4 [shape = 's32[2]{0}', space=sflag, size = 0x8, scoped, tag = 'scoped memory for tpu_custom_call.1']
    #allocation5 [shape = 'u8[8192]{0}', space=vmem, size = 0x2000, scoped, tag = 'input window, operand 1']
    #allocation6 [shape = 's32[2]{0}', space=sflag, size = 0x8, scoped, tag = 'scoped memory for tpu_custom_call.1']
    #allocation7 [shape = 'u8[32768]{0}', space=vmem, size = 0x8000, scoped, tag = 'input window, operand 2, single buffered']
    #allocation8 [shape = 'u8[32768]{0}', space=vmem, size = 0x8000, scoped, tag = 'input window, operand 4, single buffered']
    #allocation9 [shape = 's32[1]{0}', space=sflag, size = 0x4, scoped, tag = 'scoped memory for tpu_custom_call.1']
    #allocation10 [shape = 'u8[65536]{0}', space=vmem, size = 0x10000, scoped, tag = 'input window, operand 6, single buffered']
    #allocation11 [shape = 'u8[32768]{0}', space=vmem, size = 0x8000, scoped, tag = 'input window, operand 8, single buffered']
    #allocation12 [shape = 's32[1]{0}', space=sflag, size = 0x4, scoped, tag = 'scoped memory for tpu_custom_call.1']
    #allocation13 [shape = 'u8[32768]{0}', space=vmem, size = 0x8000, scoped, tag = 'input window, operand 10, single buffered']
    #allocation14 [shape = 'u8[32768]{0}', space=vmem, size = 0x8000, scoped, tag = 'input window, operand 12, single buffered']
    #allocation15 [shape = 's32[1]{0}', space=sflag, size = 0x4, scoped, tag = 'scoped memory for tpu_custom_call.1']
    #allocation16 [shape = 'u8[8192]{0}', space=vmem, size = 0x2000, scoped, tag = 'output window, operand 0']
    #allocation17 [shape = 'u8[8192]{0}', space=vmem, size = 0x2000, scoped, tag = 'output window, operand 1']
    #allocation18 [shape = 's32[2]{0}', space=sflag, size = 0x8, scoped, tag = 'scoped memory for tpu_custom_call.1']
    %22 = vsyncpa [#allocation3], 0
    %s23 = scalar_lea.sflag [#allocation3], 1
    %24 = vsyncpa %s23, 0
    %25 = vsyncpa [#allocation6], 0
    %s26 = scalar_lea.sflag [#allocation6], 1
    %27 = vsyncpa %s26, 0
    %28 = vsyncpa [#allocation9], 0
    %29 = vsyncpa [#allocation12], 0
    %30 = vsyncpa [#allocation15], 0
    %31 = vsyncpa [#allocation4], 0
    %s32 = scalar_lea.sflag [#allocation4], 1
    %33 = vsyncpa %s32, 0
    %34 = vsyncpa [#allocation18], 0
    %s35 = scalar_lea.sflag [#allocation18], 1
    %36 = vsyncpa %s35, 0
    loop: start=0, step=1, limit=4
    $region2: #{tpu_custom_call.1} parent=1 // loop_pre_header
      _
    $region3: #{tpu_custom_call.1} parent=1 // loop_header
      %s38 = sphi 0, %s42
      %p39 = scmp.ge.s32.totalorder %s38, 4
      %s48 = sphi 0, %s50
      %s51 = sphi 0, %s48
      %s52 = sphi 0, %s51
      %s68 = sphi 0, %s52
      %s74 = sphi 0, %s76
      %s77 = sphi 0, %s74
      %s78 = sphi 0, %s77
      %s94 = sphi 0, %s78
      %s98 = sphi 0, %s98
      %s100 = sphi 0, %s98
      %s101 = sphi 0, %s100
      %s115 = sphi 0, %s101
      %s119 = sphi 0, %s119
      %s121 = sphi 0, %s119
      %s122 = sphi 0, %s121
      %s136 = sphi 0, %s122
      %s140 = sphi 0, %s140
      %s142 = sphi 0, %s140
      %s143 = sphi 0, %s142
      %s157 = sphi 0, %s143
      %s161 = sphi 0, %s161
      %s163 = sphi 0, %s161
      %s164 = sphi 0, %s163
      %s178 = sphi 0, %s164
      %s182 = sphi 0, %s182
      %s184 = sphi 0, %s182
      %s185 = sphi 0, %s184
      %s199 = sphi 0, %s185
      %s203 = sphi 0, %s203
      %s205 = sphi 0, %s203
      %s206 = sphi 0, %s205
      %s220 = sphi 0, %s206
      %s224 = sphi 0, %s224
      %s226 = sphi 0, %s224
      %s227 = sphi 0, %s226
      %s241 = sphi 0, %s227
      %s245 = sphi 0, %s245
      %s247 = sphi 0, %s245
      %s248 = sphi 0, %s247
      %s262 = sphi 0, %s248
      %s266 = sphi 0, %s266
      %s268 = sphi 0, %s266
      %s269 = sphi 0, %s268
      %s283 = sphi 0, %s269
      %s287 = sphi 0, %s287
      %s289 = sphi 0, %s287
      %s290 = sphi 0, %s289
      %s304 = sphi 0, %s290
      %s308 = sphi 0, %s308
      %s310 = sphi 0, %s308
      %s311 = sphi 0, %s310
      %s325 = sphi 0, %s311
      %s329 = sphi 0, %s329
      %s331 = sphi 0, %s329
      %s332 = sphi 0, %s331
      %s346 = sphi 0, %s332
      %s352 = sphi 0, %s354
      %s355 = sphi 0, %s352
      %s356 = sphi 0, %s355
      %s372 = sphi 0, %s356
      %s378 = sphi 0, %s380
      %s381 = sphi 0, %s378
      %s382 = sphi 0, %s381
      %s398 = sphi 0, %s382
      %s404 = sphi 0, %s406
      %s407 = sphi 0, %s404
      %s408 = sphi 0, %s407
      %s424 = sphi 0, %s408
    $region4: #{tpu_custom_call.1} parent=1 // loop_header_branch
      %41 = sbr.rel (%p39) target = $region8
    $region5: #{tpu_custom_call.1} parent=1 // loop_body
      %s43 = ssub.s32 %s38, 1
      %s44 = ssub.s32 %s38, 2
      %s45 = sadd.s32 %s38, 1
      %s46 = ssub.s32 %s38, %s45
      %p47 = scmp.eq.s32.totalorder %s46, 0
      %s49 = sadd.s32 %s48, 1
      %s50 = scalar_select %p47, %s48, %s49
      %p53 = pneg %p47
      %p54 = scmp.eq.s32.totalorder %s38, 1
      %p55 = por %p53, %p54
      %p56 = scmp.ne.s32.totalorder %s48, %s51
      %p57 = scmp.eq.s32.totalorder %s38, 0
      %p58 = por %p56, %p57
      %p59 = scmp.ne.s32.totalorder %s48, %s51
      %p60 = scmp.eq.s32.totalorder %s43, 1
      %p61 = por %p59, %p60
      %p62 = scmp.ne.s32.totalorder %s51, %s52
      %p63 = scmp.eq.s32.totalorder %s43, 0
      %p64 = por %p62, %p63
      %p65 = scmp.ne.s32.totalorder %s51, %s52
      %p66 = scmp.eq.s32.totalorder %s44, 1
      %p67 = por %p65, %p66
      %p69 = scmp.ne.s32.totalorder %s52, %s68
      %p70 = scmp.eq.s32.totalorder %s44, 0
      %p71 = por %p69, %p70
      %s72 = ssub.s32 %s38, %s45
      %p73 = scmp.eq.s32.totalorder %s72, 0
      %s75 = sadd.s32 %s74, 1
      %s76 = scalar_select %p73, %s74, %s75
      %p79 = pneg %p73
      %p80 = scmp.eq.s32.totalorder %s38, 1
      %p81 = por %p79, %p80
      %p82 = scmp.ne.s32.totalorder %s74, %s77
      %p83 = scmp.eq.s32.totalorder %s38, 0
      %p84 = por %p82, %p83
      %p85 = scmp.ne.s32.totalorder %s74, %s77
      %p86 = scmp.eq.s32.totalorder %s43, 1
      %p87 = por %p85, %p86
      %p88 = scmp.ne.s32.totalorder %s77, %s78
      %p89 = scmp.eq.s32.totalorder %s43, 0
      %p90 = por %p88, %p89
      %p91 = scmp.ne.s32.totalorder %s77, %s78
      %p92 = scmp.eq.s32.totalorder %s44, 1
      %p93 = por %p91, %p92
      %p95 = scmp.ne.s32.totalorder %s78, %s94
      %p96 = scmp.eq.s32.totalorder %s44, 0
      %p97 = por %p95, %p96
      %s99 = sadd.s32 %s98, 1
      %p102 = scmp.eq.s32.totalorder %s38, 1
      %p103 = scmp.ne.s32.totalorder %s98, %s100
      %p104 = scmp.eq.s32.totalorder %s38, 0
      %p105 = por %p103, %p104
      %p106 = scmp.ne.s32.totalorder %s98, %s100
      %p107 = scmp.eq.s32.totalorder %s43, 1
      %p108 = por %p106, %p107
      %p109 = scmp.ne.s32.totalorder %s100, %s101
      %p110 = scmp.eq.s32.totalorder %s43, 0
      %p111 = por %p109, %p110
      %p112 = scmp.ne.s32.totalorder %s100, %s101
      %p113 = scmp.eq.s32.totalorder %s44, 1
      %p114 = por %p112, %p113
      %p116 = scmp.ne.s32.totalorder %s101, %s115
      %p117 = scmp.eq.s32.totalorder %s44, 0
      %p118 = por %p116, %p117
      %s120 = sadd.s32 %s119, 1
      %p123 = scmp.eq.s32.totalorder %s38, 1
      %p124 = scmp.ne.s32.totalorder %s119, %s121
      %p125 = scmp.eq.s32.totalorder %s38, 0
      %p126 = por %p124, %p125
      %p127 = scmp.ne.s32.totalorder %s119, %s121
      %p128 = scmp.eq.s32.totalorder %s43, 1
      %p129 = por %p127, %p128
      %p130 = scmp.ne.s32.totalorder %s121, %s122
      %p131 = scmp.eq.s32.totalorder %s43, 0
      %p132 = por %p130, %p131
      %p133 = scmp.ne.s32.totalorder %s121, %s122
      %p134 = scmp.eq.s32.totalorder %s44, 1
      %p135 = por %p133, %p134
      %p137 = scmp.ne.s32.totalorder %s122, %s136
      %p138 = scmp.eq.s32.totalorder %s44, 0
      %p139 = por %p137, %p138
      %s141 = sadd.s32 %s140, 1
      %p144 = scmp.eq.s32.totalorder %s38, 1
      %p145 = scmp.ne.s32.totalorder %s140, %s142
      %p146 = scmp.eq.s32.totalorder %s38, 0
      %p147 = por %p145, %p146
      %p148 = scmp.ne.s32.totalorder %s140, %s142
      %p149 = scmp.eq.s32.totalorder %s43, 1
      %p150 = por %p148, %p149
      %p151 = scmp.ne.s32.totalorder %s142, %s143
      %p152 = scmp.eq.s32.totalorder %s43, 0
      %p153 = por %p151, %p152
      %p154 = scmp.ne.s32.totalorder %s142, %s143
      %p155 = scmp.eq.s32.totalorder %s44, 1
      %p156 = por %p154, %p155
      %p158 = scmp.ne.s32.totalorder %s143, %s157
      %p159 = scmp.eq.s32.totalorder %s44, 0
      %p160 = por %p158, %p159
      %s162 = sadd.s32 %s161, 1
      %p165 = scmp.eq.s32.totalorder %s38, 1
      %p166 = scmp.ne.s32.totalorder %s161, %s163
      %p167 = scmp.eq.s32.totalorder %s38, 0
      %p168 = por %p166, %p167
      %p169 = scmp.ne.s32.totalorder %s161, %s163
      %p170 = scmp.eq.s32.totalorder %s43, 1
      %p171 = por %p169, %p170
      %p172 = scmp.ne.s32.totalorder %s163, %s164
      %p173 = scmp.eq.s32.totalorder %s43, 0
      %p174 = por %p172, %p173
      %p175 = scmp.ne.s32.totalorder %s163, %s164
      %p176 = scmp.eq.s32.totalorder %s44, 1
      %p177 = por %p175, %p176
      %p179 = scmp.ne.s32.totalorder %s164, %s178
      %p180 = scmp.eq.s32.totalorder %s44, 0
      %p181 = por %p179, %p180
      %s183 = sadd.s32 %s182, 1
      %p186 = scmp.eq.s32.totalorder %s38, 1
      %p187 = scmp.ne.s32.totalorder %s182, %s184
      %p188 = scmp.eq.s32.totalorder %s38, 0
      %p189 = por %p187, %p188
      %p190 = scmp.ne.s32.totalorder %s182, %s184
      %p191 = scmp.eq.s32.totalorder %s43, 1
      %p192 = por %p190, %p191
      %p193 = scmp.ne.s32.totalorder %s184, %s185
      %p194 = scmp.eq.s32.totalorder %s43, 0
      %p195 = por %p193, %p194
      %p196 = scmp.ne.s32.totalorder %s184, %s185
      %p197 = scmp.eq.s32.totalorder %s44, 1
      %p198 = por %p196, %p197
      %p200 = scmp.ne.s32.totalorder %s185, %s199
      %p201 = scmp.eq.s32.totalorder %s44, 0
      %p202 = por %p200, %p201
      %s204 = sadd.s32 %s203, 1
      %p207 = scmp.eq.s32.totalorder %s38, 1
      %p208 = scmp.ne.s32.totalorder %s203, %s205
      %p209 = scmp.eq.s32.totalorder %s38, 0
      %p210 = por %p208, %p209
      %p211 = scmp.ne.s32.totalorder %s203, %s205
      %p212 = scmp.eq.s32.totalorder %s43, 1
      %p213 = por %p211, %p212
      %p214 = scmp.ne.s32.totalorder %s205, %s206
      %p215 = scmp.eq.s32.totalorder %s43, 0
      %p216 = por %p214, %p215
      %p217 = scmp.ne.s32.totalorder %s205, %s206
      %p218 = scmp.eq.s32.totalorder %s44, 1
      %p219 = por %p217, %p218
      %p221 = scmp.ne.s32.totalorder %s206, %s220
      %p222 = scmp.eq.s32.totalorder %s44, 0
      %p223 = por %p221, %p222
      %s225 = sadd.s32 %s224, 1
      %p228 = scmp.eq.s32.totalorder %s38, 1
      %p229 = scmp.ne.s32.totalorder %s224, %s226
      %p230 = scmp.eq.s32.totalorder %s38, 0
      %p231 = por %p229, %p230
      %p232 = scmp.ne.s32.totalorder %s224, %s226
      %p233 = scmp.eq.s32.totalorder %s43, 1
      %p234 = por %p232, %p233
      %p235 = scmp.ne.s32.totalorder %s226, %s227
      %p236 = scmp.eq.s32.totalorder %s43, 0
      %p237 = por %p235, %p236
      %p238 = scmp.ne.s32.totalorder %s226, %s227
      %p239 = scmp.eq.s32.totalorder %s44, 1
      %p240 = por %p238, %p239
      %p242 = scmp.ne.s32.totalorder %s227, %s241
      %p243 = scmp.eq.s32.totalorder %s44, 0
      %p244 = por %p242, %p243
      %s246 = sadd.s32 %s245, 1
      %p249 = scmp.eq.s32.totalorder %s38, 1
      %p250 = scmp.ne.s32.totalorder %s245, %s247
      %p251 = scmp.eq.s32.totalorder %s38, 0
      %p252 = por %p250, %p251
      %p253 = scmp.ne.s32.totalorder %s245, %s247
      %p254 = scmp.eq.s32.totalorder %s43, 1
      %p255 = por %p253, %p254
      %p256 = scmp.ne.s32.totalorder %s247, %s248
      %p257 = scmp.eq.s32.totalorder %s43, 0
      %p258 = por %p256, %p257
      %p259 = scmp.ne.s32.totalorder %s247, %s248
      %p260 = scmp.eq.s32.totalorder %s44, 1
      %p261 = por %p259, %p260
      %p263 = scmp.ne.s32.totalorder %s248, %s262
      %p264 = scmp.eq.s32.totalorder %s44, 0
      %p265 = por %p263, %p264
      %s267 = sadd.s32 %s266, 1
      %p270 = scmp.eq.s32.totalorder %s38, 1
      %p271 = scmp.ne.s32.totalorder %s266, %s268
      %p272 = scmp.eq.s32.totalorder %s38, 0
      %p273 = por %p271, %p272
      %p274 = scmp.ne.s32.totalorder %s266, %s268
      %p275 = scmp.eq.s32.totalorder %s43, 1
      %p276 = por %p274, %p275
      %p277 = scmp.ne.s32.totalorder %s268, %s269
      %p278 = scmp.eq.s32.totalorder %s43, 0
      %p279 = por %p277, %p278
      %p280 = scmp.ne.s32.totalorder %s268, %s269
      %p281 = scmp.eq.s32.totalorder %s44, 1
      %p282 = por %p280, %p281
      %p284 = scmp.ne.s32.totalorder %s269, %s283
      %p285 = scmp.eq.s32.totalorder %s44, 0
      %p286 = por %p284, %p285
      %s288 = sadd.s32 %s287, 1
      %p291 = scmp.eq.s32.totalorder %s38, 1
      %p292 = scmp.ne.s32.totalorder %s287, %s289
      %p293 = scmp.eq.s32.totalorder %s38, 0
      %p294 = por %p292, %p293
      %p295 = scmp.ne.s32.totalorder %s287, %s289
      %p296 = scmp.eq.s32.totalorder %s43, 1
      %p297 = por %p295, %p296
      %p298 = scmp.ne.s32.totalorder %s289, %s290
      %p299 = scmp.eq.s32.totalorder %s43, 0
      %p300 = por %p298, %p299
      %p301 = scmp.ne.s32.totalorder %s289, %s290
      %p302 = scmp.eq.s32.totalorder %s44, 1
      %p303 = por %p301, %p302
      %p305 = scmp.ne.s32.totalorder %s290, %s304
      %p306 = scmp.eq.s32.totalorder %s44, 0
      %p307 = por %p305, %p306
      %s309 = sadd.s32 %s308, 1
      %p312 = scmp.eq.s32.totalorder %s38, 1
      %p313 = scmp.ne.s32.totalorder %s308, %s310
      %p314 = scmp.eq.s32.totalorder %s38, 0
      %p315 = por %p313, %p314
      %p316 = scmp.ne.s32.totalorder %s308, %s310
      %p317 = scmp.eq.s32.totalorder %s43, 1
      %p318 = por %p316, %p317
      %p319 = scmp.ne.s32.totalorder %s310, %s311
      %p320 = scmp.eq.s32.totalorder %s43, 0
      %p321 = por %p319, %p320
      %p322 = scmp.ne.s32.totalorder %s310, %s311
      %p323 = scmp.eq.s32.totalorder %s44, 1
      %p324 = por %p322, %p323
      %p326 = scmp.ne.s32.totalorder %s311, %s325
      %p327 = scmp.eq.s32.totalorder %s44, 0
      %p328 = por %p326, %p327
      %s330 = sadd.s32 %s329, 1
      %p333 = scmp.eq.s32.totalorder %s38, 1
      %p334 = scmp.ne.s32.totalorder %s329, %s331
      %p335 = scmp.eq.s32.totalorder %s38, 0
      %p336 = por %p334, %p335
      %p337 = scmp.ne.s32.totalorder %s329, %s331
      %p338 = scmp.eq.s32.totalorder %s43, 1
      %p339 = por %p337, %p338
      %p340 = scmp.ne.s32.totalorder %s331, %s332
      %p341 = scmp.eq.s32.totalorder %s43, 0
      %p342 = por %p340, %p341
      %p343 = scmp.ne.s32.totalorder %s331, %s332
      %p344 = scmp.eq.s32.totalorder %s44, 1
      %p345 = por %p343, %p344
      %p347 = scmp.ne.s32.totalorder %s332, %s346
      %p348 = scmp.eq.s32.totalorder %s44, 0
      %p349 = por %p347, %p348
      %s350 = ssub.s32 %s38, %s45
      %p351 = scmp.eq.s32.totalorder %s350, 0
      %s353 = sadd.s32 %s352, 1
      %s354 = scalar_select %p351, %s352, %s353
      %p357 = pneg %p351
      %p358 = scmp.eq.s32.totalorder %s38, 1
      %p359 = por %p357, %p358
      %p360 = scmp.ne.s32.totalorder %s352, %s355
      %p361 = scmp.eq.s32.totalorder %s38, 0
      %p362 = por %p360, %p361
      %p363 = scmp.ne.s32.totalorder %s352, %s355
      %p364 = scmp.eq.s32.totalorder %s43, 1
      %p365 = por %p363, %p364
      %p366 = scmp.ne.s32.totalorder %s355, %s356
      %p367 = scmp.eq.s32.totalorder %s43, 0
      %p368 = por %p366, %p367
      %p369 = scmp.ne.s32.totalorder %s355, %s356
      %p370 = scmp.eq.s32.totalorder %s44, 1
      %p371 = por %p369, %p370
      %p373 = scmp.ne.s32.totalorder %s356, %s372
      %p374 = scmp.eq.s32.totalorder %s44, 0
      %p375 = por %p373, %p374
      %s376 = ssub.s32 %s38, %s45
      %p377 = scmp.eq.s32.totalorder %s376, 0
      %s379 = sadd.s32 %s378, 1
      %s380 = scalar_select %p377, %s378, %s379
      %p383 = pneg %p377
      %p384 = scmp.eq.s32.totalorder %s38, 1
      %p385 = por %p383, %p384
      %p386 = scmp.ne.s32.totalorder %s378, %s381
      %p387 = scmp.eq.s32.totalorder %s38, 0
      %p388 = por %p386, %p387
      %p389 = scmp.ne.s32.totalorder %s378, %s381
      %p390 = scmp.eq.s32.totalorder %s43, 1
      %p391 = por %p389, %p390
      %p392 = scmp.ne.s32.totalorder %s381, %s382
      %p393 = scmp.eq.s32.totalorder %s43, 0
      %p394 = por %p392, %p393
      %p395 = scmp.ne.s32.totalorder %s381, %s382
      %p396 = scmp.eq.s32.totalorder %s44, 1
      %p397 = por %p395, %p396
      %p399 = scmp.ne.s32.totalorder %s382, %s398
      %p400 = scmp.eq.s32.totalorder %s44, 0
      %p401 = por %p399, %p400
      %s402 = ssub.s32 %s38, %s45
      %p403 = scmp.eq.s32.totalorder %s402, 0
      %s405 = sadd.s32 %s404, 1
      %s406 = scalar_select %p403, %s404, %s405
      %p409 = pneg %p403
      %p410 = scmp.eq.s32.totalorder %s38, 1
      %p411 = por %p409, %p410
      %p412 = scmp.ne.s32.totalorder %s404, %s407
      %p413 = scmp.eq.s32.totalorder %s38, 0
      %p414 = por %p412, %p413
      %p415 = scmp.ne.s32.totalorder %s404, %s407
      %p416 = scmp.eq.s32.totalorder %s43, 1
      %p417 = por %p415, %p416
      %p418 = scmp.ne.s32.totalorder %s407, %s408
      %p419 = scmp.eq.s32.totalorder %s43, 0
      %p420 = por %p418, %p419
      %p421 = scmp.ne.s32.totalorder %s407, %s408
      %p422 = scmp.eq.s32.totalorder %s44, 1
      %p423 = por %p421, %p422
      %p425 = scmp.ne.s32.totalorder %s408, %s424
      %p426 = scmp.eq.s32.totalorder %s44, 0
      %p427 = por %p425, %p426
      %p428 = scmp.le.s32.totalorder 1, %s38
      %p429 = scmp.lt.s32.totalorder %s38, 3
      %p430 = pnand %p428, %p429
      %p431 = pneg %p430
      // Predicated region
      $region9: #{tpu_custom_call.1} parent=5 // pred_check
        _
      $region10: #{tpu_custom_call.1} parent=5 // pred_check_branch
        %433 = sbr.rel (%p430) target = $region12
      $region11: #{tpu_custom_call.1} parent=5 // pred_region
        %s434 = ssub.s32 %s38, 1
        // Predicated region
        $region13: #{tpu_custom_call.1} parent=11 // pred_check
          %p435 = pneg %p111
        $region14: #{tpu_custom_call.1} parent=11 // pred_check_branch
          %437 = sbr.rel (%p435) target = $region16
        $region15: #{tpu_custom_call.1} parent=11 // pred_region
          %s439 = ssub.s32 1024, 1024
          %440 = vsyncadd [#allocation6], %s439
          %s441 = sshll.u32 [#allocation7], 4
          %s442 = int_to_ptr.vmem [resolvable:$true] %s441
          %447 = dma.hbm_to_vmem [thread:$0]  %s2, 1024, %s442, [#allocation6], 64, 64, 4
        $region16: #{tpu_custom_call.1} parent=11 // pred_fallthru
          _
        // Predicated region
        $region17: #{tpu_custom_call.1} parent=11 // pred_check
          %p448 = pneg %p132
        $region18: #{tpu_custom_call.1} parent=11 // pred_check_branch
          %450 = sbr.rel (%p448) target = $region20
        $region19: #{tpu_custom_call.1} parent=11 // pred_region
          _
        $region20: #{tpu_custom_call.1} parent=11 // pred_fallthru
          _
        // Predicated region
        $region21: #{tpu_custom_call.1} parent=11 // pred_check
          %p451 = pneg %p153
        $region22: #{tpu_custom_call.1} parent=11 // pred_check_branch
          %453 = sbr.rel (%p451) target = $region24
        $region23: #{tpu_custom_call.1} parent=11 // pred_region
          %s455 = ssub.s32 1024, 1024
          %456 = vsyncadd [#allocation9], %s455
          %s457 = sshll.u32 [#allocation8], 4
          %s458 = int_to_ptr.vmem [resolvable:$true] %s457
          %463 = dma.hbm_to_vmem [thread:$0]  %s4, 1024, %s458, [#allocation9], 64, 64, 4
        $region24: #{tpu_custom_call.1} parent=11 // pred_fallthru
          _
        // Predicated region
        $region25: #{tpu_custom_call.1} parent=11 // pred_check
          %p464 = pneg %p174
        $region26: #{tpu_custom_call.1} parent=11 // pred_check_branch
          %466 = sbr.rel (%p464) target = $region28
        $region27: #{tpu_custom_call.1} parent=11 // pred_region
          _
        $region28: #{tpu_custom_call.1} parent=11 // pred_fallthru
          _
        // Predicated region
        $region29: #{tpu_custom_call.1} parent=11 // pred_check
          %p467 = pneg %p195
        $region30: #{tpu_custom_call.1} parent=11 // pred_check_branch
          %469 = sbr.rel (%p467) target = $region32
        $region31: #{tpu_custom_call.1} parent=11 // pred_region
          %s471 = ssub.s32 2048, 2048
          %472 = vsyncadd [#allocation9], %s471
          %s473 = sshll.u32 [#allocation10], 4
          %s474 = int_to_ptr.vmem [resolvable:$true] %s473
          %479 = dma.hbm_to_vmem [thread:$0]  %s6, 2048, %s474, [#allocation9], 128, 128, 8
        $region32: #{tpu_custom_call.1} parent=11 // pred_fallthru
          _
        // Predicated region
        $region33: #{tpu_custom_call.1} parent=11 // pred_check
          %p480 = pneg %p216
        $region34: #{tpu_custom_call.1} parent=11 // pred_check_branch
          %482 = sbr.rel (%p480) target = $region36
        $region35: #{tpu_custom_call.1} parent=11 // pred_region
          _
        $region36: #{tpu_custom_call.1} parent=11 // pred_fallthru
          _
        // Predicated region
        $region37: #{tpu_custom_call.1} parent=11 // pred_check
          %p483 = pneg %p237
        $region38: #{tpu_custom_call.1} parent=11 // pred_check_branch
          %485 = sbr.rel (%p483) target = $region40
        $region39: #{tpu_custom_call.1} parent=11 // pred_region
          %s487 = ssub.s32 1024, 1024
          %488 = vsyncadd [#allocation12], %s487
          %s489 = sshll.u32 [#allocation11], 4
          %s490 = int_to_ptr.vmem [resolvable:$true] %s489
          %495 = dma.hbm_to_vmem [thread:$0]  %s8, 1024, %s490, [#allocation12], 64, 64, 4
        $region40: #{tpu_custom_call.1} parent=11 // pred_fallthru
          _
        // Predicated region
        $region41: #{tpu_custom_call.1} parent=11 // pred_check
          %p496 = pneg %p258
        $region42: #{tpu_custom_call.1} parent=11 // pred_check_branch
          %498 = sbr.rel (%p496) target = $region44
        $region43: #{tpu_custom_call.1} parent=11 // pred_region
          _
        $region44: #{tpu_custom_call.1} parent=11 // pred_fallthru
          _
        // Predicated region
        $region45: #{tpu_custom_call.1} parent=11 // pred_check
          %p499 = pneg %p279
        $region46: #{tpu_custom_call.1} parent=11 // pred_check_branch
          %501 = sbr.rel (%p499) target = $region48
        $region47: #{tpu_custom_call.1} parent=11 // pred_region
          %s503 = ssub.s32 1024, 1024
          %504 = vsyncadd [#allocation12], %s503
          %s505 = sshll.u32 [#allocation13], 4
          %s506 = int_to_ptr.vmem [resolvable:$true] %s505
          %511 = dma.hbm_to_vmem [thread:$0]  %s10, 1024, %s506, [#allocation12], 64, 64, 4
        $region48: #{tpu_custom_call.1} parent=11 // pred_fallthru
          _
        // Predicated region
        $region49: #{tpu_custom_call.1} parent=11 // pred_check
          %p512 = pneg %p300
        $region50: #{tpu_custom_call.1} parent=11 // pred_check_branch
          %514 = sbr.rel (%p512) target = $region52
        $region51: #{tpu_custom_call.1} parent=11 // pred_region
          _
        $region52: #{tpu_custom_call.1} parent=11 // pred_fallthru
          _
        // Predicated region
        $region53: #{tpu_custom_call.1} parent=11 // pred_check
          %p515 = pneg %p321
        $region54: #{tpu_custom_call.1} parent=11 // pred_check_branch
          %517 = sbr.rel (%p515) target = $region56
        $region55: #{tpu_custom_call.1} parent=11 // pred_region
          %s519 = ssub.s32 1024, 1024
          %520 = vsyncadd [#allocation15], %s519
          %s521 = sshll.u32 [#allocation14], 4
          %s522 = int_to_ptr.vmem [resolvable:$true] %s521
          %527 = dma.hbm_to_vmem [thread:$0]  %s12, 1024, %s522, [#allocation15], 64, 64, 4
        $region56: #{tpu_custom_call.1} parent=11 // pred_fallthru
          _
        // Predicated region
        $region57: #{tpu_custom_call.1} parent=11 // pred_check
          %p528 = pneg %p342
        $region58: #{tpu_custom_call.1} parent=11 // pred_check_branch
          %530 = sbr.rel (%p528) target = $region60
        $region59: #{tpu_custom_call.1} parent=11 // pred_region
          _
        $region60: #{tpu_custom_call.1} parent=11 // pred_fallthru
          _
      $region12: #{tpu_custom_call.1} parent=5 // pred_fallthru
        _
      %p531 = scmp.lt.s32.totalorder %s38, 2
      // Predicated region
      $region61: #{tpu_custom_call.1} parent=5 // pred_check
        %p532 = pneg %p531
      $region62: #{tpu_custom_call.1} parent=5 // pred_check_branch
        %534 = sbr.rel (%p532) target = $region64
      $region63: #{tpu_custom_call.1} parent=5 // pred_region
        // Predicated region
        $region65: #{tpu_custom_call.1} parent=63 // pred_check
          %p535 = pneg %p58
        $region66: #{tpu_custom_call.1} parent=63 // pred_check_branch
          %537 = sbr.rel (%p535) target = $region68
        $region67: #{tpu_custom_call.1} parent=63 // pred_region
          %s538 = sand.u32 %s48, 1
          %s539 = scalar_lea.sflag [#allocation3], %s538
          %s540 = sand.u32 %s48, 1
          %s541 = smul.addr %s540, 8
          %s542 = scalar_lea.vmem [#allocation2], %s541
          %s544 = ssub.s32 128, 128
          %545 = vsyncadd %s539, %s544
          %s546 = smul.addr %s38, 128
          %s547 = scalar_lea.hbm %s0, %s546
          %s549 = sshll.u32 %s542, 4
          %s550 = int_to_ptr.vmem [resolvable:$true] %s549
          %552 = dma.hbm_to_vmem [thread:$0]  %s547, 128, %s550, %s539
        $region68: #{tpu_custom_call.1} parent=63 // pred_fallthru
          _
        // Predicated region
        $region69: #{tpu_custom_call.1} parent=63 // pred_check
          %p553 = pneg %p84
        $region70: #{tpu_custom_call.1} parent=63 // pred_check_branch
          %555 = sbr.rel (%p553) target = $region72
        $region71: #{tpu_custom_call.1} parent=63 // pred_region
          %s556 = sand.u32 %s38, 1
          %s557 = scalar_lea.sflag [#allocation6], %s556
          %s558 = sand.u32 %s74, 1
          %s559 = smul.addr %s558, 8
          %s560 = scalar_lea.vmem [#allocation5], %s559
          %s562 = ssub.s32 128, 128
          %563 = vsyncadd %s557, %s562
          %s564 = smul.addr %s38, 128
          %s565 = scalar_lea.hbm %s1, %s564
          %s567 = sshll.u32 %s560, 4
          %s568 = int_to_ptr.vmem [resolvable:$true] %s567
          %570 = dma.hbm_to_vmem [thread:$0]  %s565, 128, %s568, %s557
        $region72: #{tpu_custom_call.1} parent=63 // pred_fallthru
          _
      $region64: #{tpu_custom_call.1} parent=5 // pred_fallthru
        _
      %p571 = scmp.le.s32.totalorder 1, %s38
      %p572 = scmp.lt.s32.totalorder %s38, 3
      %p573 = pnand %p571, %p572
      %p574 = pneg %p573
      // Predicated region
      $region73: #{tpu_custom_call.1} parent=5 // pred_check
        _
      $region74: #{tpu_custom_call.1} parent=5 // pred_check_branch
        %576 = sbr.rel (%p573) target = $region76
      $region75: #{tpu_custom_call.1} parent=5 // pred_region
        %s577 = ssub.s32 %s38, 1
        %s578 = sand.u32 %s51, 1
        %s579 = scalar_lea.sflag [#allocation3], %s578
        %s580 = sand.u32 %s51, 1
        %s581 = smul.addr %s580, 8
        %s582 = scalar_lea.vmem [#allocation2], %s581
        // Predicated region
        $region77: #{tpu_custom_call.1} parent=75 // pred_check
          %p583 = pneg %p64
        $region78: #{tpu_custom_call.1} parent=75 // pred_check_branch
          %585 = sbr.rel (%p583) target = $region80
        $region79: #{tpu_custom_call.1} parent=75 // pred_region
          %586 = dma.done %s579, 128
        $region80: #{tpu_custom_call.1} parent=75 // pred_fallthru
          _
        %s587 = sand.u32 %s43, 1
        %s588 = scalar_lea.sflag [#allocation6], %s587
        %s589 = sand.u32 %s77, 1
        %s590 = smul.addr %s589, 8
        %s591 = scalar_lea.vmem [#allocation5], %s590
        // Predicated region
        $region81: #{tpu_custom_call.1} parent=75 // pred_check
          %p592 = pneg %p90
        $region82: #{tpu_custom_call.1} parent=75 // pred_check_branch
          %594 = sbr.rel (%p592) target = $region84
        $region83: #{tpu_custom_call.1} parent=75 // pred_region
          %595 = dma.done %s588, 128
        $region84: #{tpu_custom_call.1} parent=75 // pred_fallthru
          _
        // Predicated region
        $region85: #{tpu_custom_call.1} parent=75 // pred_check
          %p596 = pneg %p111
        $region86: #{tpu_custom_call.1} parent=75 // pred_check_branch
          %598 = sbr.rel (%p596) target = $region88
        $region87: #{tpu_custom_call.1} parent=75 // pred_region
          %599 = dma.done [#allocation6], 1024
        $region88: #{tpu_custom_call.1} parent=75 // pred_fallthru
          _
        // Predicated region
        $region89: #{tpu_custom_call.1} parent=75 // pred_check
          %p600 = pneg %p153
        $region90: #{tpu_custom_call.1} parent=75 // pred_check_branch
          %602 = sbr.rel (%p600) target = $region92
        $region91: #{tpu_custom_call.1} parent=75 // pred_region
          %603 = dma.done [#allocation9], 1024
        $region92: #{tpu_custom_call.1} parent=75 // pred_fallthru
          _
        // Predicated region
        $region93: #{tpu_custom_call.1} parent=75 // pred_check
          %p604 = pneg %p195
        $region94: #{tpu_custom_call.1} parent=75 // pred_check_branch
          %606 = sbr.rel (%p604) target = $region96
        $region95: #{tpu_custom_call.1} parent=75 // pred_region
          %607 = dma.done [#allocation9], 2048
        $region96: #{tpu_custom_call.1} parent=75 // pred_fallthru
          _
        // Predicated region
        $region97: #{tpu_custom_call.1} parent=75 // pred_check
          %p608 = pneg %p237
        $region98: #{tpu_custom_call.1} parent=75 // pred_check_branch
          %610 = sbr.rel (%p608) target = $region100
        $region99: #{tpu_custom_call.1} parent=75 // pred_region
          %611 = dma.done [#allocation12], 1024
        $region100: #{tpu_custom_call.1} parent=75 // pred_fallthru
          _
        // Predicated region
        $region101: #{tpu_custom_call.1} parent=75 // pred_check
          %p612 = pneg %p279
        $region102: #{tpu_custom_call.1} parent=75 // pred_check_branch
          %614 = sbr.rel (%p612) target = $region104
        $region103: #{tpu_custom_call.1} parent=75 // pred_region
          %615 = dma.done [#allocation12], 1024
        $region104: #{tpu_custom_call.1} parent=75 // pred_fallthru
          _
        // Predicated region
        $region105: #{tpu_custom_call.1} parent=75 // pred_check
          %p616 = pneg %p321
        $region106: #{tpu_custom_call.1} parent=75 // pred_check_branch
          %618 = sbr.rel (%p616) target = $region108
        $region107: #{tpu_custom_call.1} parent=75 // pred_region
          %619 = dma.done [#allocation15], 1024
        $region108: #{tpu_custom_call.1} parent=75 // pred_fallthru
          _
        %s620 = sand.u32 %s51, 1
        %s621 = scalar_lea.sflag [#allocation3], %s620
        %s622 = sand.u32 %s51, 1
        %s623 = smul.addr %s622, 8
        %s624 = scalar_lea.vmem [#allocation2], %s623
        %p625 = pneg %p64
        %p626 = pneg %p61
        %s627 = sand.u32 %s43, 1
        %s628 = scalar_lea.sflag [#allocation6], %s627
        %s629 = sand.u32 %s77, 1
        %s630 = smul.addr %s629, 8
        %s631 = scalar_lea.vmem [#allocation5], %s630
        %p632 = pneg %p90
        %p633 = pneg %p87
        %p634 = pneg %p111
        %p635 = pneg %p108
        %p636 = pneg %p132
        %p637 = pneg %p129
        %p638 = pneg %p153
        %p639 = pneg %p150
        %p640 = pneg %p174
        %p641 = pneg %p171
        %p642 = pneg %p195
        %p643 = pneg %p192
        %p644 = pneg %p216
        %p645 = pneg %p213
        %p646 = pneg %p237
        %p647 = pneg %p234
        %p648 = pneg %p258
        %p649 = pneg %p255
        %p650 = pneg %p279
        %p651 = pneg %p276
        %p652 = pneg %p300
        %p653 = pneg %p297
        %p654 = pneg %p321
        %p655 = pneg %p318
        %p656 = pneg %p342
        %p657 = pneg %p339
        %p658 = pneg %p368
        %p659 = pneg %p365
        %s660 = sand.u32 %s355, 1
        %s661 = scalar_lea.sflag [#allocation4], %s660
        %s662 = sand.u32 %s355, 1
        %s663 = smul.addr %s662, 8
        %s664 = scalar_lea.vmem [#allocation16], %s663
        %p665 = pneg %p394
        %p666 = pneg %p391
        %s667 = sand.u32 %s381, 1
        %s668 = scalar_lea.sflag [#allocation18], %s667
        %s669 = sand.u32 %s381, 1
        %s670 = smul.addr %s669, 8
        %s671 = scalar_lea.vmem [#allocation17], %s670
        %p672 = pneg %p420
        %p673 = pneg %p417
        %p674 = scmp.lt.s32.totalorder %s43, 1
        %s675 = scalar_select %p674, %s43, 1
        %s676 = smul.addr %s675, 8
        %s677 = scalar_lea.vmem %s16, %s676
        %p678 = scmp.lt.s32.totalorder %s43, 1
        %s679 = scalar_select %p678, %s43, 1
        %s680 = smul.addr %s679, 8
        %s681 = scalar_lea.vmem %s16, %s680
        %v683 = vld [vmem:[%s582] sm:$0xff]
        %v684 = vld [vmem:[#allocation7] sm:$0xf]
        %v685 = vld [vmem:[#allocation7 + $0x4] sm:$0xf]
        %v686 = vld [vmem:[#allocation7 + $0x8] sm:$0xf]
        %v687 = vld [vmem:[#allocation7 + $0xc] sm:$0xf]
        %v688 = vld [vmem:[#allocation7 + $0x10] sm:$0xf]
        %v689 = vld [vmem:[#allocation7 + $0x14] sm:$0xf]
        %v690 = vld [vmem:[#allocation7 + $0x18] sm:$0xf]
        %v691 = vld [vmem:[#allocation7 + $0x1c] sm:$0xf]
        %v692 = vld [vmem:[#allocation7 + $0x20] sm:$0xf]
        %v693 = vld [vmem:[#allocation7 + $0x24] sm:$0xf]
        %v694 = vld [vmem:[#allocation7 + $0x28] sm:$0xf]
        %v695 = vld [vmem:[#allocation7 + $0x2c] sm:$0xf]
        %v696 = vld [vmem:[#allocation7 + $0x30] sm:$0xf]
        %v697 = vld [vmem:[#allocation7 + $0x34] sm:$0xf]
        %v698 = vld [vmem:[#allocation7 + $0x38] sm:$0xf]
        %v699 = vld [vmem:[#allocation7 + $0x3c] sm:$0xf]
        %v700 = vld [vmem:[%s3] sm:$0x1]
        %v701 = vpack.c.bf16 %v683, %v683
        %v703 = vlaneseq
        %v704 = vshrl.u32 %v703, 7
        %v705 = vsub.s32 0, %v704
        %v706 = vrot.slane %v700, %v705
        %v724 = vunpack.c.l.b16 %v684
        %v725 = vunpack.c.l.b16 %v685
        %v726 = vunpack.c.l.b16 %v686
        %v727 = vunpack.c.l.b16 %v687
        %v728 = vunpack.c.l.b16 %v688
        %v729 = vunpack.c.l.b16 %v689
        %v730 = vunpack.c.l.b16 %v690
        %v731 = vunpack.c.l.b16 %v691
        %v732 = vunpack.c.l.b16 %v692
        %v733 = vunpack.c.l.b16 %v693
        %v734 = vunpack.c.l.b16 %v694
        %v735 = vunpack.c.l.b16 %v695
        %v736 = vunpack.c.l.b16 %v696
        %v737 = vunpack.c.l.b16 %v697
        %v738 = vunpack.c.l.b16 %v698
        %v739 = vunpack.c.l.b16 %v699
        %v740 = vpack.c.b16 %v725, %v724
        %v741 = vpack.c.b16 %v727, %v726
        %v742 = vpack.c.b16 %v729, %v728
        %v743 = vpack.c.b16 %v731, %v730
        %v744 = vpack.c.b16 %v733, %v732
        %v745 = vpack.c.b16 %v735, %v734
        %v746 = vpack.c.b16 %v737, %v736
        %v747 = vpack.c.b16 %v739, %v738
        %756 = vmatprep.subr.bf16.mxu0 0
        %757 = vmatpush1.bf16.msra.mxu0 %v747
        %758 = vmatprep.subr.bf16.mxu0 0
        %759 = vmatpush1.bf16.msra.mxu0 %v746
        %760 = vmatprep.subr.bf16.mxu0 0
        %761 = vmatpush1.bf16.msra.mxu0 %v745
        %762 = vmatprep.subr.bf16.mxu0 0
        %763 = vmatpush1.bf16.msra.mxu0 %v744
        %764 = vmatprep.subr.bf16.mxu0 0
        %765 = vmatpush1.bf16.msra.mxu0 %v743
        %766 = vmatprep.subr.bf16.mxu0 0
        %767 = vmatpush1.bf16.msra.mxu0 %v742
        %768 = vmatprep.subr.bf16.mxu0 0
        %769 = vmatpush1.bf16.msra.mxu0 %v741
        %770 = vmatprep.subr.bf16.mxu0 0
        %771 = vmatpush1.bf16.msra.mxu0 %v740
        %772 = vmatprep.subr.bf16.mxu0 0
        %773 = vmatpush2.bf16.msra.mxu0 0
        %774 = vmatprep.subr.bf16.mxu0 0
        %775 = vmatpush2.bf16.msra.mxu0 0
        %776 = vmatprep.subr.bf16.mxu0 0
        %777 = vmatpush2.bf16.msra.mxu0 0
        %778 = vmatprep.subr.bf16.mxu0 0
        %779 = vmatpush2.bf16.msra.mxu0 0
        %780 = vmatprep.subr.bf16.mxu0 0
        %781 = vmatpush2.bf16.msra.mxu0 0
        %782 = vmatprep.subr.bf16.mxu0 0
        %783 = vmatpush2.bf16.msra.mxu0 0
        %784 = vmatprep.subr.bf16.mxu0 0
        %785 = vmatpush2.bf16.msra.mxu0 0
        %786 = vmatprep.subr.bf16.mxu0 0
        %787 = vmatpush2.bf16.msra.mxu0 0
        %788 = vmatprep.mubr.bf16.mxu0 0
        %789 = vmatmul.mubr.bf16.gmra.mxu0 %v701
        %v790 = vpop.f32.mrf.mxu0
        %v791 = vadd.f32 %v706, %v790
        %v792 = vpop.f32.mrf.mxu0
        %v793 = vpop.f32.mrf.mxu0
        %v794 = vpop.f32.mrf.mxu0
        %795 = vdwg.mxu0
        %v796 = vmax.f32 %v791, 0.0
        %v797 = vld [vmem:[#allocation8] sm:$0xf]
        %v798 = vld [vmem:[#allocation8 + $0x4] sm:$0xf]
        %v799 = vld [vmem:[#allocation8 + $0x8] sm:$0xf]
        %v800 = vld [vmem:[#allocation8 + $0xc] sm:$0xf]
        %v801 = vld [vmem:[#allocation8 + $0x10] sm:$0xf]
        %v802 = vld [vmem:[#allocation8 + $0x14] sm:$0xf]
        %v803 = vld [vmem:[#allocation8 + $0x18] sm:$0xf]
        %v804 = vld [vmem:[#allocation8 + $0x1c] sm:$0xf]
        %v805 = vld [vmem:[#allocation8 + $0x20] sm:$0xf]
        %v806 = vld [vmem:[#allocation8 + $0x24] sm:$0xf]
        %v807 = vld [vmem:[#allocation8 + $0x28] sm:$0xf]
        %v808 = vld [vmem:[#allocation8 + $0x2c] sm:$0xf]
        %v809 = vld [vmem:[#allocation8 + $0x30] sm:$0xf]
        %v810 = vld [vmem:[#allocation8 + $0x34] sm:$0xf]
        %v811 = vld [vmem:[#allocation8 + $0x38] sm:$0xf]
        %v812 = vld [vmem:[#allocation8 + $0x3c] sm:$0xf]
        %v813 = vld [vmem:[%s5] sm:$0x1]
        %v814 = vpack.c.bf16 %v796, %v796
        %v816 = vlaneseq
        %v817 = vshrl.u32 %v816, 7
        %v818 = vsub.s32 0, %v817
        %v819 = vrot.slane %v813, %v818
        %v837 = vunpack.c.l.b16 %v797
        %v838 = vunpack.c.l.b16 %v798
        %v839 = vunpack.c.l.b16 %v799
        %v840 = vunpack.c.l.b16 %v800
        %v841 = vunpack.c.l.b16 %v801
        %v842 = vunpack.c.l.b16 %v802
        %v843 = vunpack.c.l.b16 %v803
        %v844 = vunpack.c.l.b16 %v804
        %v845 = vunpack.c.l.b16 %v805
        %v846 = vunpack.c.l.b16 %v806
        %v847 = vunpack.c.l.b16 %v807
        %v848 = vunpack.c.l.b16 %v808
        %v849 = vunpack.c.l.b16 %v809
        %v850 = vunpack.c.l.b16 %v810
        %v851 = vunpack.c.l.b16 %v811
        %v852 = vunpack.c.l.b16 %v812
        %v853 = vpack.c.b16 %v838, %v837
        %v854 = vpack.c.b16 %v840, %v839
        %v855 = vpack.c.b16 %v842, %v841
        %v856 = vpack.c.b16 %v844, %v843
        %v857 = vpack.c.b16 %v846, %v845
        %v858 = vpack.c.b16 %v848, %v847
        %v859 = vpack.c.b16 %v850, %v849
        %v860 = vpack.c.b16 %v852, %v851
        %869 = vmatprep.subr.bf16.mxu0 0
        %870 = vmatpush1.bf16.msra.mxu0 %v860
        %871 = vmatprep.subr.bf16.mxu0 0
        %872 = vmatpush1.bf16.msra.mxu0 %v859
        %873 = vmatprep.subr.bf16.mxu0 0
        %874 = vmatpush1.bf16.msra.mxu0 %v858
        %875 = vmatprep.subr.bf16.mxu0 0
        %876 = vmatpush1.bf16.msra.mxu0 %v857
        %877 = vmatprep.subr.bf16.mxu0 0
        %878 = vmatpush1.bf16.msra.mxu0 %v856
        %879 = vmatprep.subr.bf16.mxu0 0
        %880 = vmatpush1.bf16.msra.mxu0 %v855
        %881 = vmatprep.subr.bf16.mxu0 0
        %882 = vmatpush1.bf16.msra.mxu0 %v854
        %883 = vmatprep.subr.bf16.mxu0 0
        %884 = vmatpush1.bf16.msra.mxu0 %v853
        %885 = vmatprep.subr.bf16.mxu0 0
        %886 = vmatpush2.bf16.msra.mxu0 0
        %887 = vmatprep.subr.bf16.mxu0 0
        %888 = vmatpush2.bf16.msra.mxu0 0
        %889 = vmatprep.subr.bf16.mxu0 0
        %890 = vmatpush2.bf16.msra.mxu0 0
        %891 = vmatprep.subr.bf16.mxu0 0
        %892 = vmatpush2.bf16.msra.mxu0 0
        %893 = vmatprep.subr.bf16.mxu0 0
        %894 = vmatpush2.bf16.msra.mxu0 0
        %895 = vmatprep.subr.bf16.mxu0 0
        %896 = vmatpush2.bf16.msra.mxu0 0
        %897 = vmatprep.subr.bf16.mxu0 0
        %898 = vmatpush2.bf16.msra.mxu0 0
        %899 = vmatprep.subr.bf16.mxu0 0
        %900 = vmatpush2.bf16.msra.mxu0 0
        %901 = vmatprep.mubr.bf16.mxu0 0
        %902 = vmatmul.mubr.bf16.gmra.mxu0 %v814
        %v903 = vpop.f32.mrf.mxu0
        %v904 = vadd.f32 %v819, %v903
        %v905 = vpop.f32.mrf.mxu0
        %v906 = vpop.f32.mrf.mxu0
        %v907 = vpop.f32.mrf.mxu0
        %908 = vdwg.mxu0
        %v909 = vmax.f32 %v904, 0.0
        %v910 = vld [vmem:[#allocation10] sm:$0xff]
        %v911 = vld [vmem:[#allocation10 + $0x8] sm:$0xff]
        %v912 = vld [vmem:[#allocation10 + $0x10] sm:$0xff]
        %v913 = vld [vmem:[#allocation10 + $0x18] sm:$0xff]
        %v914 = vld [vmem:[#allocation10 + $0x20] sm:$0xff]
        %v915 = vld [vmem:[#allocation10 + $0x28] sm:$0xff]
        %v916 = vld [vmem:[#allocation10 + $0x30] sm:$0xff]
        %v917 = vld [vmem:[#allocation10 + $0x38] sm:$0xff]
        %v918 = vld [vmem:[#allocation10 + $0x40] sm:$0xff]
        %v919 = vld [vmem:[#allocation10 + $0x48] sm:$0xff]
        %v920 = vld [vmem:[#allocation10 + $0x50] sm:$0xff]
        %v921 = vld [vmem:[#allocation10 + $0x58] sm:$0xff]
        %v922 = vld [vmem:[#allocation10 + $0x60] sm:$0xff]
        %v923 = vld [vmem:[#allocation10 + $0x68] sm:$0xff]
        %v924 = vld [vmem:[#allocation10 + $0x70] sm:$0xff]
        %v925 = vld [vmem:[#allocation10 + $0x78] sm:$0xff]
        %v926 = vld [vmem:[%s7] sm:$0x3]
        %v927 = vpack.c.bf16 %v909, %v909
        %v929 = vlaneseq
        %v930 = vshrl.u32 %v929, 7
        %v931 = vsub.s32 0, %v930
        %v932 = vrot.slane %v926, %v931
        %v933 = vlaneseq
        %v934 = vshrl.u32 %v933, 7
        %v935 = vsub.s32 1, %v934
        %v936 = vrot.slane %v926, %v935
        %v955 = vunpack.c.l.b16 %v910
        %v956 = vunpack.c.h.b16 %v910
        %v957 = vunpack.c.l.b16 %v911
        %v958 = vunpack.c.h.b16 %v911
        %v959 = vunpack.c.l.b16 %v912
        %v960 = vunpack.c.h.b16 %v912
        %v961 = vunpack.c.l.b16 %v913
        %v962 = vunpack.c.h.b16 %v913
        %v963 = vunpack.c.l.b16 %v914
        %v964 = vunpack.c.h.b16 %v914
        %v965 = vunpack.c.l.b16 %v915
        %v966 = vunpack.c.h.b16 %v915
        %v967 = vunpack.c.l.b16 %v916
        %v968 = vunpack.c.h.b16 %v916
        %v969 = vunpack.c.l.b16 %v917
        %v970 = vunpack.c.h.b16 %v917
        %v971 = vunpack.c.l.b16 %v918
        %v972 = vunpack.c.h.b16 %v918
        %v973 = vunpack.c.l.b16 %v919
        %v974 = vunpack.c.h.b16 %v919
        %v975 = vunpack.c.l.b16 %v920
        %v976 = vunpack.c.h.b16 %v920
        %v977 = vunpack.c.l.b16 %v921
        %v978 = vunpack.c.h.b16 %v921
        %v979 = vunpack.c.l.b16 %v922
        %v980 = vunpack.c.h.b16 %v922
        %v981 = vunpack.c.l.b16 %v923
        %v982 = vunpack.c.h.b16 %v923
        %v983 = vunpack.c.l.b16 %v924
        %v984 = vunpack.c.h.b16 %v924
        %v985 = vunpack.c.l.b16 %v925
        %v986 = vunpack.c.h.b16 %v925
        %v987 = vpack.c.b16 %v957, %v955
        %v988 = vpack.c.b16 %v958, %v956
        %v989 = vpack.c.b16 %v961, %v959
        %v990 = vpack.c.b16 %v962, %v960
        %v991 = vpack.c.b16 %v965, %v963
        %v992 = vpack.c.b16 %v966, %v964
        %v993 = vpack.c.b16 %v969, %v967
        %v994 = vpack.c.b16 %v970, %v968
        %v995 = vpack.c.b16 %v973, %v971
        %v996 = vpack.c.b16 %v974, %v972
        %v997 = vpack.c.b16 %v977, %v975
        %v998 = vpack.c.b16 %v978, %v976
        %v999 = vpack.c.b16 %v981, %v979
        %v1000 = vpack.c.b16 %v982, %v980
        %v1001 = vpack.c.b16 %v985, %v983
        %v1002 = vpack.c.b16 %v986, %v984
        %1019 = vmatprep.subr.bf16.mxu0 %v1002
        %1020 = vmatpush1.bf16.msra.mxu0 %v1001
        %1021 = vmatprep.subr.bf16.mxu0 %v1000
        %1022 = vmatpush1.bf16.msra.mxu0 %v999
        %1023 = vmatprep.subr.bf16.mxu0 %v998
        %1024 = vmatpush1.bf16.msra.mxu0 %v997
        %1025 = vmatprep.subr.bf16.mxu0 %v996
        %1026 = vmatpush1.bf16.msra.mxu0 %v995
        %1027 = vmatprep.subr.bf16.mxu0 %v994
        %1028 = vmatpush1.bf16.msra.mxu0 %v993
        %1029 = vmatprep.subr.bf16.mxu0 %v992
        %1030 = vmatpush1.bf16.msra.mxu0 %v991
        %1031 = vmatprep.subr.bf16.mxu0 %v990
        %1032 = vmatpush1.bf16.msra.mxu0 %v989
        %1033 = vmatprep.subr.bf16.mxu0 %v988
        %1034 = vmatpush1.bf16.msra.mxu0 %v987
        %1035 = vmatprep.subr.bf16.mxu0 0
        %1036 = vmatpush2.bf16.msra.mxu0 0
        %1037 = vmatprep.subr.bf16.mxu0 0
        %1038 = vmatpush2.bf16.msra.mxu0 0
        %1039 = vmatprep.subr.bf16.mxu0 0
        %1040 = vmatpush2.bf16.msra.mxu0 0
        %1041 = vmatprep.subr.bf16.mxu0 0
        %1042 = vmatpush2.bf16.msra.mxu0 0
        %1043 = vmatprep.subr.bf16.mxu0 0
        %1044 = vmatpush2.bf16.msra.mxu0 0
        %1045 = vmatprep.subr.bf16.mxu0 0
        %1046 = vmatpush2.bf16.msra.mxu0 0
        %1047 = vmatprep.subr.bf16.mxu0 0
        %1048 = vmatpush2.bf16.msra.mxu0 0
        %1049 = vmatprep.subr.bf16.mxu0 0
        %1050 = vmatpush2.bf16.msra.mxu0 0
        %1051 = vmatprep.mubr.bf16.mxu0 0
        %1052 = vmatmul.mubr.bf16.gmra.mxu0 %v927
        %v1053 = vpop.f32.mrf.mxu0
        %v1054 = vadd.f32 %v932, %v1053
        %v1055 = vpop.f32.mrf.mxu0
        %v1056 = vadd.f32 %v936, %v1055
        %v1057 = vpop.f32.mrf.mxu0
        %v1058 = vpop.f32.mrf.mxu0
        %1059 = vdwg.mxu0
        %v1060 = vmul.f32 %v1056, 1.442695
        %v1061 = vpow.pop %v1060
        %v1062 = vld [vmem:[%s591] sm:$0xff]
        %v1063 = vmul.f32 %v1061, %v1062
        %v1064 = vadd.f32 %v1054, %v1063
        %1065 = vst [vmem:[%s671] sm:$0xff] %v1064
        %v1066 = vadd.f32 %v1056, 1.0
        %v1067 = vmul.f32 %v1054, %v1054
        %v1068 = vsub.f32 %v1066, %v1067
        %v1069 = vsub.f32 %v1068, %v1061
        %1070 = vadd.xlane.f32.xlu0 %v1069
        %v1071 = vpop.xlane.xlu0 %1070
        %v1072 = vmul.f32 %v1071, -0.5
        %vm1073 = vcmask 7168
        %1074 = vst.msk [vmem:[%s681] sm:$0xff] %vm1073, %v1072
        %v1075 = vld [vmem:[#allocation11] sm:$0xf]
        %v1076 = vld [vmem:[#allocation11 + $0x4] sm:$0xf]
        %v1077 = vld [vmem:[#allocation11 + $0x8] sm:$0xf]
        %v1078 = vld [vmem:[#allocation11 + $0xc] sm:$0xf]
        %v1079 = vld [vmem:[#allocation11 + $0x10] sm:$0xf]
        %v1080 = vld [vmem:[#allocation11 + $0x14] sm:$0xf]
        %v1081 = vld [vmem:[#allocation11 + $0x18] sm:$0xf]
        %v1082 = vld [vmem:[#allocation11 + $0x1c] sm:$0xf]
        %v1083 = vld [vmem:[#allocation11 + $0x20] sm:$0xf]
        %v1084 = vld [vmem:[#allocation11 + $0x24] sm:$0xf]
        %v1085 = vld [vmem:[#allocation11 + $0x28] sm:$0xf]
        %v1086 = vld [vmem:[#allocation11 + $0x2c] sm:$0xf]
        %v1087 = vld [vmem:[#allocation11 + $0x30] sm:$0xf]
        %v1088 = vld [vmem:[#allocation11 + $0x34] sm:$0xf]
        %v1089 = vld [vmem:[#allocation11 + $0x38] sm:$0xf]
        %v1090 = vld [vmem:[#allocation11 + $0x3c] sm:$0xf]
        %v1091 = vld [vmem:[%s9] sm:$0x1]
        %v1092 = vpack.c.bf16 %v1054, %v1054
        %v1094 = vlaneseq
        %v1095 = vshrl.u32 %v1094, 7
        %v1096 = vsub.s32 0, %v1095
        %v1097 = vrot.slane %v1091, %v1096
        %v1115 = vunpack.c.l.b16 %v1075
        %v1116 = vunpack.c.l.b16 %v1076
        %v1117 = vunpack.c.l.b16 %v1077
        %v1118 = vunpack.c.l.b16 %v1078
        %v1119 = vunpack.c.l.b16 %v1079
        %v1120 = vunpack.c.l.b16 %v1080
        %v1121 = vunpack.c.l.b16 %v1081
        %v1122 = vunpack.c.l.b16 %v1082
        %v1123 = vunpack.c.l.b16 %v1083
        %v1124 = vunpack.c.l.b16 %v1084
        %v1125 = vunpack.c.l.b16 %v1085
        %v1126 = vunpack.c.l.b16 %v1086
        %v1127 = vunpack.c.l.b16 %v1087
        %v1128 = vunpack.c.l.b16 %v1088
        %v1129 = vunpack.c.l.b16 %v1089
        %v1130 = vunpack.c.l.b16 %v1090
        %v1131 = vpack.c.b16 %v1116, %v1115
        %v1132 = vpack.c.b16 %v1118, %v1117
        %v1133 = vpack.c.b16 %v1120, %v1119
        %v1134 = vpack.c.b16 %v1122, %v1121
        %v1135 = vpack.c.b16 %v1124, %v1123
        %v1136 = vpack.c.b16 %v1126, %v1125
        %v1137 = vpack.c.b16 %v1128, %v1127
        %v1138 = vpack.c.b16 %v1130, %v1129
        %1147 = vmatprep.subr.bf16.mxu0 0
        %1148 = vmatpush1.bf16.msra.mxu0 %v1138
        %1149 = vmatprep.subr.bf16.mxu0 0
        %1150 = vmatpush1.bf16.msra.mxu0 %v1137
        %1151 = vmatprep.subr.bf16.mxu0 0
        %1152 = vmatpush1.bf16.msra.mxu0 %v1136
        %1153 = vmatprep.subr.bf16.mxu0 0
        %1154 = vmatpush1.bf16.msra.mxu0 %v1135
        %1155 = vmatprep.subr.bf16.mxu0 0
        %1156 = vmatpush1.bf16.msra.mxu0 %v1134
        %1157 = vmatprep.subr.bf16.mxu0 0
        %1158 = vmatpush1.bf16.msra.mxu0 %v1133
        %1159 = vmatprep.subr.bf16.mxu0 0
        %1160 = vmatpush1.bf16.msra.mxu0 %v1132
        %1161 = vmatprep.subr.bf16.mxu0 0
        %1162 = vmatpush1.bf16.msra.mxu0 %v1131
        %1163 = vmatprep.subr.bf16.mxu0 0
        %1164 = vmatpush2.bf16.msra.mxu0 0
        %1165 = vmatprep.subr.bf16.mxu0 0
        %1166 = vmatpush2.bf16.msra.mxu0 0
        %1167 = vmatprep.subr.bf16.mxu0 0
        %1168 = vmatpush2.bf16.msra.mxu0 0
        %1169 = vmatprep.subr.bf16.mxu0 0
        %1170 = vmatpush2.bf16.msra.mxu0 0
        %1171 = vmatprep.subr.bf16.mxu0 0
        %1172 = vmatpush2.bf16.msra.mxu0 0
        %1173 = vmatprep.subr.bf16.mxu0 0
        %1174 = vmatpush2.bf16.msra.mxu0 0
        %1175 = vmatprep.subr.bf16.mxu0 0
        %1176 = vmatpush2.bf16.msra.mxu0 0
        %1177 = vmatprep.subr.bf16.mxu0 0
        %1178 = vmatpush2.bf16.msra.mxu0 0
        %1179 = vmatprep.mubr.bf16.mxu0 0
        %1180 = vmatmul.mubr.bf16.gmra.mxu0 %v1092
        %v1181 = vpop.f32.mrf.mxu0
        %v1182 = vadd.f32 %v1097, %v1181
        %v1183 = vpop.f32.mrf.mxu0
        %v1184 = vpop.f32.mrf.mxu0
        %v1185 = vpop.f32.mrf.mxu0
        %1186 = vdwg.mxu0
        %v1187 = vmax.f32 %v1182, 0.0
        %v1188 = vld [vmem:[#allocation13] sm:$0xf]
        %v1189 = vld [vmem:[#allocation13 + $0x4] sm:$0xf]
        %v1190 = vld [vmem:[#allocation13 + $0x8] sm:$0xf]
        %v1191 = vld [vmem:[#allocation13 + $0xc] sm:$0xf]
        %v1192 = vld [vmem:[#allocation13 + $0x10] sm:$0xf]
        %v1193 = vld [vmem:[#allocation13 + $0x14] sm:$0xf]
        %v1194 = vld [vmem:[#allocation13 + $0x18] sm:$0xf]
        %v1195 = vld [vmem:[#allocation13 + $0x1c] sm:$0xf]
        %v1196 = vld [vmem:[#allocation13 + $0x20] sm:$0xf]
        %v1197 = vld [vmem:[#allocation13 + $0x24] sm:$0xf]
        %v1198 = vld [vmem:[#allocation13 + $0x28] sm:$0xf]
        %v1199 = vld [vmem:[#allocation13 + $0x2c] sm:$0xf]
        %v1200 = vld [vmem:[#allocation13 + $0x30] sm:$0xf]
        %v1201 = vld [vmem:[#allocation13 + $0x34] sm:$0xf]
        %v1202 = vld [vmem:[#allocation13 + $0x38] sm:$0xf]
        %v1203 = vld [vmem:[#allocation13 + $0x3c] sm:$0xf]
        %v1204 = vld [vmem:[%s11] sm:$0x1]
        %v1205 = vpack.c.bf16 %v1187, %v1187
        %v1207 = vlaneseq
        %v1208 = vshrl.u32 %v1207, 7
        %v1209 = vsub.s32 0, %v1208
        %v1210 = vrot.slane %v1204, %v1209
        %v1228 = vunpack.c.l.b16 %v1188
        %v1229 = vunpack.c.l.b16 %v1189
        %v1230 = vunpack.c.l.b16 %v1190
        %v1231 = vunpack.c.l.b16 %v1191
        %v1232 = vunpack.c.l.b16 %v1192
        %v1233 = vunpack.c.l.b16 %v1193
        %v1234 = vunpack.c.l.b16 %v1194
        %v1235 = vunpack.c.l.b16 %v1195
        %v1236 = vunpack.c.l.b16 %v1196
        %v1237 = vunpack.c.l.b16 %v1197
        %v1238 = vunpack.c.l.b16 %v1198
        %v1239 = vunpack.c.l.b16 %v1199
        %v1240 = vunpack.c.l.b16 %v1200
        %v1241 = vunpack.c.l.b16 %v1201
        %v1242 = vunpack.c.l.b16 %v1202
        %v1243 = vunpack.c.l.b16 %v1203
        %v1244 = vpack.c.b16 %v1229, %v1228
        %v1245 = vpack.c.b16 %v1231, %v1230
        %v1246 = vpack.c.b16 %v1233, %v1232
        %v1247 = vpack.c.b16 %v1235, %v1234
        %v1248 = vpack.c.b16 %v1237, %v1236
        %v1249 = vpack.c.b16 %v1239, %v1238
        %v1250 = vpack.c.b16 %v1241, %v1240
        %v1251 = vpack.c.b16 %v1243, %v1242
        %1260 = vmatprep.subr.bf16.mxu0 0
        %1261 = vmatpush1.bf16.msra.mxu0 %v1251
        %1262 = vmatprep.subr.bf16.mxu0 0
        %1263 = vmatpush1.bf16.msra.mxu0 %v1250
        %1264 = vmatprep.subr.bf16.mxu0 0
        %1265 = vmatpush1.bf16.msra.mxu0 %v1249
        %1266 = vmatprep.subr.bf16.mxu0 0
        %1267 = vmatpush1.bf16.msra.mxu0 %v1248
        %1268 = vmatprep.subr.bf16.mxu0 0
        %1269 = vmatpush1.bf16.msra.mxu0 %v1247
        %1270 = vmatprep.subr.bf16.mxu0 0
        %1271 = vmatpush1.bf16.msra.mxu0 %v1246
        %1272 = vmatprep.subr.bf16.mxu0 0
        %1273 = vmatpush1.bf16.msra.mxu0 %v1245
        %1274 = vmatprep.subr.bf16.mxu0 0
        %1275 = vmatpush1.bf16.msra.mxu0 %v1244
        %1276 = vmatprep.subr.bf16.mxu0 0
        %1277 = vmatpush2.bf16.msra.mxu0 0
        %1278 = vmatprep.subr.bf16.mxu0 0
        %1279 = vmatpush2.bf16.msra.mxu0 0
        %1280 = vmatprep.subr.bf16.mxu0 0
        %1281 = vmatpush2.bf16.msra.mxu0 0
        %1282 = vmatprep.subr.bf16.mxu0 0
        %1283 = vmatpush2.bf16.msra.mxu0 0
        %1284 = vmatprep.subr.bf16.mxu0 0
        %1285 = vmatpush2.bf16.msra.mxu0 0
        %1286 = vmatprep.subr.bf16.mxu0 0
        %1287 = vmatpush2.bf16.msra.mxu0 0
        %1288 = vmatprep.subr.bf16.mxu0 0
        %1289 = vmatpush2.bf16.msra.mxu0 0
        %1290 = vmatprep.subr.bf16.mxu0 0
        %1291 = vmatpush2.bf16.msra.mxu0 0
        %1292 = vmatprep.mubr.bf16.mxu0 0
        %1293 = vmatmul.mubr.bf16.gmra.mxu0 %v1205
        %v1294 = vpop.f32.mrf.mxu0
        %v1295 = vadd.f32 %v1210, %v1294
        %v1296 = vpop.f32.mrf.mxu0
        %v1297 = vpop.f32.mrf.mxu0
        %v1298 = vpop.f32.mrf.mxu0
        %1299 = vdwg.mxu0
        %v1300 = vmax.f32 %v1295, 0.0
        %v1301 = vld [vmem:[#allocation14] sm:$0xf]
        %v1302 = vld [vmem:[#allocation14 + $0x4] sm:$0xf]
        %v1303 = vld [vmem:[#allocation14 + $0x8] sm:$0xf]
        %v1304 = vld [vmem:[#allocation14 + $0xc] sm:$0xf]
        %v1305 = vld [vmem:[#allocation14 + $0x10] sm:$0xf]
        %v1306 = vld [vmem:[#allocation14 + $0x14] sm:$0xf]
        %v1307 = vld [vmem:[#allocation14 + $0x18] sm:$0xf]
        %v1308 = vld [vmem:[#allocation14 + $0x1c] sm:$0xf]
        %v1309 = vld [vmem:[#allocation14 + $0x20] sm:$0xf]
        %v1310 = vld [vmem:[#allocation14 + $0x24] sm:$0xf]
        %v1311 = vld [vmem:[#allocation14 + $0x28] sm:$0xf]
        %v1312 = vld [vmem:[#allocation14 + $0x2c] sm:$0xf]
        %v1313 = vld [vmem:[#allocation14 + $0x30] sm:$0xf]
        %v1314 = vld [vmem:[#allocation14 + $0x34] sm:$0xf]
        %v1315 = vld [vmem:[#allocation14 + $0x38] sm:$0xf]
        %v1316 = vld [vmem:[#allocation14 + $0x3c] sm:$0xf]
        %v1317 = vld [vmem:[%s13] sm:$0x1]
        %v1318 = vpack.c.bf16 %v1300, %v1300
        %v1320 = vlaneseq
        %v1321 = vshrl.u32 %v1320, 7
        %v1322 = vsub.s32 0, %v1321
        %v1323 = vrot.slane %v1317, %v1322
        %v1341 = vunpack.c.l.b16 %v1301
        %v1342 = vunpack.c.l.b16 %v1302
        %v1343 = vunpack.c.l.b16 %v1303
        %v1344 = vunpack.c.l.b16 %v1304
        %v1345 = vunpack.c.l.b16 %v1305
        %v1346 = vunpack.c.l.b16 %v1306
        %v1347 = vunpack.c.l.b16 %v1307
        %v1348 = vunpack.c.l.b16 %v1308
        %v1349 = vunpack.c.l.b16 %v1309
        %v1350 = vunpack.c.l.b16 %v1310
        %v1351 = vunpack.c.l.b16 %v1311
        %v1352 = vunpack.c.l.b16 %v1312
        %v1353 = vunpack.c.l.b16 %v1313
        %v1354 = vunpack.c.l.b16 %v1314
        %v1355 = vunpack.c.l.b16 %v1315
        %v1356 = vunpack.c.l.b16 %v1316
        %v1357 = vpack.c.b16 %v1342, %v1341
        %v1358 = vpack.c.b16 %v1344, %v1343
        %v1359 = vpack.c.b16 %v1346, %v1345
        %v1360 = vpack.c.b16 %v1348, %v1347
        %v1361 = vpack.c.b16 %v1350, %v1349
        %v1362 = vpack.c.b16 %v1352, %v1351
        %v1363 = vpack.c.b16 %v1354, %v1353
        %v1364 = vpack.c.b16 %v1356, %v1355
        %1373 = vmatprep.subr.bf16.mxu0 0
        %1374 = vmatpush1.bf16.msra.mxu0 %v1364
        %1375 = vmatprep.subr.bf16.mxu0 0
        %1376 = vmatpush1.bf16.msra.mxu0 %v1363
        %1377 = vmatprep.subr.bf16.mxu0 0
        %1378 = vmatpush1.bf16.msra.mxu0 %v1362
        %1379 = vmatprep.subr.bf16.mxu0 0
        %1380 = vmatpush1.bf16.msra.mxu0 %v1361
        %1381 = vmatprep.subr.bf16.mxu0 0
        %1382 = vmatpush1.bf16.msra.mxu0 %v1360
        %1383 = vmatprep.subr.bf16.mxu0 0
        %1384 = vmatpush1.bf16.msra.mxu0 %v1359
        %1385 = vmatprep.subr.bf16.mxu0 0
        %1386 = vmatpush1.bf16.msra.mxu0 %v1358
        %1387 = vmatprep.subr.bf16.mxu0 0
        %1388 = vmatpush1.bf16.msra.mxu0 %v1357
        %1389 = vmatprep.subr.bf16.mxu0 0
        %1390 = vmatpush2.bf16.msra.mxu0 0
        %1391 = vmatprep.subr.bf16.mxu0 0
        %1392 = vmatpush2.bf16.msra.mxu0 0
        %1393 = vmatprep.subr.bf16.mxu0 0
        %1394 = vmatpush2.bf16.msra.mxu0 0
        %1395 = vmatprep.subr.bf16.mxu0 0
        %1396 = vmatpush2.bf16.msra.mxu0 0
        %1397 = vmatprep.subr.bf16.mxu0 0
        %1398 = vmatpush2.bf16.msra.mxu0 0
        %1399 = vmatprep.subr.bf16.mxu0 0
        %1400 = vmatpush2.bf16.msra.mxu0 0
        %1401 = vmatprep.subr.bf16.mxu0 0
        %1402 = vmatpush2.bf16.msra.mxu0 0
        %1403 = vmatprep.subr.bf16.mxu0 0
        %1404 = vmatpush2.bf16.msra.mxu0 0
        %1405 = vmatprep.mubr.bf16.mxu0 0
        %1406 = vmatmul.mubr.bf16.gmra.mxu0 %v1318
        %v1407 = vpop.f32.mrf.mxu0
        %v1408 = vadd.f32 %v1323, %v1407
        %v1409 = vpop.f32.mrf.mxu0
        %v1410 = vpop.f32.mrf.mxu0
        %v1411 = vpop.f32.mrf.mxu0
        %1412 = vdwg.mxu0
        %1413 = vst [vmem:[%s664] sm:$0xff] %v1408
        %s1414 = sand.u32 %s355, 1
        %s1415 = scalar_lea.sflag [#allocation4], %s1414
        %s1416 = sand.u32 %s355, 1
        %s1417 = smul.addr %s1416, 8
        %s1418 = scalar_lea.vmem [#allocation16], %s1417
        %s1419 = sand.u32 %s381, 1
        %s1420 = scalar_lea.sflag [#allocation18], %s1419
        %s1421 = sand.u32 %s381, 1
        %s1422 = smul.addr %s1421, 8
        %s1423 = scalar_lea.vmem [#allocation17], %s1422
        %p1424 = scmp.lt.s32.totalorder %s43, 1
        %s1425 = scalar_select %p1424, %s43, 1
        %s1426 = smul.addr %s1425, 8
        %s1427 = scalar_lea.vmem %s16, %s1426
        // Predicated region
        $region109: #{tpu_custom_call.1} parent=75 // pred_check
          %p1428 = pneg %p365
        $region110: #{tpu_custom_call.1} parent=75 // pred_check_branch
          %1430 = sbr.rel (%p1428) target = $region112
        $region111: #{tpu_custom_call.1} parent=75 // pred_region
          %s1432 = ssub.s32 128, 128
          %1433 = vsyncadd %s1415, %s1432
          %s1434 = smul.addr %s43, 128
          %s1435 = scalar_lea.hbm %s14, %s1434
          %s1437 = sshll.u32 %s1418, 4
          %s1438 = int_to_ptr.vmem [resolvable:$true] %s1437
          %1440 = dma.vmem_to_hbm [thread:$0]  %s1438, 128, %s1435, %s1415
        $region112: #{tpu_custom_call.1} parent=75 // pred_fallthru
          _
        // Predicated region
        $region113: #{tpu_custom_call.1} parent=75 // pred_check
          %p1441 = pneg %p391
        $region114: #{tpu_custom_call.1} parent=75 // pred_check_branch
          %1443 = sbr.rel (%p1441) target = $region116
        $region115: #{tpu_custom_call.1} parent=75 // pred_region
          %s1445 = ssub.s32 128, 128
          %1446 = vsyncadd %s1420, %s1445
          %s1447 = smul.addr %s43, 128
          %s1448 = scalar_lea.hbm %s15, %s1447
          %s1450 = sshll.u32 %s1423, 4
          %s1451 = int_to_ptr.vmem [resolvable:$true] %s1450
          %1453 = dma.vmem_to_hbm [thread:$0]  %s1451, 128, %s1448, %s1420
        $region116: #{tpu_custom_call.1} parent=75 // pred_fallthru
          _
        // Predicated region
        $region117: #{tpu_custom_call.1} parent=75 // pred_check
          %p1454 = pneg %p417
        $region118: #{tpu_custom_call.1} parent=75 // pred_check_branch
          %1456 = sbr.rel (%p1454) target = $region120
        $region119: #{tpu_custom_call.1} parent=75 // pred_region
          _
        $region120: #{tpu_custom_call.1} parent=75 // pred_fallthru
          _
      $region76: #{tpu_custom_call.1} parent=5 // pred_fallthru
        _
      %p1457 = scmp.le.s32.totalorder 2, %s38
      // Predicated region
      $region121: #{tpu_custom_call.1} parent=5 // pred_check
        %p1458 = pneg %p1457
      $region122: #{tpu_custom_call.1} parent=5 // pred_check_branch
        %1460 = sbr.rel (%p1458) target = $region124
      $region123: #{tpu_custom_call.1} parent=5 // pred_region
        %s1461 = ssub.s32 %s38, 2
        // Predicated region
        $region125: #{tpu_custom_call.1} parent=123 // pred_check
          %p1462 = pneg %p371
        $region126: #{tpu_custom_call.1} parent=123 // pred_check_branch
          %1464 = sbr.rel (%p1462) target = $region128
        $region127: #{tpu_custom_call.1} parent=123 // pred_region
          %s1465 = sand.u32 %s356, 1
          %s1466 = scalar_lea.sflag [#allocation4], %s1465
          %s1467 = sand.u32 %s356, 1
          %s1468 = smul.addr %s1467, 8
          %s1469 = scalar_lea.vmem [#allocation16], %s1468
          %1470 = dma.done %s1466, 128
        $region128: #{tpu_custom_call.1} parent=123 // pred_fallthru
          _
        // Predicated region
        $region129: #{tpu_custom_call.1} parent=123 // pred_check
          %p1471 = pneg %p397
        $region130: #{tpu_custom_call.1} parent=123 // pred_check_branch
          %1473 = sbr.rel (%p1471) target = $region132
        $region131: #{tpu_custom_call.1} parent=123 // pred_region
          %s1474 = sand.u32 %s382, 1
          %s1475 = scalar_lea.sflag [#allocation18], %s1474
          %s1476 = sand.u32 %s382, 1
          %s1477 = smul.addr %s1476, 8
          %s1478 = scalar_lea.vmem [#allocation17], %s1477
          %1479 = dma.done %s1475, 128
        $region132: #{tpu_custom_call.1} parent=123 // pred_fallthru
          _
        // Predicated region
        $region133: #{tpu_custom_call.1} parent=123 // pred_check
          %p1480 = pneg %p423
        $region134: #{tpu_custom_call.1} parent=123 // pred_check_branch
          %1482 = sbr.rel (%p1480) target = $region136
        $region135: #{tpu_custom_call.1} parent=123 // pred_region
          %p1483 = scmp.lt.s32.totalorder %s44, 1
          %s1484 = scalar_select %p1483, %s44, 1
          %s1485 = smul.addr %s1484, 8
          %s1486 = scalar_lea.vmem %s16, %s1485
        $region136: #{tpu_custom_call.1} parent=123 // pred_fallthru
          _
      $region124: #{tpu_custom_call.1} parent=5 // pred_fallthru
        _
    $region6: #{tpu_custom_call.1} parent=1 // loop_footer
      %s42 = sadd.s32 1, %s38
    $region7: #{tpu_custom_call.1} parent=1 // loop_footer_branch
      %37 = sbr.rel target = $region3
    $region8: #{tpu_custom_call.1} parent=1 // loop_exit
      _
    %1487 = vsyncpa [#allocation3], 1
    %s1488 = scalar_lea.sflag [#allocation3], 1
    %1489 = vsyncpa %s1488, 1
    %1490 = vsyncpa [#allocation6], 1
    %s1491 = scalar_lea.sflag [#allocation6], 1
    %1492 = vsyncpa %s1491, 1
    %1493 = vsyncpa [#allocation9], 1
    %1494 = vsyncpa [#allocation12], 1
    %1495 = vsyncpa [#allocation15], 1
    %1496 = vsyncpa [#allocation4], 1
    %s1497 = scalar_lea.sflag [#allocation4], 1
    %1498 = vsyncpa %s1497, 1
    %1499 = vsyncpa [#allocation18], 1
    %s1500 = scalar_lea.sflag [#allocation18], 1
    %1501 = vsyncpa %s1500, 1

// kernel: tpu_custom_call.1
$region0: #{tpu_custom_call.1}
  #allocation0 [shape = 'u32[]', space=smem, size = 0x4, offset = 0x4, fixed_abs, tag = 'smem constant byte address 0x4 - core index']
  #allocation1 [shape = 'u32[144,128]{1,0:T(1,128)}', space=vmem, size = 0x12000, scoped, tag = 'internal scratch']
  %s0 = inlined_call_operand.hbm [shape: f32[16,128], index: 0, kind: input, shape index: {}]
  %s1 = inlined_call_operand.hbm [shape: f32[16,128], index: 1, kind: input, shape index: {}]
  %s2 = inlined_call_operand.hbm [shape: bf16[128,128], index: 2, kind: input, shape index: {}]
  %s3 = inlined_call_operand.vmem [shape: f32[1,128], index: 3, kind: input, shape index: {}]
  %s4 = inlined_call_operand.hbm [shape: bf16[128,128], index: 4, kind: input, shape index: {}]
  %s5 = inlined_call_operand.vmem [shape: f32[1,128], index: 5, kind: input, shape index: {}]
  %s6 = inlined_call_operand.hbm [shape: bf16[128,256], index: 6, kind: input, shape index: {}]
  %s7 = inlined_call_operand.vmem [shape: f32[1,256], index: 7, kind: input, shape index: {}]
  %s8 = inlined_call_operand.hbm [shape: bf16[128,128], index: 8, kind: input, shape index: {}]
  %s9 = inlined_call_operand.vmem [shape: f32[1,128], index: 9, kind: input, shape index: {}]
  %s10 = inlined_call_operand.hbm [shape: bf16[128,128], index: 10, kind: input, shape index: {}]
  %s11 = inlined_call_operand.vmem [shape: f32[1,128], index: 11, kind: input, shape index: {}]
  %s12 = inlined_call_operand.hbm [shape: bf16[128,128], index: 12, kind: input, shape index: {}]
  %s13 = inlined_call_operand.vmem [shape: f32[1,128], index: 13, kind: input, shape index: {}]
  %s14 = inlined_call_operand.hbm [shape: f32[16,128], index: 14, kind: output, shape index: {0}]
  %s15 = inlined_call_operand.hbm [shape: f32[16,128], index: 15, kind: output, shape index: {1}]
  %s16 = inlined_call_operand.vmem [shape: f32[16,1], index: 16, kind: output, shape index: {2}]
  %17 = xla_tuple %s14, %s15, %s16
  %s18 = sld [smem:[#allocation0]]
  $region137: #{tpu_custom_call.1} parent=0
    _
  %s20 = ssub.s32 1, %s18
  %s21 = scalar_select 0, %s20, %s18
  $region1: #{tpu_custom_call.1} parent=0
    #allocation2 [shape = 'u8[8192]{0}', space=vmem, size = 0x2000, scoped, tag = 'input window, operand 0']
    #allocation3 [shape = 's32[2]{0}', space=sflag, size = 0x8, scoped, tag = 'scoped memory for tpu_custom_call.1']
    #allocation4 [shape = 's32[2]{0}', space=sflag, size = 0x8, scoped, tag = 'scoped memory for tpu_custom_call.1']
    #allocation5 [shape = 'u8[8192]{0}', space=vmem, size = 0x2000, scoped, tag = 'input window, operand 1']
    #allocation6 [shape = 's32[2]{0}', space=sflag, size = 0x8, scoped, tag = 'scoped memory for tpu_custom_call.1']
    #allocation7 [shape = 'u8[32768]{0}', space=vmem, size = 0x8000, scoped, tag = 'input window, operand 2, single buffered']
    #allocation8 [shape = 'u8[32768]{0}', space=vmem, size = 0x8000, scoped, tag = 'input window, operand 4, single buffered']
    #allocation9 [shape = 's32[1]{0}', space=sflag, size = 0x4, scoped, tag = 'scoped memory for tpu_custom_call.1']
    #allocation10 [shape = 'u8[65536]{0}', space=vmem, size = 0x10000, scoped, tag = 'input window, operand 6, single buffered']
    #allocation11 [shape = 'u8[32768]{0}', space=vmem, size = 0x8000, scoped, tag = 'input window, operand 8, single buffered']
    #allocation12 [shape = 's32[1]{0}', space=sflag, size = 0x4, scoped, tag = 'scoped memory for tpu_custom_call.1']
    #allocation13 [shape = 'u8[32768]{0}', space=vmem, size = 0x8000, scoped, tag = 'input window, operand 10, single buffered']
    #allocation14 [shape = 'u8[32768]{0}', space=vmem, size = 0x8000, scoped, tag = 'input window, operand 12, single buffered']
    #allocation15 [shape = 's32[1]{0}', space=sflag, size = 0x4, scoped, tag = 'scoped memory for tpu_custom_call.1']
    #allocation16 [shape = 'u8[8192]{0}', space=vmem, size = 0x2000, scoped, tag = 'output window, operand 0']
    #allocation17 [shape = 'u8[8192]{0}', space=vmem, size = 0x2000, scoped, tag = 'output window, operand 1']
    #allocation18 [shape = 's32[2]{0}', space=sflag, size = 0x8, scoped, tag = 'scoped memory for tpu_custom_call.1']
    %22 = vsyncpa [#allocation3], 0
    %s23 = scalar_lea.sflag [#allocation3], 1
    %24 = vsyncpa %s23, 0
    %25 = vsyncpa [#allocation6], 0
    %s26 = scalar_lea.sflag [#allocation6], 1
    %27 = vsyncpa %s26, 0
    %28 = vsyncpa [#allocation9], 0
    %29 = vsyncpa [#allocation12], 0
    %30 = vsyncpa [#allocation15], 0
    %31 = vsyncpa [#allocation4], 0
    %s32 = scalar_lea.sflag [#allocation4], 1
    %33 = vsyncpa %s32, 0
    %34 = vsyncpa [#allocation18], 0
    %s35 = scalar_lea.sflag [#allocation18], 1
    %36 = vsyncpa %s35, 0
    loop: start=0, step=1, limit=4
    $region2: #{tpu_custom_call.1} parent=1 // loop_pre_header
      _
    $region3: #{tpu_custom_call.1} parent=1 // loop_header
      %s38 = sphi 0, %s42
      %p39 = scmp.ge.s32.totalorder %s38, 4
      %s48 = sphi 0, %s50
      %s51 = sphi 0, %s48
      %s52 = sphi 0, %s51
      %s68 = sphi 0, %s52
      %s74 = sphi 0, %s76
      %s77 = sphi 0, %s74
      %s78 = sphi 0, %s77
      %s94 = sphi 0, %s78
      %s98 = sphi 0, %s98
      %s100 = sphi 0, %s98
      %s101 = sphi 0, %s100
      %s115 = sphi 0, %s101
      %s119 = sphi 0, %s119
      %s121 = sphi 0, %s119
      %s122 = sphi 0, %s121
      %s136 = sphi 0, %s122
      %s140 = sphi 0, %s140
      %s142 = sphi 0, %s140
      %s143 = sphi 0, %s142
      %s157 = sphi 0, %s143
      %s161 = sphi 0, %s161
      %s163 = sphi 0, %s161
      %s164 = sphi 0, %s163
      %s178 = sphi 0, %s164
      %s182 = sphi 0, %s182
      %s184 = sphi 0, %s182
      %s185 = sphi 0, %s184
      %s199 = sphi 0, %s185
      %s203 = sphi 0, %s203
      %s205 = sphi 0, %s203
      %s206 = sphi 0, %s205
      %s220 = sphi 0, %s206
      %s224 = sphi 0, %s224
      %s226 = sphi 0, %s224
      %s227 = sphi 0, %s226
      %s241 = sphi 0, %s227
      %s245 = sphi 0, %s245
      %s247 = sphi 0, %s245
      %s248 = sphi 0, %s247
      %s262 = sphi 0, %s248
      %s266 = sphi 0, %s266
      %s268 = sphi 0, %s266
      %s269 = sphi 0, %s268
      %s283 = sphi 0, %s269
      %s287 = sphi 0, %s287
      %s289 = sphi 0, %s287
      %s290 = sphi 0, %s289
      %s304 = sphi 0, %s290
      %s308 = sphi 0, %s308
      %s310 = sphi 0, %s308
      %s311 = sphi 0, %s310
      %s325 = sphi 0, %s311
      %s329 = sphi 0, %s329
      %s331 = sphi 0, %s329
      %s332 = sphi 0, %s331
      %s346 = sphi 0, %s332
      %s352 = sphi 0, %s354
      %s355 = sphi 0, %s352
      %s356 = sphi 0, %s355
      %s372 = sphi 0, %s356
      %s378 = sphi 0, %s380
      %s381 = sphi 0, %s378
      %s382 = sphi 0, %s381
      %s398 = sphi 0, %s382
      %s404 = sphi 0, %s406
      %s407 = sphi 0, %s404
      %s408 = sphi 0, %s407
      %s424 = sphi 0, %s408
    $region4: #{tpu_custom_call.1} parent=1 // loop_header_branch
      %41 = sbr.rel (%p39) target = $region8
    $region5: #{tpu_custom_call.1} parent=1 // loop_body
      %s43 = ssub.s32 %s38, 1
      %s44 = ssub.s32 %s38, 2
      %s45 = sadd.s32 %s38, 1
      %s46 = ssub.s32 %s38, %s45
      %p47 = scmp.eq.s32.totalorder %s46, 0
      %s49 = sadd.s32 %s48, 1
      %s50 = scalar_select %p47, %s48, %s49
      %p53 = pneg %p47
      %p54 = scmp.eq.s32.totalorder %s38, 1
      %p55 = por %p53, %p54
      %p56 = scmp.ne.s32.totalorder %s48, %s51
      %p57 = scmp.eq.s32.totalorder %s38, 0
      %p58 = por %p56, %p57
      %p59 = scmp.ne.s32.totalorder %s48, %s51
      %p60 = scmp.eq.s32.totalorder %s43, 1
      %p61 = por %p59, %p60
      %p62 = scmp.ne.s32.totalorder %s51, %s52
      %p63 = scmp.eq.s32.totalorder %s43, 0
      %p64 = por %p62, %p63
      %p65 = scmp.ne.s32.totalorder %s51, %s52
      %p66 = scmp.eq.s32.totalorder %s44, 1
      %p67 = por %p65, %p66
      %p69 = scmp.ne.s32.totalorder %s52, %s68
      %p70 = scmp.eq.s32.totalorder %s44, 0
      %p71 = por %p69, %p70
      %s72 = ssub.s32 %s38, %s45
      %p73 = scmp.eq.s32.totalorder %s72, 0
      %s75 = sadd.s32 %s74, 1
      %s76 = scalar_select %p73, %s74, %s75
      %p79 = pneg %p73
      %p80 = scmp.eq.s32.totalorder %s38, 1
      %p81 = por %p79, %p80
      %p82 = scmp.ne.s32.totalorder %s74, %s77
      %p83 = scmp.eq.s32.totalorder %s38, 0
      %p84 = por %p82, %p83
      %p85 = scmp.ne.s32.totalorder %s74, %s77
      %p86 = scmp.eq.s32.totalorder %s43, 1
      %p87 = por %p85, %p86
      %p88 = scmp.ne.s32.totalorder %s77, %s78
      %p89 = scmp.eq.s32.totalorder %s43, 0
      %p90 = por %p88, %p89
      %p91 = scmp.ne.s32.totalorder %s77, %s78
      %p92 = scmp.eq.s32.totalorder %s44, 1
      %p93 = por %p91, %p92
      %p95 = scmp.ne.s32.totalorder %s78, %s94
      %p96 = scmp.eq.s32.totalorder %s44, 0
      %p97 = por %p95, %p96
      %s99 = sadd.s32 %s98, 1
      %p102 = scmp.eq.s32.totalorder %s38, 1
      %p103 = scmp.ne.s32.totalorder %s98, %s100
      %p104 = scmp.eq.s32.totalorder %s38, 0
      %p105 = por %p103, %p104
      %p106 = scmp.ne.s32.totalorder %s98, %s100
      %p107 = scmp.eq.s32.totalorder %s43, 1
      %p108 = por %p106, %p107
      %p109 = scmp.ne.s32.totalorder %s100, %s101
      %p110 = scmp.eq.s32.totalorder %s43, 0
      %p111 = por %p109, %p110
      %p112 = scmp.ne.s32.totalorder %s100, %s101
      %p113 = scmp.eq.s32.totalorder %s44, 1
      %p114 = por %p112, %p113
      %p116 = scmp.ne.s32.totalorder %s101, %s115
      %p117 = scmp.eq.s32.totalorder %s44, 0
      %p118 = por %p116, %p117
      %s120 = sadd.s32 %s119, 1
      %p123 = scmp.eq.s32.totalorder %s38, 1
      %p124 = scmp.ne.s32.totalorder %s119, %s121
      %p125 = scmp.eq.s32.totalorder %s38, 0
      %p126 = por %p124, %p125
      %p127 = scmp.ne.s32.totalorder %s119, %s121
      %p128 = scmp.eq.s32.totalorder %s43, 1
      %p129 = por %p127, %p128
      %p130 = scmp.ne.s32.totalorder %s121, %s122
      %p131 = scmp.eq.s32.totalorder %s43, 0
      %p132 = por %p130, %p131
      %p133 = scmp.ne.s32.totalorder %s121, %s122
      %p134 = scmp.eq.s32.totalorder %s44, 1
      %p135 = por %p133, %p134
      %p137 = scmp.ne.s32.totalorder %s122, %s136
      %p138 = scmp.eq.s32.totalorder %s44, 0
      %p139 = por %p137, %p138
      %s141 = sadd.s32 %s140, 1
      %p144 = scmp.eq.s32.totalorder %s38, 1
      %p145 = scmp.ne.s32.totalorder %s140, %s142
      %p146 = scmp.eq.s32.totalorder %s38, 0
      %p147 = por %p145, %p146
      %p148 = scmp.ne.s32.totalorder %s140, %s142
      %p149 = scmp.eq.s32.totalorder %s43, 1
      %p150 = por %p148, %p149
      %p151 = scmp.ne.s32.totalorder %s142, %s143
      %p152 = scmp.eq.s32.totalorder %s43, 0
      %p153 = por %p151, %p152
      %p154 = scmp.ne.s32.totalorder %s142, %s143
      %p155 = scmp.eq.s32.totalorder %s44, 1
      %p156 = por %p154, %p155
      %p158 = scmp.ne.s32.totalorder %s143, %s157
      %p159 = scmp.eq.s32.totalorder %s44, 0
      %p160 = por %p158, %p159
      %s162 = sadd.s32 %s161, 1
      %p165 = scmp.eq.s32.totalorder %s38, 1
      %p166 = scmp.ne.s32.totalorder %s161, %s163
      %p167 = scmp.eq.s32.totalorder %s38, 0
      %p168 = por %p166, %p167
      %p169 = scmp.ne.s32.totalorder %s161, %s163
      %p170 = scmp.eq.s32.totalorder %s43, 1
      %p171 = por %p169, %p170
      %p172 = scmp.ne.s32.totalorder %s163, %s164
      %p173 = scmp.eq.s32.totalorder %s43, 0
      %p174 = por %p172, %p173
      %p175 = scmp.ne.s32.totalorder %s163, %s164
      %p176 = scmp.eq.s32.totalorder %s44, 1
      %p177 = por %p175, %p176
      %p179 = scmp.ne.s32.totalorder %s164, %s178
      %p180 = scmp.eq.s32.totalorder %s44, 0
      %p181 = por %p179, %p180
      %s183 = sadd.s32 %s182, 1
      %p186 = scmp.eq.s32.totalorder %s38, 1
      %p187 = scmp.ne.s32.totalorder %s182, %s184
      %p188 = scmp.eq.s32.totalorder %s38, 0
      %p189 = por %p187, %p188
      %p190 = scmp.ne.s32.totalorder %s182, %s184
      %p191 = scmp.eq.s32.totalorder %s43, 1
      %p192 = por %p190, %p191
      %p193 = scmp.ne.s32.totalorder %s184, %s185
      %p194 = scmp.eq.s32.totalorder %s43, 0
      %p195 = por %p193, %p194
      %p196 = scmp.ne.s32.totalorder %s184, %s185
      %p197 = scmp.eq.s32.totalorder %s44, 1
      %p198 = por %p196, %p197
      %p200 = scmp.ne.s32.totalorder %s185, %s199
      %p201 = scmp.eq.s32.totalorder %s44, 0
      %p202 = por %p200, %p201
      %s204 = sadd.s32 %s203, 1
      %p207 = scmp.eq.s32.totalorder %s38, 1
      %p208 = scmp.ne.s32.totalorder %s203, %s205
      %p209 = scmp.eq.s32.totalorder %s38, 0
      %p210 = por %p208, %p209
      %p211 = scmp.ne.s32.totalorder %s203, %s205
      %p212 = scmp.eq.s32.totalorder %s43, 1
      %p213 = por %p211, %p212
      %p214 = scmp.ne.s32.totalorder %s205, %s206
      %p215 = scmp.eq.s32.totalorder %s43, 0
      %p216 = por %p214, %p215
      %p217 = scmp.ne.s32.totalorder %s205, %s206
      %p218 = scmp.eq.s32.totalorder %s44, 1
      %p219 = por %p217, %p218
      %p221 = scmp.ne.s32.totalorder %s206, %s220
      %p222 = scmp.eq.s32.totalorder %s44, 0
      %p223 = por %p221, %p222
      %s225 = sadd.s32 %s224, 1
      %p228 = scmp.eq.s32.totalorder %s38, 1
      %p229 = scmp.ne.s32.totalorder %s224, %s226
      %p230 = scmp.eq.s32.totalorder %s38, 0
      %p231 = por %p229, %p230
      %p232 = scmp.ne.s32.totalorder %s224, %s226
      %p233 = scmp.eq.s32.totalorder %s43, 1
      %p234 = por %p232, %p233
      %p235 = scmp.ne.s32.totalorder %s226, %s227
      %p236 = scmp.eq.s32.totalorder %s43, 0
      %p237 = por %p235, %p236
      %p238 = scmp.ne.s32.totalorder %s226, %s227
      %p239 = scmp.eq.s32.totalorder %s44, 1
      %p240 = por %p238, %p239
      %p242 = scmp.ne.s32.totalorder %s227, %s241
      %p243 = scmp.eq.s32.totalorder %s44, 0
      %p244 = por %p242, %p243
      %s246 = sadd.s32 %s245, 1
      %p249 = scmp.eq.s32.totalorder %s38, 1
      %p250 = scmp.ne.s32.totalorder %s245, %s247
      %p251 = scmp.eq.s32.totalorder %s38, 0
      %p252 = por %p250, %p251
      %p253 = scmp.ne.s32.totalorder %s245, %s247
      %p254 = scmp.eq.s32.totalorder %s43, 1
      %p255 = por %p253, %p254
      %p256 = scmp.ne.s32.totalorder %s247, %s248
      %p257 = scmp.eq.s32.totalorder %s43, 0
      %p258 = por %p256, %p257
      %p259 = scmp.ne.s32.totalorder %s247, %s248
      %p260 = scmp.eq.s32.totalorder %s44, 1
      %p261 = por %p259, %p260
      %p263 = scmp.ne.s32.totalorder %s248, %s262
      %p264 = scmp.eq.s32.totalorder %s44, 0
      %p265 = por %p263, %p264
      %s267 = sadd.s32 %s266, 1
      %p270 = scmp.eq.s32.totalorder %s38, 1
      %p271 = scmp.ne.s32.totalorder %s266, %s268
      %p272 = scmp.eq.s32.totalorder %s38, 0
      %p273 = por %p271, %p272
      %p274 = scmp.ne.s32.totalorder %s266, %s268
      %p275 = scmp.eq.s32.totalorder %s43, 1
      %p276 = por %p274, %p275
      %p277 = scmp.ne.s32.totalorder %s268, %s269
      %p278 = scmp.eq.s32.totalorder %s43, 0
      %p279 = por %p277, %p278
      %p280 = scmp.ne.s32.totalorder %s268, %s269
      %p281 = scmp.eq.s32.totalorder %s44, 1
      %p282 = por %p280, %p281
      %p284 = scmp.ne.s32.totalorder %s269, %s283
      %p285 = scmp.eq.s32.totalorder %s44, 0
      %p286 = por %p284, %p285
      %s288 = sadd.s32 %s287, 1
      %p291 = scmp.eq.s32.totalorder %s38, 1
      %p292 = scmp.ne.s32.totalorder %s287, %s289
      %p293 = scmp.eq.s32.totalorder %s38, 0
      %p294 = por %p292, %p293
      %p295 = scmp.ne.s32.totalorder %s287, %s289
      %p296 = scmp.eq.s32.totalorder %s43, 1
      %p297 = por %p295, %p296
      %p298 = scmp.ne.s32.totalorder %s289, %s290
      %p299 = scmp.eq.s32.totalorder %s43, 0
      %p300 = por %p298, %p299
      %p301 = scmp.ne.s32.totalorder %s289, %s290
      %p302 = scmp.eq.s32.totalorder %s44, 1
      %p303 = por %p301, %p302
      %p305 = scmp.ne.s32.totalorder %s290, %s304
      %p306 = scmp.eq.s32.totalorder %s44, 0
      %p307 = por %p305, %p306
      %s309 = sadd.s32 %s308, 1
      %p312 = scmp.eq.s32.totalorder %s38, 1
      %p313 = scmp.ne.s32.totalorder %s308, %s310
      %p314 = scmp.eq.s32.totalorder %s38, 0
      %p315 = por %p313, %p314
      %p316 = scmp.ne.s32.totalorder %s308, %s310
      %p317 = scmp.eq.s32.totalorder %s43, 1
      %p318 = por %p316, %p317
      %p319 = scmp.ne.s32.totalorder %s310, %s311
      %p320 = scmp.eq.s32.totalorder %s43, 0
      %p321 = por %p319, %p320
      %p322 = scmp.ne.s32.totalorder %s310, %s311
      %p323 = scmp.eq.s32.totalorder %s44, 1
      %p324 = por %p322, %p323
      %p326 = scmp.ne.s32.totalorder %s311, %s325
      %p327 = scmp.eq.s32.totalorder %s44, 0
      %p328 = por %p326, %p327
      %s330 = sadd.s32 %s329, 1
      %p333 = scmp.eq.s32.totalorder %s38, 1
      %p334 = scmp.ne.s32.totalorder %s329, %s331
      %p335 = scmp.eq.s32.totalorder %s38, 0
      %p336 = por %p334, %p335
      %p337 = scmp.ne.s32.totalorder %s329, %s331
      %p338 = scmp.eq.s32.totalorder %s43, 1
      %p339 = por %p337, %p338
      %p340 = scmp.ne.s32.totalorder %s331, %s332
      %p341 = scmp.eq.s32.totalorder %s43, 0
      %p342 = por %p340, %p341
      %p343 = scmp.ne.s32.totalorder %s331, %s332
      %p344 = scmp.eq.s32.totalorder %s44, 1
      %p345 = por %p343, %p344
      %p347 = scmp.ne.s32.totalorder %s332, %s346
      %p348 = scmp.eq.s32.totalorder %s44, 0
      %p349 = por %p347, %p348
      %s350 = ssub.s32 %s38, %s45
      %p351 = scmp.eq.s32.totalorder %s350, 0
      %s353 = sadd.s32 %s352, 1
      %s354 = scalar_select %p351, %s352, %s353
      %p357 = pneg %p351
      %p358 = scmp.eq.s32.totalorder %s38, 1
      %p359 = por %p357, %p358
      %p360 = scmp.ne.s32.totalorder %s352, %s355
      %p361 = scmp.eq.s32.totalorder %s38, 0
      %p362 = por %p360, %p361
      %p363 = scmp.ne.s32.totalorder %s352, %s355
      %p364 = scmp.eq.s32.totalorder %s43, 1
      %p365 = por %p363, %p364
      %p366 = scmp.ne.s32.totalorder %s355, %s356
      %p367 = scmp.eq.s32.totalorder %s43, 0
      %p368 = por %p366, %p367
      %p369 = scmp.ne.s32.totalorder %s355, %s356
      %p370 = scmp.eq.s32.totalorder %s44, 1
      %p371 = por %p369, %p370
      %p373 = scmp.ne.s32.totalorder %s356, %s372
      %p374 = scmp.eq.s32.totalorder %s44, 0
      %p375 = por %p373, %p374
      %s376 = ssub.s32 %s38, %s45
      %p377 = scmp.eq.s32.totalorder %s376, 0
      %s379 = sadd.s32 %s378, 1
      %s380 = scalar_select %p377, %s378, %s379
      %p383 = pneg %p377
      %p384 = scmp.eq.s32.totalorder %s38, 1
      %p385 = por %p383, %p384
      %p386 = scmp.ne.s32.totalorder %s378, %s381
      %p387 = scmp.eq.s32.totalorder %s38, 0
      %p388 = por %p386, %p387
      %p389 = scmp.ne.s32.totalorder %s378, %s381
      %p390 = scmp.eq.s32.totalorder %s43, 1
      %p391 = por %p389, %p390
      %p392 = scmp.ne.s32.totalorder %s381, %s382
      %p393 = scmp.eq.s32.totalorder %s43, 0
      %p394 = por %p392, %p393
      %p395 = scmp.ne.s32.totalorder %s381, %s382
      %p396 = scmp.eq.s32.totalorder %s44, 1
      %p397 = por %p395, %p396
      %p399 = scmp.ne.s32.totalorder %s382, %s398
      %p400 = scmp.eq.s32.totalorder %s44, 0
      %p401 = por %p399, %p400
      %s402 = ssub.s32 %s38, %s45
      %p403 = scmp.eq.s32.totalorder %s402, 0
      %s405 = sadd.s32 %s404, 1
      %s406 = scalar_select %p403, %s404, %s405
      %p409 = pneg %p403
      %p410 = scmp.eq.s32.totalorder %s38, 1
      %p411 = por %p409, %p410
      %p412 = scmp.ne.s32.totalorder %s404, %s407
      %p413 = scmp.eq.s32.totalorder %s38, 0
      %p414 = por %p412, %p413
      %p415 = scmp.ne.s32.totalorder %s404, %s407
      %p416 = scmp.eq.s32.totalorder %s43, 1
      %p417 = por %p415, %p416
      %p418 = scmp.ne.s32.totalorder %s407, %s408
      %p419 = scmp.eq.s32.totalorder %s43, 0
      %p420 = por %p418, %p419
      %p421 = scmp.ne.s32.totalorder %s407, %s408
      %p422 = scmp.eq.s32.totalorder %s44, 1
      %p423 = por %p421, %p422
      %p425 = scmp.ne.s32.totalorder %s408, %s424
      %p426 = scmp.eq.s32.totalorder %s44, 0
      %p427 = por %p425, %p426
      %p428 = scmp.le.s32.totalorder 1, %s38
      %p429 = scmp.lt.s32.totalorder %s38, 3
      %p430 = pnand %p428, %p429
      %p431 = pneg %p430
      // Predicated region
      $region9: #{tpu_custom_call.1} parent=5 // pred_check
        _
      $region10: #{tpu_custom_call.1} parent=5 // pred_check_branch
        %433 = sbr.rel (%p430) target = $region12
      $region11: #{tpu_custom_call.1} parent=5 // pred_region
        %s434 = ssub.s32 %s38, 1
        // Predicated region
        $region13: #{tpu_custom_call.1} parent=11 // pred_check
          %p435 = pneg %p111
        $region14: #{tpu_custom_call.1} parent=11 // pred_check_branch
          %437 = sbr.rel (%p435) target = $region16
        $region15: #{tpu_custom_call.1} parent=11 // pred_region
          %s439 = ssub.s32 1024, 1024
          %440 = vsyncadd [#allocation6], %s439
          %s441 = sshll.u32 [#allocation7], 4
          %s442 = int_to_ptr.vmem [resolvable:$true] %s441
          %447 = dma.hbm_to_vmem [thread:$0]  %s2, 1024, %s442, [#allocation6], 64, 64, 4
        $region16: #{tpu_custom_call.1} parent=11 // pred_fallthru
          _
        // Predicated region
        $region17: #{tpu_custom_call.1} parent=11 // pred_check
          %p448 = pneg %p132
        $region18: #{tpu_custom_call.1} parent=11 // pred_check_branch
          %450 = sbr.rel (%p448) target = $region20
        $region19: #{tpu_custom_call.1} parent=11 // pred_region
          _
        $region20: #{tpu_custom_call.1} parent=11 // pred_fallthru
          _
        // Predicated region
        $region21: #{tpu_custom_call.1} parent=11 // pred_check
          %p451 = pneg %p153
        $region22: #{tpu_custom_call.1} parent=11 // pred_check_branch
          %453 = sbr.rel (%p451) target = $region24
        $region23: #{tpu_custom_call.1} parent=11 // pred_region
          %s455 = ssub.s32 1024, 1024
          %456 = vsyncadd [#allocation9], %s455
          %s457 = sshll.u32 [#allocation8], 4
          %s458 = int_to_ptr.vmem [resolvable:$true] %s457
          %463 = dma.hbm_to_vmem [thread:$0]  %s4, 1024, %s458, [#allocation9], 64, 64, 4
        $region24: #{tpu_custom_call.1} parent=11 // pred_fallthru
          _
        // Predicated region
        $region25: #{tpu_custom_call.1} parent=11 // pred_check
          %p464 = pneg %p174
        $region26: #{tpu_custom_call.1} parent=11 // pred_check_branch
          %466 = sbr.rel (%p464) target = $region28
        $region27: #{tpu_custom_call.1} parent=11 // pred_region
          _
        $region28: #{tpu_custom_call.1} parent=11 // pred_fallthru
          _
        // Predicated region
        $region29: #{tpu_custom_call.1} parent=11 // pred_check
          %p467 = pneg %p195
        $region30: #{tpu_custom_call.1} parent=11 // pred_check_branch
          %469 = sbr.rel (%p467) target = $region32
        $region31: #{tpu_custom_call.1} parent=11 // pred_region
          %s471 = ssub.s32 2048, 2048
          %472 = vsyncadd [#allocation9], %s471
          %s473 = sshll.u32 [#allocation10], 4
          %s474 = int_to_ptr.vmem [resolvable:$true] %s473
          %479 = dma.hbm_to_vmem [thread:$0]  %s6, 2048, %s474, [#allocation9], 128, 128, 8
        $region32: #{tpu_custom_call.1} parent=11 // pred_fallthru
          _
        // Predicated region
        $region33: #{tpu_custom_call.1} parent=11 // pred_check
          %p480 = pneg %p216
        $region34: #{tpu_custom_call.1} parent=11 // pred_check_branch
          %482 = sbr.rel (%p480) target = $region36
        $region35: #{tpu_custom_call.1} parent=11 // pred_region
          _
        $region36: #{tpu_custom_call.1} parent=11 // pred_fallthru
          _
        // Predicated region
        $region37: #{tpu_custom_call.1} parent=11 // pred_check
          %p483 = pneg %p237
        $region38: #{tpu_custom_call.1} parent=11 // pred_check_branch
          %485 = sbr.rel (%p483) target = $region40
        $region39: #{tpu_custom_call.1} parent=11 // pred_region
          %s487 = ssub.s32 1024, 1024
          %488 = vsyncadd [#allocation12], %s487
          %s489 = sshll.u32 [#allocation11], 4
          %s490 = int_to_ptr.vmem [resolvable:$true] %s489
          %495 = dma.hbm_to_vmem [thread:$0]  %s8, 1024, %s490, [#allocation12], 64, 64, 4
        $region40: #{tpu_custom_call.1} parent=11 // pred_fallthru
          _
        // Predicated region
        $region41: #{tpu_custom_call.1} parent=11 // pred_check
          %p496 = pneg %p258
        $region42: #{tpu_custom_call.1} parent=11 // pred_check_branch
          %498 = sbr.rel (%p496) target = $region44
        $region43: #{tpu_custom_call.1} parent=11 // pred_region
          _
        $region44: #{tpu_custom_call.1} parent=11 // pred_fallthru
          _
        // Predicated region
        $region45: #{tpu_custom_call.1} parent=11 // pred_check
          %p499 = pneg %p279
        $region46: #{tpu_custom_call.1} parent=11 // pred_check_branch
          %501 = sbr.rel (%p499) target = $region48
        $region47: #{tpu_custom_call.1} parent=11 // pred_region
          %s503 = ssub.s32 1024, 1024
          %504 = vsyncadd [#allocation12], %s503
          %s505 = sshll.u32 [#allocation13], 4
          %s506 = int_to_ptr.vmem [resolvable:$true] %s505
          %511 = dma.hbm_to_vmem [thread:$0]  %s10, 1024, %s506, [#allocation12], 64, 64, 4
        $region48: #{tpu_custom_call.1} parent=11 // pred_fallthru
          _
        // Predicated region
        $region49: #{tpu_custom_call.1} parent=11 // pred_check
          %p512 = pneg %p300
        $region50: #{tpu_custom_call.1} parent=11 // pred_check_branch
          %514 = sbr.rel (%p512) target = $region52
        $region51: #{tpu_custom_call.1} parent=11 // pred_region
          _
        $region52: #{tpu_custom_call.1} parent=11 // pred_fallthru
          _
        // Predicated region
        $region53: #{tpu_custom_call.1} parent=11 // pred_check
          %p515 = pneg %p321
        $region54: #{tpu_custom_call.1} parent=11 // pred_check_branch
          %517 = sbr.rel (%p515) target = $region56
        $region55: #{tpu_custom_call.1} parent=11 // pred_region
          %s519 = ssub.s32 1024, 1024
          %520 = vsyncadd [#allocation15], %s519
          %s521 = sshll.u32 [#allocation14], 4
          %s522 = int_to_ptr.vmem [resolvable:$true] %s521
          %527 = dma.hbm_to_vmem [thread:$0]  %s12, 1024, %s522, [#allocation15], 64, 64, 4
        $region56: #{tpu_custom_call.1} parent=11 // pred_fallthru
          _
        // Predicated region
        $region57: #{tpu_custom_call.1} parent=11 // pred_check
          %p528 = pneg %p342
        $region58: #{tpu_custom_call.1} parent=11 // pred_check_branch
          %530 = sbr.rel (%p528) target = $region60
        $region59: #{tpu_custom_call.1} parent=11 // pred_region
          _
        $region60: #{tpu_custom_call.1} parent=11 // pred_fallthru
          _
      $region12: #{tpu_custom_call.1} parent=5 // pred_fallthru
        _
      %p531 = scmp.lt.s32.totalorder %s38, 2
      // Predicated region
      $region61: #{tpu_custom_call.1} parent=5 // pred_check
        %p532 = pneg %p531
      $region62: #{tpu_custom_call.1} parent=5 // pred_check_branch
        %534 = sbr.rel (%p532) target = $region64
      $region63: #{tpu_custom_call.1} parent=5 // pred_region
        // Predicated region
        $region65: #{tpu_custom_call.1} parent=63 // pred_check
          %p535 = pneg %p58
        $region66: #{tpu_custom_call.1} parent=63 // pred_check_branch
          %537 = sbr.rel (%p535) target = $region68
        $region67: #{tpu_custom_call.1} parent=63 // pred_region
          %s538 = sand.u32 %s48, 1
          %s539 = scalar_lea.sflag [#allocation3], %s538
          %s540 = sand.u32 %s48, 1
          %s541 = smul.addr %s540, 8
          %s542 = scalar_lea.vmem [#allocation2], %s541
          %s544 = ssub.s32 128, 128
          %545 = vsyncadd %s539, %s544
          %s546 = smul.addr %s38, 128
          %s547 = scalar_lea.hbm %s0, %s546
          %s549 = sshll.u32 %s542, 4
          %s550 = int_to_ptr.vmem [resolvable:$true] %s549
          %552 = dma.hbm_to_vmem [thread:$0]  %s547, 128, %s550, %s539
        $region68: #{tpu_custom_call.1} parent=63 // pred_fallthru
          _
        // Predicated region
        $region69: #{tpu_custom_call.1} parent=63 // pred_check
          %p553 = pneg %p84
        $region70: #{tpu_custom_call.1} parent=63 // pred_check_branch
          %555 = sbr.rel (%p553) target = $region72
        $region71: #{tpu_custom_call.1} parent=63 // pred_region
          %s556 = sand.u32 %s38, 1
          %s557 = scalar_lea.sflag [#allocation6], %s556
          %s558 = sand.u32 %s74, 1
          %s559 = smul.addr %s558, 8
          %s560 = scalar_lea.vmem [#allocation5], %s559
          %s562 = ssub.s32 128, 128
          %563 = vsyncadd %s557, %s562
          %s564 = smul.addr %s38, 128
          %s565 = scalar_lea.hbm %s1, %s564
          %s567 = sshll.u32 %s560, 4
          %s568 = int_to_ptr.vmem [resolvable:$true] %s567
          %570 = dma.hbm_to_vmem [thread:$0]  %s565, 128, %s568, %s557
        $region72: #{tpu_custom_call.1} parent=63 // pred_fallthru
          _
      $region64: #{tpu_custom_call.1} parent=5 // pred_fallthru
        _
      %p571 = scmp.le.s32.totalorder 1, %s38
      %p572 = scmp.lt.s32.totalorder %s38, 3
      %p573 = pnand %p571, %p572
      %p574 = pneg %p573
      // Predicated region
      $region73: #{tpu_custom_call.1} parent=5 // pred_check
        _
      $region74: #{tpu_custom_call.1} parent=5 // pred_check_branch
        %576 = sbr.rel (%p573) target = $region76
      $region75: #{tpu_custom_call.1} parent=5 // pred_region
        %s577 = ssub.s32 %s38, 1
        %s578 = sand.u32 %s51, 1
        %s579 = scalar_lea.sflag [#allocation3], %s578
        %s580 = sand.u32 %s51, 1
        %s581 = smul.addr %s580, 8
        %s582 = scalar_lea.vmem [#allocation2], %s581
        // Predicated region
        $region77: #{tpu_custom_call.1} parent=75 // pred_check
          %p583 = pneg %p64
        $region78: #{tpu_custom_call.1} parent=75 // pred_check_branch
          %585 = sbr.rel (%p583) target = $region80
        $region79: #{tpu_custom_call.1} parent=75 // pred_region
          %586 = dma.done %s579, 128
        $region80: #{tpu_custom_call.1} parent=75 // pred_fallthru
          _
        %s587 = sand.u32 %s43, 1
        %s588 = scalar_lea.sflag [#allocation6], %s587
        %s589 = sand.u32 %s77, 1
        %s590 = smul.addr %s589, 8
        %s591 = scalar_lea.vmem [#allocation5], %s590
        // Predicated region
        $region81: #{tpu_custom_call.1} parent=75 // pred_check
          %p592 = pneg %p90
        $region82: #{tpu_custom_call.1} parent=75 // pred_check_branch
          %594 = sbr.rel (%p592) target = $region84
        $region83: #{tpu_custom_call.1} parent=75 // pred_region
          %595 = dma.done %s588, 128
        $region84: #{tpu_custom_call.1} parent=75 // pred_fallthru
          _
        // Predicated region
        $region85: #{tpu_custom_call.1} parent=75 // pred_check
          %p596 = pneg %p111
        $region86: #{tpu_custom_call.1} parent=75 // pred_check_branch
          %598 = sbr.rel (%p596) target = $region88
        $region87: #{tpu_custom_call.1} parent=75 // pred_region
          %599 = dma.done [#allocation6], 1024
        $region88: #{tpu_custom_call.1} parent=75 // pred_fallthru
          _
        // Predicated region
        $region89: #{tpu_custom_call.1} parent=75 // pred_check
          %p600 = pneg %p153
        $region90: #{tpu_custom_call.1} parent=75 // pred_check_branch
          %602 = sbr.rel (%p600) target = $region92
        $region91: #{tpu_custom_call.1} parent=75 // pred_region
          %603 = dma.done [#allocation9], 1024
        $region92: #{tpu_custom_call.1} parent=75 // pred_fallthru
          _
        // Predicated region
        $region93: #{tpu_custom_call.1} parent=75 // pred_check
          %p604 = pneg %p195
        $region94: #{tpu_custom_call.1} parent=75 // pred_check_branch
          %606 = sbr.rel (%p604) target = $region96
        $region95: #{tpu_custom_call.1} parent=75 // pred_region
          %607 = dma.done [#allocation9], 2048
        $region96: #{tpu_custom_call.1} parent=75 // pred_fallthru
          _
        // Predicated region
        $region97: #{tpu_custom_call.1} parent=75 // pred_check
          %p608 = pneg %p237
        $region98: #{tpu_custom_call.1} parent=75 // pred_check_branch
          %610 = sbr.rel (%p608) target = $region100
        $region99: #{tpu_custom_call.1} parent=75 // pred_region
          %611 = dma.done [#allocation12], 1024
        $region100: #{tpu_custom_call.1} parent=75 // pred_fallthru
          _
        // Predicated region
        $region101: #{tpu_custom_call.1} parent=75 // pred_check
          %p612 = pneg %p279
        $region102: #{tpu_custom_call.1} parent=75 // pred_check_branch
          %614 = sbr.rel (%p612) target = $region104
        $region103: #{tpu_custom_call.1} parent=75 // pred_region
          %615 = dma.done [#allocation12], 1024
        $region104: #{tpu_custom_call.1} parent=75 // pred_fallthru
          _
        // Predicated region
        $region105: #{tpu_custom_call.1} parent=75 // pred_check
          %p616 = pneg %p321
        $region106: #{tpu_custom_call.1} parent=75 // pred_check_branch
          %618 = sbr.rel (%p616) target = $region108
        $region107: #{tpu_custom_call.1} parent=75 // pred_region
          %619 = dma.done [#allocation15], 1024
        $region108: #{tpu_custom_call.1} parent=75 // pred_fallthru
          _
        %s620 = sand.u32 %s51, 1
        %s621 = scalar_lea.sflag [#allocation3], %s620
        %s622 = sand.u32 %s51, 1
        %s623 = smul.addr %s622, 8
        %s624 = scalar_lea.vmem [#allocation2], %s623
        %p625 = pneg %p64
        %p626 = pneg %p61
        %s627 = sand.u32 %s43, 1
        %s628 = scalar_lea.sflag [#allocation6], %s627
        %s629 = sand.u32 %s77, 1
        %s630 = smul.addr %s629, 8
        %s631 = scalar_lea.vmem [#allocation5], %s630
        %p632 = pneg %p90
        %p633 = pneg %p87
        %p634 = pneg %p111
        %p635 = pneg %p108
        %p636 = pneg %p132
        %p637 = pneg %p129
        %p638 = pneg %p153
        %p639 = pneg %p150
        %p640 = pneg %p174
        %p641 = pneg %p171
        %p642 = pneg %p195
        %p643 = pneg %p192
        %p644 = pneg %p216
        %p645 = pneg %p213
        %p646 = pneg %p237
        %p647 = pneg %p234
        %p648 = pneg %p258
        %p649 = pneg %p255
        %p650 = pneg %p279
        %p651 = pneg %p276
        %p652 = pneg %p300
        %p653 = pneg %p297
        %p654 = pneg %p321
        %p655 = pneg %p318
        %p656 = pneg %p342
        %p657 = pneg %p339
        %p658 = pneg %p368
        %p659 = pneg %p365
        %s660 = sand.u32 %s355, 1
        %s661 = scalar_lea.sflag [#allocation4], %s660
        %s662 = sand.u32 %s355, 1
        %s663 = smul.addr %s662, 8
        %s664 = scalar_lea.vmem [#allocation16], %s663
        %p665 = pneg %p394
        %p666 = pneg %p391
        %s667 = sand.u32 %s381, 1
        %s668 = scalar_lea.sflag [#allocation18], %s667
        %s669 = sand.u32 %s381, 1
        %s670 = smul.addr %s669, 8
        %s671 = scalar_lea.vmem [#allocation17], %s670
        %p672 = pneg %p420
        %p673 = pneg %p417
        %p674 = scmp.lt.s32.totalorder %s43, 1
        %s675 = scalar_select %p674, %s43, 1
        %s676 = smul.addr %s675, 8
        %s677 = scalar_lea.vmem %s16, %s676
        %p678 = scmp.lt.s32.totalorder %s43, 1
        %s679 = scalar_select %p678, %s43, 1
        %s680 = smul.addr %s679, 8
        %s681 = scalar_lea.vmem %s16, %s680
        %v683 = vld [vmem:[%s582] sm:$0xff]
        %v684 = vld [vmem:[#allocation7] sm:$0xf]
        %v685 = vld [vmem:[#allocation7 + $0x4] sm:$0xf]
        %v686 = vld [vmem:[#allocation7 + $0x8] sm:$0xf]
        %v687 = vld [vmem:[#allocation7 + $0xc] sm:$0xf]
        %v688 = vld [vmem:[#allocation7 + $0x10] sm:$0xf]
        %v689 = vld [vmem:[#allocation7 + $0x14] sm:$0xf]
        %v690 = vld [vmem:[#allocation7 + $0x18] sm:$0xf]
        %v691 = vld [vmem:[#allocation7 + $0x1c] sm:$0xf]
        %v692 = vld [vmem:[#allocation7 + $0x20] sm:$0xf]
        %v693 = vld [vmem:[#allocation7 + $0x24] sm:$0xf]
        %v694 = vld [vmem:[#allocation7 + $0x28] sm:$0xf]
        %v695 = vld [vmem:[#allocation7 + $0x2c] sm:$0xf]
        %v696 = vld [vmem:[#allocation7 + $0x30] sm:$0xf]
        %v697 = vld [vmem:[#allocation7 + $0x34] sm:$0xf]
        %v698 = vld [vmem:[#allocation7 + $0x38] sm:$0xf]
        %v699 = vld [vmem:[#allocation7 + $0x3c] sm:$0xf]
        %v700 = vld [vmem:[%s3] sm:$0x1]
        %v701 = vpack.c.bf16 %v683, %v683
        %v703 = vlaneseq
        %v704 = vshrl.u32 %v703, 7
        %v705 = vsub.s32 0, %v704
        %v706 = vrot.slane %v700, %v705
        %v724 = vunpack.c.l.b16 %v684
        %v725 = vunpack.c.l.b16 %v685
        %v726 = vunpack.c.l.b16 %v686
        %v727 = vunpack.c.l.b16 %v687
        %v728 = vunpack.c.l.b16 %v688
        %v729 = vunpack.c.l.b16 %v689
        %v730 = vunpack.c.l.b16 %v690
        %v731 = vunpack.c.l.b16 %v691
        %v732 = vunpack.c.l.b16 %v692
        %v733 = vunpack.c.l.b16 %v693
        %v734 = vunpack.c.l.b16 %v694
        %v735 = vunpack.c.l.b16 %v695
        %v736 = vunpack.c.l.b16 %v696
        %v737 = vunpack.c.l.b16 %v697
        %v738 = vunpack.c.l.b16 %v698
        %v739 = vunpack.c.l.b16 %v699
        %v740 = vpack.c.b16 %v725, %v724
        %v741 = vpack.c.b16 %v727, %v726
        %v742 = vpack.c.b16 %v729, %v728
        %v743 = vpack.c.b16 %v731, %v730
        %v744 = vpack.c.b16 %v733, %v732
        %v745 = vpack.c.b16 %v735, %v734
        %v746 = vpack.c.b16 %v737, %v736
        %v747 = vpack.c.b16 %v739, %v738
        %756 = vmatprep.subr.bf16.mxu0 0
        %757 = vmatpush1.bf16.msra.mxu0 %v747
        %758 = vmatprep.subr.bf16.mxu0 0
        %759 = vmatpush1.bf16.msra.mxu0 %v746
        %760 = vmatprep.subr.bf16.mxu0 0
        %761 = vmatpush1.bf16.msra.mxu0 %v745
        %762 = vmatprep.subr.bf16.mxu0 0
        %763 = vmatpush1.bf16.msra.mxu0 %v744
        %764 = vmatprep.subr.bf16.mxu0 0
        %765 = vmatpush1.bf16.msra.mxu0 %v743
        %766 = vmatprep.subr.bf16.mxu0 0
        %767 = vmatpush1.bf16.msra.mxu0 %v742
        %768 = vmatprep.subr.bf16.mxu0 0
        %769 = vmatpush1.bf16.msra.mxu0 %v741
        %770 = vmatprep.subr.bf16.mxu0 0
        %771 = vmatpush1.bf16.msra.mxu0 %v740
        %772 = vmatprep.subr.bf16.mxu0 0
        %773 = vmatpush2.bf16.msra.mxu0 0
        %774 = vmatprep.subr.bf16.mxu0 0
        %775 = vmatpush2.bf16.msra.mxu0 0
        %776 = vmatprep.subr.bf16.mxu0 0
        %777 = vmatpush2.bf16.msra.mxu0 0
        %778 = vmatprep.subr.bf16.mxu0 0
        %779 = vmatpush2.bf16.msra.mxu0 0
        %780 = vmatprep.subr.bf16.mxu0 0
        %781 = vmatpush2.bf16.msra.mxu0 0
        %782 = vmatprep.subr.bf16.mxu0 0
        %783 = vmatpush2.bf16.msra.mxu0 0
        %784 = vmatprep.subr.bf16.mxu0 0
        %785 = vmatpush2.bf16.msra.mxu0 0
        %786 = vmatprep.subr.bf16.mxu0 0
        %787 = vmatpush2.bf16.msra.mxu0 0
        %788 = vmatprep.mubr.bf16.mxu0 0
        %789 = vmatmul.mubr.bf16.gmra.mxu0 %v701
        %v790 = vpop.f32.mrf.mxu0
        %v791 = vadd.f32 %v706, %v790
        %v792 = vpop.f32.mrf.mxu0
        %v793 = vpop.f32.mrf.mxu0
        %v794 = vpop.f32.mrf.mxu0
        %795 = vdwg.mxu0
        %v796 = vmax.f32 %v791, 0.0
        %v797 = vld [vmem:[#allocation8] sm:$0xf]
        %v798 = vld [vmem:[#allocation8 + $0x4] sm:$0xf]
        %v799 = vld [vmem:[#allocation8 + $0x8] sm:$0xf]
        %v800 = vld [vmem:[#allocation8 + $0xc] sm:$0xf]
        %v801 = vld [vmem:[#allocation8 + $0x10] sm:$0xf]
        %v802 = vld [vmem:[#allocation8 + $0x14] sm:$0xf]
        %v803 = vld [vmem:[#allocation8 + $0x18] sm:$0xf]
        %v804 = vld [vmem:[#allocation8 + $0x1c] sm:$0xf]
        %v805 = vld [vmem:[#allocation8 + $0x20] sm:$0xf]
        %v806 = vld [vmem:[#allocation8 + $0x24] sm:$0xf]
        %v807 = vld [vmem:[#allocation8 + $0x28] sm:$0xf]
        %v808 = vld [vmem:[#allocation8 + $0x2c] sm:$0xf]
        %v809 = vld [vmem:[#allocation8 + $0x30] sm:$0xf]
        %v810 = vld [vmem:[#allocation8 + $0x34] sm:$0xf]
        %v811 = vld [vmem:[#allocation8 + $0x38] sm:$0xf]
        %v812 = vld [vmem:[#allocation8 + $0x3c] sm:$0xf]
        %v813 = vld [vmem:[%s5] sm:$0x1]
        %v814 = vpack.c.bf16 %v796, %v796
        %v816 = vlaneseq
        %v817 = vshrl.u32 %v816, 7
        %v818 = vsub.s32 0, %v817
        %v819 = vrot.slane %v813, %v818
        %v837 = vunpack.c.l.b16 %v797
        %v838 = vunpack.c.l.b16 %v798
        %v839 = vunpack.c.l.b16 %v799
        %v840 = vunpack.c.l.b16 %v800
        %v841 = vunpack.c.l.b16 %v801
        %v842 = vunpack.c.l.b16 %v802
        %v843 = vunpack.c.l.b16 %v803
        %v844 = vunpack.c.l.b16 %v804
        %v845 = vunpack.c.l.b16 %v805
        %v846 = vunpack.c.l.b16 %v806
        %v847 = vunpack.c.l.b16 %v807
        %v848 = vunpack.c.l.b16 %v808
        %v849 = vunpack.c.l.b16 %v809
        %v850 = vunpack.c.l.b16 %v810
        %v851 = vunpack.c.l.b16 %v811
        %v852 = vunpack.c.l.b16 %v812
        %v853 = vpack.c.b16 %v838, %v837
        %v854 = vpack.c.b16 %v840, %v839
        %v855 = vpack.c.b16 %v842, %v841
        %v856 = vpack.c.b16 %v844, %v843
        %v857 = vpack.c.b16 %v846, %v845
        %v858 = vpack.c.b16 %v848, %v847
        %v859 = vpack.c.b16 %v850, %v849
        %v860 = vpack.c.b16 %v852, %v851
        %869 = vmatprep.subr.bf16.mxu0 0
        %870 = vmatpush1.bf16.msra.mxu0 %v860
        %871 = vmatprep.subr.bf16.mxu0 0
        %872 = vmatpush1.bf16.msra.mxu0 %v859
        %873 = vmatprep.subr.bf16.mxu0 0
        %874 = vmatpush1.bf16.msra.mxu0 %v858
        %875 = vmatprep.subr.bf16.mxu0 0
        %876 = vmatpush1.bf16.msra.mxu0 %v857
        %877 = vmatprep.subr.bf16.mxu0 0
        %878 = vmatpush1.bf16.msra.mxu0 %v856
        %879 = vmatprep.subr.bf16.mxu0 0
        %880 = vmatpush1.bf16.msra.mxu0 %v855
        %881 = vmatprep.subr.bf16.mxu0 0
        %882 = vmatpush1.bf16.msra.mxu0 %v854
        %883 = vmatprep.subr.bf16.mxu0 0
        %884 = vmatpush1.bf16.msra.mxu0 %v853
        %885 = vmatprep.subr.bf16.mxu0 0
        %886 = vmatpush2.bf16.msra.mxu0 0
        %887 = vmatprep.subr.bf16.mxu0 0
        %888 = vmatpush2.bf16.msra.mxu0 0
        %889 = vmatprep.subr.bf16.mxu0 0
        %890 = vmatpush2.bf16.msra.mxu0 0
        %891 = vmatprep.subr.bf16.mxu0 0
        %892 = vmatpush2.bf16.msra.mxu0 0
        %893 = vmatprep.subr.bf16.mxu0 0
        %894 = vmatpush2.bf16.msra.mxu0 0
        %895 = vmatprep.subr.bf16.mxu0 0
        %896 = vmatpush2.bf16.msra.mxu0 0
        %897 = vmatprep.subr.bf16.mxu0 0
        %898 = vmatpush2.bf16.msra.mxu0 0
        %899 = vmatprep.subr.bf16.mxu0 0
        %900 = vmatpush2.bf16.msra.mxu0 0
        %901 = vmatprep.mubr.bf16.mxu0 0
        %902 = vmatmul.mubr.bf16.gmra.mxu0 %v814
        %v903 = vpop.f32.mrf.mxu0
        %v904 = vadd.f32 %v819, %v903
        %v905 = vpop.f32.mrf.mxu0
        %v906 = vpop.f32.mrf.mxu0
        %v907 = vpop.f32.mrf.mxu0
        %908 = vdwg.mxu0
        %v909 = vmax.f32 %v904, 0.0
        %v910 = vld [vmem:[#allocation10] sm:$0xff]
        %v911 = vld [vmem:[#allocation10 + $0x8] sm:$0xff]
        %v912 = vld [vmem:[#allocation10 + $0x10] sm:$0xff]
        %v913 = vld [vmem:[#allocation10 + $0x18] sm:$0xff]
        %v914 = vld [vmem:[#allocation10 + $0x20] sm:$0xff]
        %v915 = vld [vmem:[#allocation10 + $0x28] sm:$0xff]
        %v916 = vld [vmem:[#allocation10 + $0x30] sm:$0xff]
        %v917 = vld [vmem:[#allocation10 + $0x38] sm:$0xff]
        %v918 = vld [vmem:[#allocation10 + $0x40] sm:$0xff]
        %v919 = vld [vmem:[#allocation10 + $0x48] sm:$0xff]
        %v920 = vld [vmem:[#allocation10 + $0x50] sm:$0xff]
        %v921 = vld [vmem:[#allocation10 + $0x58] sm:$0xff]
        %v922 = vld [vmem:[#allocation10 + $0x60] sm:$0xff]
        %v923 = vld [vmem:[#allocation10 + $0x68] sm:$0xff]
        %v924 = vld [vmem:[#allocation10 + $0x70] sm:$0xff]
        %v925 = vld [vmem:[#allocation10 + $0x78] sm:$0xff]
        %v926 = vld [vmem:[%s7] sm:$0x3]
        %v927 = vpack.c.bf16 %v909, %v909
        %v929 = vlaneseq
        %v930 = vshrl.u32 %v929, 7
        %v931 = vsub.s32 0, %v930
        %v932 = vrot.slane %v926, %v931
        %v933 = vlaneseq
        %v934 = vshrl.u32 %v933, 7
        %v935 = vsub.s32 1, %v934
        %v936 = vrot.slane %v926, %v935
        %v955 = vunpack.c.l.b16 %v910
        %v956 = vunpack.c.h.b16 %v910
        %v957 = vunpack.c.l.b16 %v911
        %v958 = vunpack.c.h.b16 %v911
        %v959 = vunpack.c.l.b16 %v912
        %v960 = vunpack.c.h.b16 %v912
        %v961 = vunpack.c.l.b16 %v913
        %v962 = vunpack.c.h.b16 %v913
        %v963 = vunpack.c.l.b16 %v914
        %v964 = vunpack.c.h.b16 %v914
        %v965 = vunpack.c.l.b16 %v915
        %v966 = vunpack.c.h.b16 %v915
        %v967 = vunpack.c.l.b16 %v916
        %v968 = vunpack.c.h.b16 %v916
        %v969 = vunpack.c.l.b16 %v917
        %v970 = vunpack.c.h.b16 %v917
        %v971 = vunpack.c.l.b16 %v918
        %v972 = vunpack.c.h.b16 %v918
        %v973 = vunpack.c.l.b16 %v919
        %v974 = vunpack.c.h.b16 %v919
        %v975 = vunpack.c.l.b16 %v920
        %v976 = vunpack.c.h.b16 %v920
        %v977 = vunpack.c.l.b16 %v921
        %v978 = vunpack.c.h.b16 %v921
        %v979 = vunpack.c.l.b16 %v922
        %v980 = vunpack.c.h.b16 %v922
        %v981 = vunpack.c.l.b16 %v923
        %v982 = vunpack.c.h.b16 %v923
        %v983 = vunpack.c.l.b16 %v924
        %v984 = vunpack.c.h.b16 %v924
        %v985 = vunpack.c.l.b16 %v925
        %v986 = vunpack.c.h.b16 %v925
        %v987 = vpack.c.b16 %v957, %v955
        %v988 = vpack.c.b16 %v958, %v956
        %v989 = vpack.c.b16 %v961, %v959
        %v990 = vpack.c.b16 %v962, %v960
        %v991 = vpack.c.b16 %v965, %v963
        %v992 = vpack.c.b16 %v966, %v964
        %v993 = vpack.c.b16 %v969, %v967
        %v994 = vpack.c.b16 %v970, %v968
        %v995 = vpack.c.b16 %v973, %v971
        %v996 = vpack.c.b16 %v974, %v972
        %v997 = vpack.c.b16 %v977, %v975
        %v998 = vpack.c.b16 %v978, %v976
        %v999 = vpack.c.b16 %v981, %v979
        %v1000 = vpack.c.b16 %v982, %v980
        %v1001 = vpack.c.b16 %v985, %v983
        %v1002 = vpack.c.b16 %v986, %v984
        %1019 = vmatprep.subr.bf16.mxu0 %v1002
        %1020 = vmatpush1.bf16.msra.mxu0 %v1001
        %1021 = vmatprep.subr.bf16.mxu0 %v1000
        %1022 = vmatpush1.bf16.msra.mxu0 %v999
        %1023 = vmatprep.subr.bf16.mxu0 %v998
        %1024 = vmatpush1.bf16.msra.mxu0 %v997
        %1025 = vmatprep.subr.bf16.mxu0 %v996
        %1026 = vmatpush1.bf16.msra.mxu0 %v995
        %1027 = vmatprep.subr.bf16.mxu0 %v994
        %1028 = vmatpush1.bf16.msra.mxu0 %v993
        %1029 = vmatprep.subr.bf16.mxu0 %v992
        %1030 = vmatpush1.bf16.msra.mxu0 %v991
        %1031 = vmatprep.subr.bf16.mxu0 %v990
        %1032 = vmatpush1.bf16.msra.mxu0 %v989
        %1033 = vmatprep.subr.bf16.mxu0 %v988
        %1034 = vmatpush1.bf16.msra.mxu0 %v987
        %1035 = vmatprep.subr.bf16.mxu0 0
        %1036 = vmatpush2.bf16.msra.mxu0 0
        %1037 = vmatprep.subr.bf16.mxu0 0
        %1038 = vmatpush2.bf16.msra.mxu0 0
        %1039 = vmatprep.subr.bf16.mxu0 0
        %1040 = vmatpush2.bf16.msra.mxu0 0
        %1041 = vmatprep.subr.bf16.mxu0 0
        %1042 = vmatpush2.bf16.msra.mxu0 0
        %1043 = vmatprep.subr.bf16.mxu0 0
        %1044 = vmatpush2.bf16.msra.mxu0 0
        %1045 = vmatprep.subr.bf16.mxu0 0
        %1046 = vmatpush2.bf16.msra.mxu0 0
        %1047 = vmatprep.subr.bf16.mxu0 0
        %1048 = vmatpush2.bf16.msra.mxu0 0
        %1049 = vmatprep.subr.bf16.mxu0 0
        %1050 = vmatpush2.bf16.msra.mxu0 0
        %1051 = vmatprep.mubr.bf16.mxu0 0
        %1052 = vmatmul.mubr.bf16.gmra.mxu0 %v927
        %v1053 = vpop.f32.mrf.mxu0
        %v1054 = vadd.f32 %v932, %v1053
        %v1055 = vpop.f32.mrf.mxu0
        %v1056 = vadd.f32 %v936, %v1055
        %v1057 = vpop.f32.mrf.mxu0
        %v1058 = vpop.f32.mrf.mxu0
        %1059 = vdwg.mxu0
        %v1060 = vmul.f32 %v1056, 1.442695
        %v1061 = vpow.pop %v1060
        %v1062 = vld [vmem:[%s591] sm:$0xff]
        %v1063 = vmul.f32 %v1061, %v1062
        %v1064 = vadd.f32 %v1054, %v1063
        %1065 = vst [vmem:[%s671] sm:$0xff] %v1064
        %v1066 = vadd.f32 %v1056, 1.0
        %v1067 = vmul.f32 %v1054, %v1054
        %v1068 = vsub.f32 %v1066, %v1067
        %v1069 = vsub.f32 %v1068, %v1061
        %1070 = vadd.xlane.f32.xlu0 %v1069
        %v1071 = vpop.xlane.xlu0 %1070
        %v1072 = vmul.f32 %v1071, -0.5
        %vm1073 = vcmask 7168
        %1074 = vst.msk [vmem:[%s681] sm:$0xff] %vm1073, %v1072
        %v1075 = vld [vmem:[#allocation11] sm:$0xf]
        %v1076 = vld [vmem:[#allocation11 + $0x4] sm:$0xf]
        %v1077 = vld [vmem:[#allocation11 + $0x8] sm:$0xf]
        %v1078 = vld [vmem:[#allocation11 + $0xc] sm:$0xf]
        %v1079 = vld [vmem:[#allocation11 + $0x10] sm:$0xf]
        %v1080 = vld [vmem:[#allocation11 + $0x14] sm:$0xf]
        %v1081 = vld [vmem:[#allocation11 + $0x18] sm:$0xf]
        %v1082 = vld [vmem:[#allocation11 + $0x1c] sm:$0xf]
        %v1083 = vld [vmem:[#allocation11 + $0x20] sm:$0xf]
        %v1084 = vld [vmem:[#allocation11 + $0x24] sm:$0xf]
        %v1085 = vld [vmem:[#allocation11 + $0x28] sm:$0xf]
        %v1086 = vld [vmem:[#allocation11 + $0x2c] sm:$0xf]
        %v1087 = vld [vmem:[#allocation11 + $0x30] sm:$0xf]
        %v1088 = vld [vmem:[#allocation11 + $0x34] sm:$0xf]
        %v1089 = vld [vmem:[#allocation11 + $0x38] sm:$0xf]
        %v1090 = vld [vmem:[#allocation11 + $0x3c] sm:$0xf]
        %v1091 = vld [vmem:[%s9] sm:$0x1]
        %v1092 = vpack.c.bf16 %v1054, %v1054
        %v1094 = vlaneseq
        %v1095 = vshrl.u32 %v1094, 7
        %v1096 = vsub.s32 0, %v1095
        %v1097 = vrot.slane %v1091, %v1096
        %v1115 = vunpack.c.l.b16 %v1075
        %v1116 = vunpack.c.l.b16 %v1076
        %v1117 = vunpack.c.l.b16 %v1077
        %v1118 = vunpack.c.l.b16 %v1078
        %v1119 = vunpack.c.l.b16 %v1079
        %v1120 = vunpack.c.l.b16 %v1080
        %v1121 = vunpack.c.l.b16 %v1081
        %v1122 = vunpack.c.l.b16 %v1082
        %v1123 = vunpack.c.l.b16 %v1083
        %v1124 = vunpack.c.l.b16 %v1084
        %v1125 = vunpack.c.l.b16 %v1085
        %v1126 = vunpack.c.l.b16 %v1086
        %v1127 = vunpack.c.l.b16 %v1087
        %v1128 = vunpack.c.l.b16 %v1088
        %v1129 = vunpack.c.l.b16 %v1089
        %v1130 = vunpack.c.l.b16 %v1090
        %v1131 = vpack.c.b16 %v1116, %v1115
        %v1132 = vpack.c.b16 %v1118, %v1117
        %v1133 = vpack.c.b16 %v1120, %v1119
        %v1134 = vpack.c.b16 %v1122, %v1121
        %v1135 = vpack.c.b16 %v1124, %v1123
        %v1136 = vpack.c.b16 %v1126, %v1125
        %v1137 = vpack.c.b16 %v1128, %v1127
        %v1138 = vpack.c.b16 %v1130, %v1129
        %1147 = vmatprep.subr.bf16.mxu0 0
        %1148 = vmatpush1.bf16.msra.mxu0 %v1138
        %1149 = vmatprep.subr.bf16.mxu0 0
        %1150 = vmatpush1.bf16.msra.mxu0 %v1137
        %1151 = vmatprep.subr.bf16.mxu0 0
        %1152 = vmatpush1.bf16.msra.mxu0 %v1136
        %1153 = vmatprep.subr.bf16.mxu0 0
        %1154 = vmatpush1.bf16.msra.mxu0 %v1135
        %1155 = vmatprep.subr.bf16.mxu0 0
        %1156 = vmatpush1.bf16.msra.mxu0 %v1134
        %1157 = vmatprep.subr.bf16.mxu0 0
        %1158 = vmatpush1.bf16.msra.mxu0 %v1133
        %1159 = vmatprep.subr.bf16.mxu0 0
        %1160 = vmatpush1.bf16.msra.mxu0 %v1132
        %1161 = vmatprep.subr.bf16.mxu0 0
        %1162 = vmatpush1.bf16.msra.mxu0 %v1131
        %1163 = vmatprep.subr.bf16.mxu0 0
        %1164 = vmatpush2.bf16.msra.mxu0 0
        %1165 = vmatprep.subr.bf16.mxu0 0
        %1166 = vmatpush2.bf16.msra.mxu0 0
        %1167 = vmatprep.subr.bf16.mxu0 0
        %1168 = vmatpush2.bf16.msra.mxu0 0
        %1169 = vmatprep.subr.bf16.mxu0 0
        %1170 = vmatpush2.bf16.msra.mxu0 0
        %1171 = vmatprep.subr.bf16.mxu0 0
        %1172 = vmatpush2.bf16.msra.mxu0 0
        %1173 = vmatprep.subr.bf16.mxu0 0
        %1174 = vmatpush2.bf16.msra.mxu0 0
        %1175 = vmatprep.subr.bf16.mxu0 0
        %1176 = vmatpush2.bf16.msra.mxu0 0
        %1177 = vmatprep.subr.bf16.mxu0 0
        %1178 = vmatpush2.bf16.msra.mxu0 0
        %1179 = vmatprep.mubr.bf16.mxu0 0
        %1180 = vmatmul.mubr.bf16.gmra.mxu0 %v1092
        %v1181 = vpop.f32.mrf.mxu0
        %v1182 = vadd.f32 %v1097, %v1181
        %v1183 = vpop.f32.mrf.mxu0
        %v1184 = vpop.f32.mrf.mxu0
        %v1185 = vpop.f32.mrf.mxu0
        %1186 = vdwg.mxu0
        %v1187 = vmax.f32 %v1182, 0.0
        %v1188 = vld [vmem:[#allocation13] sm:$0xf]
        %v1189 = vld [vmem:[#allocation13 + $0x4] sm:$0xf]
        %v1190 = vld [vmem:[#allocation13 + $0x8] sm:$0xf]
        %v1191 = vld [vmem:[#allocation13 + $0xc] sm:$0xf]
        %v1192 = vld [vmem:[#allocation13 + $0x10] sm:$0xf]
        %v1193 = vld [vmem:[#allocation13 + $0x14] sm:$0xf]
        %v1194 = vld [vmem:[#allocation13 + $0x18] sm:$0xf]
        %v1195 = vld [vmem:[#allocation13 + $0x1c] sm:$0xf]
        %v1196 = vld [vmem:[#allocation13 + $0x20] sm:$0xf]
        %v1197 = vld [vmem:[#allocation13 + $0x24] sm:$0xf]
        %v1198 = vld [vmem:[#allocation13 + $0x28] sm:$0xf]
        %v1199 = vld [vmem:[#allocation13 + $0x2c] sm:$0xf]
        %v1200 = vld [vmem:[#allocation13 + $0x30] sm:$0xf]
        %v1201 = vld [vmem:[#allocation13 + $0x34] sm:$0xf]
        %v1202 = vld [vmem:[#allocation13 + $0x38] sm:$0xf]
        %v1203 = vld [vmem:[#allocation13 + $0x3c] sm:$0xf]
        %v1204 = vld [vmem:[%s11] sm:$0x1]
        %v1205 = vpack.c.bf16 %v1187, %v1187
        %v1207 = vlaneseq
        %v1208 = vshrl.u32 %v1207, 7
        %v1209 = vsub.s32 0, %v1208
        %v1210 = vrot.slane %v1204, %v1209
        %v1228 = vunpack.c.l.b16 %v1188
        %v1229 = vunpack.c.l.b16 %v1189
        %v1230 = vunpack.c.l.b16 %v1190
        %v1231 = vunpack.c.l.b16 %v1191
        %v1232 = vunpack.c.l.b16 %v1192
        %v1233 = vunpack.c.l.b16 %v1193
        %v1234 = vunpack.c.l.b16 %v1194
        %v1235 = vunpack.c.l.b16 %v1195
        %v1236 = vunpack.c.l.b16 %v1196
        %v1237 = vunpack.c.l.b16 %v1197
        %v1238 = vunpack.c.l.b16 %v1198
        %v1239 = vunpack.c.l.b16 %v1199
        %v1240 = vunpack.c.l.b16 %v1200
        %v1241 = vunpack.c.l.b16 %v1201
        %v1242 = vunpack.c.l.b16 %v1202
        %v1243 = vunpack.c.l.b16 %v1203
        %v1244 = vpack.c.b16 %v1229, %v1228
        %v1245 = vpack.c.b16 %v1231, %v1230
        %v1246 = vpack.c.b16 %v1233, %v1232
        %v1247 = vpack.c.b16 %v1235, %v1234
        %v1248 = vpack.c.b16 %v1237, %v1236
        %v1249 = vpack.c.b16 %v1239, %v1238
        %v1250 = vpack.c.b16 %v1241, %v1240
        %v1251 = vpack.c.b16 %v1243, %v1242
        %1260 = vmatprep.subr.bf16.mxu0 0
        %1261 = vmatpush1.bf16.msra.mxu0 %v1251
        %1262 = vmatprep.subr.bf16.mxu0 0
        %1263 = vmatpush1.bf16.msra.mxu0 %v1250
        %1264 = vmatprep.subr.bf16.mxu0 0
        %1265 = vmatpush1.bf16.msra.mxu0 %v1249
        %1266 = vmatprep.subr.bf16.mxu0 0
        %1267 = vmatpush1.bf16.msra.mxu0 %v1248
        %1268 = vmatprep.subr.bf16.mxu0 0
        %1269 = vmatpush1.bf16.msra.mxu0 %v1247
        %1270 = vmatprep.subr.bf16.mxu0 0
        %1271 = vmatpush1.bf16.msra.mxu0 %v1246
        %1272 = vmatprep.subr.bf16.mxu0 0
        %1273 = vmatpush1.bf16.msra.mxu0 %v1245
        %1274 = vmatprep.subr.bf16.mxu0 0
        %1275 = vmatpush1.bf16.msra.mxu0 %v1244
        %1276 = vmatprep.subr.bf16.mxu0 0
        %1277 = vmatpush2.bf16.msra.mxu0 0
        %1278 = vmatprep.subr.bf16.mxu0 0
        %1279 = vmatpush2.bf16.msra.mxu0 0
        %1280 = vmatprep.subr.bf16.mxu0 0
        %1281 = vmatpush2.bf16.msra.mxu0 0
        %1282 = vmatprep.subr.bf16.mxu0 0
        %1283 = vmatpush2.bf16.msra.mxu0 0
        %1284 = vmatprep.subr.bf16.mxu0 0
        %1285 = vmatpush2.bf16.msra.mxu0 0
        %1286 = vmatprep.subr.bf16.mxu0 0
        %1287 = vmatpush2.bf16.msra.mxu0 0
        %1288 = vmatprep.subr.bf16.mxu0 0
        %1289 = vmatpush2.bf16.msra.mxu0 0
        %1290 = vmatprep.subr.bf16.mxu0 0
        %1291 = vmatpush2.bf16.msra.mxu0 0
        %1292 = vmatprep.mubr.bf16.mxu0 0
        %1293 = vmatmul.mubr.bf16.gmra.mxu0 %v1205
        %v1294 = vpop.f32.mrf.mxu0
        %v1295 = vadd.f32 %v1210, %v1294
        %v1296 = vpop.f32.mrf.mxu0
        %v1297 = vpop.f32.mrf.mxu0
        %v1298 = vpop.f32.mrf.mxu0
        %1299 = vdwg.mxu0
        %v1300 = vmax.f32 %v1295, 0.0
        %v1301 = vld [vmem:[#allocation14] sm:$0xf]
        %v1302 = vld [vmem:[#allocation14 + $0x4] sm:$0xf]
        %v1303 = vld [vmem:[#allocation14 + $0x8] sm:$0xf]
        %v1304 = vld [vmem:[#allocation14 + $0xc] sm:$0xf]
        %v1305 = vld [vmem:[#allocation14 + $0x10] sm:$0xf]
        %v1306 = vld [vmem:[#allocation14 + $0x14] sm:$0xf]
        %v1307 = vld [vmem:[#allocation14 + $0x18] sm:$0xf]
        %v1308 = vld [vmem:[#allocation14 + $0x1c] sm:$0xf]
        %v1309 = vld [vmem:[#allocation14 + $0x20] sm:$0xf]
        %v1310 = vld [vmem:[#allocation14 + $0x24] sm:$0xf]
        %v1311 = vld [vmem:[#allocation14 + $0x28] sm:$0xf]
        %v1312 = vld [vmem:[#allocation14 + $0x2c] sm:$0xf]
        %v1313 = vld [vmem:[#allocation14 + $0x30] sm:$0xf]
        %v1314 = vld [vmem:[#allocation14 + $0x34] sm:$0xf]
        %v1315 = vld [vmem:[#allocation14 + $0x38] sm:$0xf]
        %v1316 = vld [vmem:[#allocation14 + $0x3c] sm:$0xf]
        %v1317 = vld [vmem:[%s13] sm:$0x1]
        %v1318 = vpack.c.bf16 %v1300, %v1300
        %v1320 = vlaneseq
        %v1321 = vshrl.u32 %v1320, 7
        %v1322 = vsub.s32 0, %v1321
        %v1323 = vrot.slane %v1317, %v1322
        %v1341 = vunpack.c.l.b16 %v1301
        %v1342 = vunpack.c.l.b16 %v1302
        %v1343 = vunpack.c.l.b16 %v1303
        %v1344 = vunpack.c.l.b16 %v1304
        %v1345 = vunpack.c.l.b16 %v1305
        %v1346 = vunpack.c.l.b16 %v1306
        %v1347 = vunpack.c.l.b16 %v1307
        %v1348 = vunpack.c.l.b16 %v1308
        %v1349 = vunpack.c.l.b16 %v1309
        %v1350 = vunpack.c.l.b16 %v1310
        %v1351 = vunpack.c.l.b16 %v1311
        %v1352 = vunpack.c.l.b16 %v1312
        %v1353 = vunpack.c.l.b16 %v1313
        %v1354 = vunpack.c.l.b16 %v1314
        %v1355 = vunpack.c.l.b16 %v1315
        %v1356 = vunpack.c.l.b16 %v1316
        %v1357 = vpack.c.b16 %v1342, %v1341
        %v1358 = vpack.c.b16 %v1344, %v1343
        %v1359 = vpack.c.b16 %v1346, %v1345
        %v1360 = vpack.c.b16 %v1348, %v1347
        %v1361 = vpack.c.b16 %v1350, %v1349
        %v1362 = vpack.c.b16 %v1352, %v1351
        %v1363 = vpack.c.b16 %v1354, %v1353
        %v1364 = vpack.c.b16 %v1356, %v1355
        %1373 = vmatprep.subr.bf16.mxu0 0
        %1374 = vmatpush1.bf16.msra.mxu0 %v1364
        %1375 = vmatprep.subr.bf16.mxu0 0
        %1376 = vmatpush1.bf16.msra.mxu0 %v1363
        %1377 = vmatprep.subr.bf16.mxu0 0
        %1378 = vmatpush1.bf16.msra.mxu0 %v1362
        %1379 = vmatprep.subr.bf16.mxu0 0
        %1380 = vmatpush1.bf16.msra.mxu0 %v1361
        %1381 = vmatprep.subr.bf16.mxu0 0
        %1382 = vmatpush1.bf16.msra.mxu0 %v1360
        %1383 = vmatprep.subr.bf16.mxu0 0
        %1384 = vmatpush1.bf16.msra.mxu0 %v1359
        %1385 = vmatprep.subr.bf16.mxu0 0
        %1386 = vmatpush1.bf16.msra.mxu0 %v1358
        %1387 = vmatprep.subr.bf16.mxu0 0
        %1388 = vmatpush1.bf16.msra.mxu0 %v1357
        %1389 = vmatprep.subr.bf16.mxu0 0
        %1390 = vmatpush2.bf16.msra.mxu0 0
        %1391 = vmatprep.subr.bf16.mxu0 0
        %1392 = vmatpush2.bf16.msra.mxu0 0
        %1393 = vmatprep.subr.bf16.mxu0 0
        %1394 = vmatpush2.bf16.msra.mxu0 0
        %1395 = vmatprep.subr.bf16.mxu0 0
        %1396 = vmatpush2.bf16.msra.mxu0 0
        %1397 = vmatprep.subr.bf16.mxu0 0
        %1398 = vmatpush2.bf16.msra.mxu0 0
        %1399 = vmatprep.subr.bf16.mxu0 0
        %1400 = vmatpush2.bf16.msra.mxu0 0
        %1401 = vmatprep.subr.bf16.mxu0 0
        %1402 = vmatpush2.bf16.msra.mxu0 0
        %1403 = vmatprep.subr.bf16.mxu0 0
        %1404 = vmatpush2.bf16.msra.mxu0 0
        %1405 = vmatprep.mubr.bf16.mxu0 0
        %1406 = vmatmul.mubr.bf16.gmra.mxu0 %v1318
        %v1407 = vpop.f32.mrf.mxu0
        %v1408 = vadd.f32 %v1323, %v1407
        %v1409 = vpop.f32.mrf.mxu0
        %v1410 = vpop.f32.mrf.mxu0
        %v1411 = vpop.f32.mrf.mxu0
        %1412 = vdwg.mxu0
        %1413 = vst [vmem:[%s664] sm:$0xff] %v1408
        %s1414 = sand.u32 %s355, 1
        %s1415 = scalar_lea.sflag [#allocation4], %s1414
        %s1416 = sand.u32 %s355, 1
        %s1417 = smul.addr %s1416, 8
        %s1418 = scalar_lea.vmem [#allocation16], %s1417
        %s1419 = sand.u32 %s381, 1
        %s1420 = scalar_lea.sflag [#allocation18], %s1419
        %s1421 = sand.u32 %s381, 1
        %s1422 = smul.addr %s1421, 8
        %s1423 = scalar_lea.vmem [#allocation17], %s1422
        %p1424 = scmp.lt.s32.totalorder %s43, 1
        %s1425 = scalar_select %p1424, %s43, 1
        %s1426 = smul.addr %s1425, 8
        %s1427 = scalar_lea.vmem %s16, %s1426
        // Predicated region
        $region109: #{tpu_custom_call.1} parent=75 // pred_check
          %p1428 = pneg %p365
        $region110: #{tpu_custom_call.1} parent=75 // pred_check_branch
          %1430 = sbr.rel (%p1428) target = $region112
        $region111: #{tpu_custom_call.1} parent=75 // pred_region
          %s1432 = ssub.s32 128, 128
          %1433 = vsyncadd %s1415, %s1432
          %s1434 = smul.addr %s43, 128
          %s1435 = scalar_lea.hbm %s14, %s1434
          %s1437 = sshll.u32 %s1418, 4
          %s1438 = int_to_ptr.vmem [resolvable:$true] %s1437
          %1440 = dma.vmem_to_hbm [thread:$0]  %s1438, 128, %s1435, %s1415
        $region112: #{tpu_custom_call.1} parent=75 // pred_fallthru
          _
        // Predicated region
        $region113: #{tpu_custom_call.1} parent=75 // pred_check
          %p1441 = pneg %p391
        $region114: #{tpu_custom_call.1} parent=75 // pred_check_branch
          %1443 = sbr.rel (%p1441) target = $region116
        $region115: #{tpu_custom_call.1} parent=75 // pred_region
          %s1445 = ssub.s32 128, 128
          %1446 = vsyncadd %s1420, %s1445
          %s1447 = smul.addr %s43, 128
          %s1448 = scalar_lea.hbm %s15, %s1447
          %s1450 = sshll.u32 %s1423, 4
          %s1451 = int_to_ptr.vmem [resolvable:$true] %s1450
          %1453 = dma.vmem_to_hbm [thread:$0]  %s1451, 128, %s1448, %s1420
        $region116: #{tpu_custom_call.1} parent=75 // pred_fallthru
          _
        // Predicated region
        $region117: #{tpu_custom_call.1} parent=75 // pred_check
          %p1454 = pneg %p417
        $region118: #{tpu_custom_call.1} parent=75 // pred_check_branch
          %1456 = sbr.rel (%p1454) target = $region120
        $region119: #{tpu_custom_call.1} parent=75 // pred_region
          _
        $region120: #{tpu_custom_call.1} parent=75 // pred_fallthru
          _
      $region76: #{tpu_custom_call.1} parent=5 // pred_fallthru
        _
      %p1457 = scmp.le.s32.totalorder 2, %s38
      // Predicated region
      $region121: #{tpu_custom_call.1} parent=5 // pred_check
        %p1458 = pneg %p1457
      $region122: #{tpu_custom_call.1} parent=5 // pred_check_branch
        %1460 = sbr.rel (%p1458) target = $region124
      $region123: #{tpu_custom_call.1} parent=5 // pred_region
        %s1461 = ssub.s32 %s38, 2
        // Predicated region
        $region125: #{tpu_custom_call.1} parent=123 // pred_check
          %p1462 = pneg %p371
        $region126: #{tpu_custom_call.1} parent=123 // pred_check_branch
          %1464 = sbr.rel (%p1462) target = $region128
        $region127: #{tpu_custom_call.1} parent=123 // pred_region
          %s1465 = sand.u32 %s356, 1
          %s1466 = scalar_lea.sflag [#allocation4], %s1465
          %s1467 = sand.u32 %s356, 1
          %s1468 = smul.addr %s1467, 8
          %s1469 = scalar_lea.vmem [#allocation16], %s1468
          %1470 = dma.done %s1466, 128
        $region128: #{tpu_custom_call.1} parent=123 // pred_fallthru
          _
        // Predicated region
        $region129: #{tpu_custom_call.1} parent=123 // pred_check
          %p1471 = pneg %p397
        $region130: #{tpu_custom_call.1} parent=123 // pred_check_branch
          %1473 = sbr.rel (%p1471) target = $region132
        $region131: #{tpu_custom_call.1} parent=123 // pred_region
          %s1474 = sand.u32 %s382, 1
          %s1475 = scalar_lea.sflag [#allocation18], %s1474
          %s1476 = sand.u32 %s382, 1
          %s1477 = smul.addr %s1476, 8
          %s1478 = scalar_lea.vmem [#allocation17], %s1477
          %1479 = dma.done %s1475, 128
        $region132: #{tpu_custom_call.1} parent=123 // pred_fallthru
          _
        // Predicated region
        $region133: #{tpu_custom_call.1} parent=123 // pred_check
          %p1480 = pneg %p423
        $region134: #{tpu_custom_call.1} parent=123 // pred_check_branch
          %1482 = sbr.rel (%p1480) target = $region136
        $region135: #{tpu_custom_call.1} parent=123 // pred_region
          %p1483 = scmp.lt.s32.totalorder %s44, 1
          %s1484 = scalar_select %p1483, %s44, 1
          %s1485 = smul.addr %s1484, 8
          %s1486 = scalar_lea.vmem %s16, %s1485
        $region136: #{tpu_custom_call.1} parent=123 // pred_fallthru
          _
      $region124: #{tpu_custom_call.1} parent=5 // pred_fallthru
        _
    $region6: #{tpu_custom_call.1} parent=1 // loop_footer
      %s42 = sadd.s32 1, %s38
    $region7: #{tpu_custom_call.1} parent=1 // loop_footer_branch
      %37 = sbr.rel target = $region3
    $region8: #{tpu_custom_call.1} parent=1 // loop_exit
      _
    %1487 = vsyncpa [#allocation3], 1
    %s1488 = scalar_lea.sflag [#allocation3], 1
    %1489 = vsyncpa %s1488, 1
    %1490 = vsyncpa [#allocation6], 1
    %s1491 = scalar_lea.sflag [#allocation6], 1
    %1492 = vsyncpa %s1491, 1
    %1493 = vsyncpa [#allocation9], 1
    %1494 = vsyncpa [#allocation12], 1
    %1495 = vsyncpa [#allocation15], 1
    %1496 = vsyncpa [#allocation4], 1
    %s1497 = scalar_lea.sflag [#allocation4], 1
    %1498 = vsyncpa %s1497, 1
    %1499 = vsyncpa [#allocation18], 1
    %s1500 = scalar_lea.sflag [#allocation18], 1
    %1501 = vsyncpa %s1500, 1

</llo_original>
